<compile_context>
chip_gen: v7x
topology: tpu7x:2x2x1
jax: 0.10.0
libtpu: 0.0.40
codegen_flags: <defaults>
</compile_context>

<pallas_src>
import functools

import jax
import jax.numpy as jnp
from jax.experimental import pallas as pl
from jax.experimental.pallas import tpu as pltpu

LANE = 128
# Per-grid-step overhead (~0.35 us) expressed in "hidden column equivalents"
# for the chunk-width cost model (rough, MXU-peak based).
_STEP_OVERHEAD_COLS = 128


def _round_up(n, m):
    return ((n + m - 1) // m) * m


def _vmem_budget_bytes():
    """Generation-aware usable-VMEM budget (~85% of physical capacity)."""
    try:
        cap = int(pltpu.get_tpu_info().vmem_capacity_bytes)
    except Exception:
        cap = 64 << 20  # conservative fallback (v7x per-TC capacity)
    return int(0.85 * cap)


def _spec(block_shape, index_map, buffer_count=None):
    """BlockSpec with optional pipeline buffering; degrades gracefully."""
    if buffer_count is not None and hasattr(pl, "Buffered"):
        try:
            return pl.BlockSpec(block_shape, index_map,
                                pipeline_mode=pl.Buffered(buffer_count))
        except Exception:
            pass
    return pl.BlockSpec(block_shape, index_map)


# --------------------------------------------------------------------------
# Kernels
# --------------------------------------------------------------------------
def _resident_kernel(x_ref, wdown_ref, bdown_ref, wup_ref, bup_ref, o_ref,
                     *, approx_gelu):
    """Weights fully VMEM-resident: 2 matmuls, no accumulator scratch."""
    h = jnp.dot(x_ref[...], wdown_ref[...],
                preferred_element_type=jnp.float32) + bdown_ref[...]
    g = jax.nn.gelu(h, approximate=approx_gelu)  # applies to both branches
    out = jnp.dot(g.astype(wup_ref.dtype), wup_ref[...],
                  preferred_element_type=jnp.float32)
    o_ref[...] = (out + bup_ref[...]).astype(o_ref.dtype)


def _chunked_kernel(x_ref, wdown_ref, bdown_ref, wup_ref, bup_ref, o_ref,
                    acc_ref, *, approx_gelu):
    """Hidden dim chunked on a reduction grid axis with an f32 accumulator."""
    c = pl.program_id(1)

    h = jnp.dot(x_ref[...], wdown_ref[...],
                preferred_element_type=jnp.float32) + bdown_ref[...]
    g = jax.nn.gelu(h, approximate=approx_gelu)
    partial = jnp.dot(g.astype(wup_ref.dtype), wup_ref[...],
                      preferred_element_type=jnp.float32)

    @pl.when(c == 0)
    def _first():  # direct store: no zero-fill pass
        acc_ref[...] = partial

    @pl.when(c > 0)
    def _rest():
        acc_ref[...] += partial

    @pl.when(c == pl.num_programs(1) - 1)
    def _finalize():
        # b_up already contains b2 + scaling*bu; added once, not per chunk.
        o_ref[...] = (acc_ref[...] + bup_ref[...]).astype(o_ref.dtype)


# --------------------------------------------------------------------------
# Param prep: concatenate / pad / fold scaling, cast to bf16 once.
# --------------------------------------------------------------------------
def prepare_fused_params(params, scaling, *, dtype=jnp.bfloat16):
    """params hold (in, out)-layout weights (already transposed from torch)."""
    w1 = jnp.asarray(params["w1"], jnp.float32)
    b1 = jnp.asarray(params["b1"], jnp.float32).reshape(-1)
    w2 = jnp.asarray(params["w2"], jnp.float32)
    b2 = jnp.asarray(params["b2"], jnp.float32).reshape(-1)
    wd = jnp.asarray(params["wd"], jnp.float32)
    bd = jnp.asarray(params["bd"], jnp.float32).reshape(-1)
    wu = jnp.asarray(params["wu"], jnp.float32)
    bu = jnp.asarray(params["bu"], jnp.float32).reshape(-1)

    D, mlp_dim = w1.shape
    mid_dim = wd.shape[1]

    Dp = _round_up(D, LANE)           # lane-dense embed dim
    n1 = _round_up(mlp_dim, LANE)     # block MLP hidden (lane-padded)
    n2 = _round_up(mid_dim, LANE)     # adapter hidden (lane-padded)
    H = n1 + n2                       # fused hidden (always a LANE multiple)

    # Fused down weight (Dp, H) and bias (1, H).
    w_down = jnp.zeros((Dp, H), jnp.float32)
    w_down = w_down.at[:D, :mlp_dim].set(w1)
    w_down = w_down.at[:D, n1:n1 + mid_dim].set(wd)
    b_down = jnp.zeros((1, H), jnp.float32)
    b_down = b_down.at[0, :mlp_dim].set(b1)
    b_down = b_down.at[0, n1:n1 + mid_dim].set(bd)

    # Fused up weight (H, Dp) and bias (1, Dp); scaling folded in.
    w_up = jnp.zeros((H, Dp), jnp.float32)
    w_up = w_up.at[:mlp_dim, :D].set(w2)
    w_up = w_up.at[n1:n1 + mid_dim, :D].set(float(scaling) * wu)
    b_up = jnp.zeros((1, Dp), jnp.float32)
    b_up = b_up.at[0, :D].set(b2 + float(scaling) * bu)

    return {
        "w_down": w_down.astype(dtype),
        "b_down": b_down,             # biases stay f32
        "w_up": w_up.astype(dtype),
        "b_up": b_up,
        "D": D, "Dp": Dp, "H": H,
    }


# --------------------------------------------------------------------------
# Wrapper
# --------------------------------------------------------------------------
def adapt_mlp(x, fused, *, tm=512, approx_gelu=True, out_dtype=None,
              force_chunked=False):
    """x: (M, D) tokens.  fused: output of prepare_fused_params."""
    M, D = x.shape
    assert D == fused["D"]
    Dp, Hb = fused["Dp"], fused["H"]
    out_dtype = out_dtype if out_dtype is not None else x.dtype

    w_dtype = fused["w_down"].dtype
    w_bytes = jnp.dtype(w_dtype).itemsize
    x_bytes = w_bytes                       # x is cast to the weight dtype
    o_bytes = jnp.dtype(out_dtype).itemsize

    # Token tile: no bigger than the (lane-rounded) token count.
    tm = min(tm, max(LANE, _round_up(M, LANE)))
    tm = _round_up(tm, 8)
    Mp = _round_up(M, tm)

    budget = _vmem_budget_bytes()
    weight_bufs = 1 if hasattr(pl, "Buffered") else 2

    # --- resident-weight footprint (single-buffered weights) ---
    resident_est = (2 * tm * Dp * x_bytes           # x tile, double-buffered
                    + 2 * tm * Dp * o_bytes         # out tile, double-buffered
                    + weight_bufs * 2 * Hb * Dp * w_bytes
                    + weight_bufs * (Hb + Dp) * 4   # biases
                    + 2 * tm * Hb * 4)              # h / g f32 temporaries
    use_resident = (not force_chunked) and resident_est <= int(0.7 * budget)

    def chunked_est(th):
        return (2 * tm * Dp * x_bytes
                + 2 * tm * Dp * o_bytes
                + 2 * 2 * th * Dp * w_bytes        # weight chunks, double-buf
                + 2 * (th + Dp) * 4                # bias chunks
                + tm * Dp * 4                      # f32 accumulator scratch
                + 2 * tm * th * 4)                 # h / g temporaries

    if use_resident:
        th, H, est = Hb, Hb, resident_est
    else:
        # Pick the hidden-chunk width: minimize (padding waste + per-step
        # overhead) subject to the VMEM budget.  ViT-H h_base = 5248 = 128*41,
        # so some padding is unavoidable unless mid_dim is chosen nicely.
        max_th = min(2048, Hb if not force_chunked else max(LANE, Hb - LANE))
        best = None
        for cand in range(LANE, max_th + 1, LANE):
            if chunked_est(cand) > budget:
                continue
            Hc = _round_up(Hb, cand)
            cost = Hc + (Hc // cand) * _STEP_OVERHEAD_COLS
            key = (cost, -cand)
            if best is None or key < best[0]:
                best = (key, cand, Hc)
        if best is None:                          # tiny budget fallback
            best = (None, LANE, _round_up(Hb, LANE))
        th, H = best[1], best[2]
        est = chunked_est(th)

    # Pad weights if the fused hidden dim was rounded up to a chunk multiple.
    # (Zero columns/rows -> GELU(0)=0 -> contribute nothing.)  For production
    # this padding should be hoisted into prepare_fused_params.
    w_down, b_down = fused["w_down"], fused["b_down"]
    w_up, b_up = fused["w_up"], fused["b_up"]
    if H > Hb:
        w_down = jnp.pad(w_down, ((0, 0), (0, H - Hb)))
        b_down = jnp.pad(b_down, ((0, 0), (0, H - Hb)))
        w_up = jnp.pad(w_up, ((0, H - Hb), (0, 0)))

    # Pad tokens to a tile multiple, channels to a lane multiple; cast to bf16.
    xp = x
    if (Mp, Dp) != (M, D):
        xp = jnp.pad(x, ((0, Mp - M), (0, Dp - D)))
    xp = xp.astype(w_dtype)

    vmem_limit = int(min(budget, max(2 * est, 32 << 20)))

    if use_resident:
        out = pl.pallas_call(
            functools.partial(_resident_kernel, approx_gelu=approx_gelu),
            out_shape=jax.ShapeDtypeStruct((Mp, Dp), out_dtype),
            grid_spec=pltpu.PrefetchScalarGridSpec(
                num_scalar_prefetch=0,
                grid=(Mp // tm,),
                in_specs=[
                    pl.BlockSpec((tm, Dp), lambda i: (i, 0)),          # x
                    _spec((Dp, H), lambda i: (0, 0), buffer_count=1),  # w_down
                    _spec((1, H), lambda i: (0, 0), buffer_count=1),   # b_down
                    _spec((H, Dp), lambda i: (0, 0), buffer_count=1),  # w_up
                    _spec((1, Dp), lambda i: (0, 0), buffer_count=1),  # b_up
                ],
                out_specs=pl.BlockSpec((tm, Dp), lambda i: (i, 0)),
            ),
            compiler_params=pltpu.CompilerParams(
                dimension_semantics=("parallel",),
                vmem_limit_bytes=vmem_limit),
        )(xp, w_down, b_down, w_up, b_up)
    else:
        n_chunks = H // th
        out = pl.pallas_call(
            functools.partial(_chunked_kernel, approx_gelu=approx_gelu),
            out_shape=jax.ShapeDtypeStruct((Mp, Dp), out_dtype),
            grid_spec=pltpu.PrefetchScalarGridSpec(
                num_scalar_prefetch=0,
                grid=(Mp // tm, n_chunks),
                in_specs=[
                    pl.BlockSpec((tm, Dp), lambda i, c: (i, 0)),  # x (resident over c)
                    pl.BlockSpec((Dp, th), lambda i, c: (0, c)),  # w_down chunk
                    pl.BlockSpec((1, th), lambda i, c: (0, c)),   # b_down chunk
                    pl.BlockSpec((th, Dp), lambda i, c: (c, 0)),  # w_up chunk
                    pl.BlockSpec((1, Dp), lambda i, c: (0, 0)),   # b_up
                ],
                out_specs=pl.BlockSpec((tm, Dp), lambda i, c: (i, 0)),
                scratch_shapes=[pltpu.VMEM((tm, Dp), jnp.float32)],
            ),
            compiler_params=pltpu.CompilerParams(
                dimension_semantics=("parallel", "arbitrary"),
                vmem_limit_bytes=vmem_limit),
        )(xp, w_down, b_down, w_up, b_up)

    return out[:M, :D]


# --------------------------------------------------------------------------
# Pure-JAX reference (original, unfused f32 math — the module's semantics).
# --------------------------------------------------------------------------
def adapt_mlp_reference(x, params, scaling):
    gelu = lambda v: jax.nn.gelu(v, approximate=False)  # torch nn.GELU default
    h = gelu(x @ params["w1"] + params["b1"])
    mlp_out = h @ params["w2"] + params["b2"]
    a = gelu(x @ params["wd"] + params["bd"])
    adapter = a @ params["wu"] + params["bu"]
    return scaling * adapter + mlp_out


if __name__ == "__main__":
    # Small shapes consistent with one SAM ViT block: B=2, 16x16 token grid,
    # embed dim D=64, mlp_dim=4*D=256, adapter middle_dim=32, scaling=4.
    B, Hs, Ws, D = 2, 16, 16, 64
    MLP_DIM = 4 * D
    MID_DIM = 32
    SCALING = 4

    key = jax.random.PRNGKey(0)
    ks = jax.random.split(key, 9)

    x_bhwc = jax.random.normal(ks[0], (B, Hs, Ws, D), dtype=jnp.float32)
    x = x_bhwc.reshape(B * Hs * Ws, D)        # flatten tokens: (M, D)

    params = {
        "w1": jax.random.normal(ks[1], (D, MLP_DIM), jnp.float32) * 0.05,
        "b1": jax.random.normal(ks[2], (MLP_DIM,), jnp.float32) * 0.05,
        "w2": jax.random.normal(ks[3], (MLP_DIM, D), jnp.float32) * 0.05,
        "b2": jax.random.normal(ks[4], (D,), jnp.float32) * 0.05,
        "wd": jax.random.normal(ks[5], (D, MID_DIM), jnp.float32) * 0.05,
        "bd": jax.random.normal(ks[6], (MID_DIM,), jnp.float32) * 0.05,
        "wu": jax.random.normal(ks[7], (MID_DIM, D), jnp.float32) * 0.05,
        "bu": jax.random.normal(ks[8], (D,), jnp.float32) * 0.05,
    }

    fused = prepare_fused_params(params, SCALING, dtype=jnp.bfloat16)
    ref = adapt_mlp_reference(x, params, SCALING)

    # Path 1: weight-resident (auto-selected here and on 128 MiB-VMEM parts),
    # tanh GELU on the EUP.
    out_res = jax.block_until_ready(adapt_mlp(x, fused, tm=512, approx_gelu=True))
    assert out_res.shape == (B * Hs * Ws, D)
    err_res = float(jnp.max(jnp.abs(out_res - ref)))
    assert jnp.allclose(out_res, ref, atol=5e-2, rtol=5e-2), (
        f"resident path mismatch: max abs err {err_res}")

    # Path 2: hidden-chunked accumulator path (what ViT-L/H take on v7x),
    # exact erf GELU.  Forced here to exercise/validate the second kernel.
    out_chk = jax.block_until_ready(
        adapt_mlp(x, fused, tm=256, approx_gelu=False, force_chunked=True))
    err_chk = float(jnp.max(jnp.abs(out_chk - ref)))
    assert jnp.allclose(out_chk, ref, atol=5e-2, rtol=5e-2), (
        f"chunked path mismatch: max abs err {err_chk}")

    # reshape back to the block's (B, H, W, D) layout (glue, outside kernel)
    _ = out_res.reshape(B, Hs, Ws, D)

    # TODO(synk): the surrounding SAM model (attention blocks, prompt encoder,
    # mask decoder) is out of scope; only the AdaptMLP hot path is kernelized.
    print("KERNEL_OK")
</pallas_src>

<mosaic_0001>
module attributes {stable_mosaic.version = 11 : i64} {
  func.func @_resident_kernel(%arg0: i32, %arg1: memref<512x128xbf16, #tpu.memory_space<vmem>>, %arg2: memref<128x384xbf16, #tpu.memory_space<vmem>>, %arg3: memref<1x384xf32, #tpu.memory_space<vmem>>, %arg4: memref<384x128xbf16, #tpu.memory_space<vmem>>, %arg5: memref<1x128xf32, #tpu.memory_space<vmem>>, %arg6: memref<512x128xf32, #tpu.memory_space<vmem>>) attributes {dimension_semantics = [#tpu.dimension_semantics<parallel>], iteration_bounds = array<i64: 1>, scalar_prefetch = 0 : i64, scratch_operands = 0 : i64, tpu.core_type = #tpu.core_type<tc>, window_params = [{transform_indices = @transform_0, window_bounds = array<i64: 512, 128>}, {pipeline_mode = #tpu.pipeline_mode<synchronous>, transform_indices = @transform_1, window_bounds = array<i64: 128, 384>}, {pipeline_mode = #tpu.pipeline_mode<synchronous>, transform_indices = @transform_2, window_bounds = array<i64: 1, 384>}, {pipeline_mode = #tpu.pipeline_mode<synchronous>, transform_indices = @transform_3, window_bounds = array<i64: 384, 128>}, {pipeline_mode = #tpu.pipeline_mode<synchronous>, transform_indices = @transform_4, window_bounds = array<i64: 1, 128>}, {transform_indices = @transform_5, window_bounds = array<i64: 512, 128>}]} {
    %c0 = arith.constant 0 : index
    %c0_0 = arith.constant 0 : index
    %0 = vector.load %arg1[%c0, %c0_0] : memref<512x128xbf16, #tpu.memory_space<vmem>>, vector<512x128xbf16>
    %c0_1 = arith.constant 0 : index
    %c0_2 = arith.constant 0 : index
    %1 = vector.load %arg2[%c0_1, %c0_2] : memref<128x384xbf16, #tpu.memory_space<vmem>>, vector<128x384xbf16>
    %cst = arith.constant dense<0.000000e+00> : vector<512x384xf32>
    %2 = tpu.matmul %0, %1, %cst {dimension_numbers = #tpu.dot_dimension_numbers<[1], [0], [0], [1], [0, 0, 1, 1], [], []>} : vector<512x128xbf16>, vector<128x384xbf16>, vector<512x384xf32> -> vector<512x384xf32>
    %c0_3 = arith.constant 0 : index
    %c0_4 = arith.constant 0 : index
    %3 = vector.load %arg3[%c0_3, %c0_4] : memref<1x384xf32, #tpu.memory_space<vmem>>, vector<1x384xf32>
    %4 = vector.broadcast %3 : vector<1x384xf32> to vector<512x384xf32>
    %5 = arith.addf %2, %4 : vector<512x384xf32>
    %6 = arith.mulf %5, %5 : vector<512x384xf32>
    %7 = arith.mulf %5, %6 : vector<512x384xf32>
    %cst_5 = arith.constant 4.471500e-02 : f32
    %8 = vector.broadcast %cst_5 : f32 to vector<512x384xf32>
    %9 = arith.mulf %8, %7 : vector<512x384xf32>
    %10 = arith.addf %5, %9 : vector<512x384xf32>
    %cst_6 = arith.constant 0.797884583 : f32
    %11 = vector.broadcast %cst_6 : f32 to vector<512x384xf32>
    %12 = arith.mulf %11, %10 : vector<512x384xf32>
    %13 = math.tanh %12 : vector<512x384xf32>
    %cst_7 = arith.constant 1.000000e+00 : f32
    %14 = vector.broadcast %cst_7 : f32 to vector<512x384xf32>
    %15 = arith.addf %14, %13 : vector<512x384xf32>
    %cst_8 = arith.constant 5.000000e-01 : f32
    %16 = vector.broadcast %cst_8 : f32 to vector<512x384xf32>
    %17 = arith.mulf %16, %15 : vector<512x384xf32>
    %18 = arith.mulf %5, %17 : vector<512x384xf32>
    %19 = arith.truncf %18 : vector<512x384xf32> to vector<512x384xbf16>
    %c0_9 = arith.constant 0 : index
    %c0_10 = arith.constant 0 : index
    %20 = vector.load %arg4[%c0_9, %c0_10] : memref<384x128xbf16, #tpu.memory_space<vmem>>, vector<384x128xbf16>
    %cst_11 = arith.constant dense<0.000000e+00> : vector<512x128xf32>
    %21 = tpu.matmul %19, %20, %cst_11 {dimension_numbers = #tpu.dot_dimension_numbers<[1], [0], [0], [1], [0, 0, 1, 1], [], []>} : vector<512x384xbf16>, vector<384x128xbf16>, vector<512x128xf32> -> vector<512x128xf32>
    %c0_12 = arith.constant 0 : index
    %c0_13 = arith.constant 0 : index
    %22 = vector.load %arg5[%c0_12, %c0_13] : memref<1x128xf32, #tpu.memory_space<vmem>>, vector<1x128xf32>
    %23 = vector.broadcast %22 : vector<1x128xf32> to vector<512x128xf32>
    %24 = arith.addf %21, %23 : vector<512x128xf32>
    %c0_14 = arith.constant 0 : index
    %c0_15 = arith.constant 0 : index
    %25 = vector.load %arg6[%c0_14, %c0_15] : memref<512x128xf32, #tpu.memory_space<vmem>>, vector<512x128xf32>
    tpu.vector_store %arg6[%c0_14, %c0_15], %24 {strides = array<i32>} : memref<512x128xf32, #tpu.memory_space<vmem>>, vector<512x128xf32>,
    return
  }
  func.func @transform_0(%arg0: i32) -> (i32, i32) {
    %c0_i32 = arith.constant 0 : i32
    %c0_i32_0 = arith.constant 0 : i32
    return %arg0, %c0_i32 : i32, i32
  }
  func.func @transform_1(%arg0: i32) -> (i32, i32) {
    %c0_i32 = arith.constant 0 : i32
    %c0_i32_0 = arith.constant 0 : i32
    %c0_i32_1 = arith.constant 0 : i32
    return %c0_i32, %c0_i32_0 : i32, i32
  }
  func.func @transform_2(%arg0: i32) -> (i32, i32) {
    %c0_i32 = arith.constant 0 : i32
    %c0_i32_0 = arith.constant 0 : i32
    %c0_i32_1 = arith.constant 0 : i32
    return %c0_i32, %c0_i32_0 : i32, i32
  }
  func.func @transform_3(%arg0: i32) -> (i32, i32) {
    %c0_i32 = arith.constant 0 : i32
    %c0_i32_0 = arith.constant 0 : i32
    %c0_i32_1 = arith.constant 0 : i32
    return %c0_i32, %c0_i32_0 : i32, i32
  }
  func.func @transform_4(%arg0: i32) -> (i32, i32) {
    %c0_i32 = arith.constant 0 : i32
    %c0_i32_0 = arith.constant 0 : i32
    %c0_i32_1 = arith.constant 0 : i32
    return %c0_i32, %c0_i32_0 : i32, i32
  }
  func.func @transform_5(%arg0: i32) -> (i32, i32) {
    %c0_i32 = arith.constant 0 : i32
    %c0_i32_0 = arith.constant 0 : i32
    return %arg0, %c0_i32 : i32, i32
  }
}

</mosaic_0001>

<llo_original>
// kernel: tpu_custom_call.1
$region0: #{tpu_custom_call.1}
  #allocation0 [shape = 'u32[]', space=smem, size = 0x4, offset = 0x4, fixed_abs, tag = 'smem constant byte address 0x4 - core index']
  #allocation1 [shape = 'u32[144,128]{1,0:T(1,128)}', space=vmem, size = 0x12000, scoped, tag = 'internal scratch']
  %s0 = inlined_call_operand.hbm [shape: bf16[512,128], index: 0, kind: input, shape index: {}]
  %s1 = inlined_call_operand.hbm [shape: bf16[128,384], index: 1, kind: input, shape index: {}]
  %s2 = inlined_call_operand.vmem [shape: f32[1,384], index: 2, kind: input, shape index: {}]
  %s3 = inlined_call_operand.hbm [shape: bf16[384,128], index: 3, kind: input, shape index: {}]
  %s4 = inlined_call_operand.vmem [shape: f32[1,128], index: 4, kind: input, shape index: {}]
  %s5 = inlined_call_operand.hbm [shape: f32[512,128], index: 5, kind: output, shape index: {}]
  %s6 = sld [smem:[#allocation0]]
  $region42: #{tpu_custom_call.1} parent=0
    _
  %s8 = ssub.s32 1, %s6
  %s9 = scalar_select 0, %s8, %s6
  $region1: #{tpu_custom_call.1} parent=0
    #allocation2 [shape = 'u8[131072]{0}', space=vmem, size = 0x20000, scoped, tag = 'input window, operand 0, single buffered']
    #allocation3 [shape = 's32[1]{0}', space=sflag, size = 0x4, scoped, tag = 'scoped memory for tpu_custom_call.1']
    #allocation4 [shape = 's32[1]{0}', space=sflag, size = 0x4, scoped, tag = 'scoped memory for tpu_custom_call.1']
    #allocation5 [shape = 'u8[98304]{0}', space=vmem, size = 0x18000, scoped, tag = 'input window, operand 1, single buffered']
    #allocation6 [shape = 's32[1]{0}', space=sflag, size = 0x4, scoped, tag = 'scoped memory for tpu_custom_call.1']
    #allocation7 [shape = 'u8[98304]{0}', space=vmem, size = 0x18000, scoped, tag = 'input window, operand 3, single buffered']
    #allocation8 [shape = 'u8[262144]{0}', space=vmem, size = 0x40000, scoped, tag = 'output window, operand 0, single buffered']
    %10 = vsyncpa [#allocation3], 0
    %11 = vsyncpa [#allocation6], 0
    %12 = vsyncpa [#allocation4], 0
    // Predicated region
    $region2: #{tpu_custom_call.1} parent=1 // pred_check
      _
    $region3: #{tpu_custom_call.1} parent=1 // pred_check_branch
      %14 = sbr.rel (0) target = $region5
    $region4: #{tpu_custom_call.1} parent=1 // pred_region
      %s16 = ssub.s32 4096, 4096
      %17 = vsyncadd [#allocation3], %s16
      %s18 = sshll.u32 [#allocation2], 4
      %s19 = int_to_ptr.vmem [resolvable:$true] %s18
      %24 = dma.hbm_to_vmem [thread:$0]  %s0, 4096, %s19, [#allocation3], 64, 64, 4
    $region5: #{tpu_custom_call.1} parent=1 // pred_fallthru
      _
    // Predicated region
    $region6: #{tpu_custom_call.1} parent=1 // pred_check
      _
    $region7: #{tpu_custom_call.1} parent=1 // pred_check_branch
      %26 = sbr.rel (0) target = $region9
    $region8: #{tpu_custom_call.1} parent=1 // pred_region
      %s28 = ssub.s32 3072, 3072
      %29 = vsyncadd [#allocation6], %s28
      %s30 = sshll.u32 [#allocation5], 4
      %s31 = int_to_ptr.vmem [resolvable:$true] %s30
      %36 = dma.hbm_to_vmem [thread:$0]  %s1, 3072, %s31, [#allocation6], 192, 192, 12
    $region9: #{tpu_custom_call.1} parent=1 // pred_fallthru
      _
    // Predicated region
    $region10: #{tpu_custom_call.1} parent=1 // pred_check
      _
    $region11: #{tpu_custom_call.1} parent=1 // pred_check_branch
      %38 = sbr.rel (0) target = $region13
    $region12: #{tpu_custom_call.1} parent=1 // pred_region
      _
    $region13: #{tpu_custom_call.1} parent=1 // pred_fallthru
      _
    // Predicated region
    $region14: #{tpu_custom_call.1} parent=1 // pred_check
      _
    $region15: #{tpu_custom_call.1} parent=1 // pred_check_branch
      %40 = sbr.rel (0) target = $region17
    $region16: #{tpu_custom_call.1} parent=1 // pred_region
      %s42 = ssub.s32 3072, 3072
      %43 = vsyncadd [#allocation6], %s42
      %s44 = sshll.u32 [#allocation7], 4
      %s45 = int_to_ptr.vmem [resolvable:$true] %s44
      %50 = dma.hbm_to_vmem [thread:$0]  %s3, 3072, %s45, [#allocation6], 64, 64, 4
    $region17: #{tpu_custom_call.1} parent=1 // pred_fallthru
      _
    // Predicated region
    $region18: #{tpu_custom_call.1} parent=1 // pred_check
      _
    $region19: #{tpu_custom_call.1} parent=1 // pred_check_branch
      %52 = sbr.rel (0) target = $region21
    $region20: #{tpu_custom_call.1} parent=1 // pred_region
      _
    $region21: #{tpu_custom_call.1} parent=1 // pred_fallthru
      _
    // Predicated region
    $region22: #{tpu_custom_call.1} parent=1 // pred_check
      _
    $region23: #{tpu_custom_call.1} parent=1 // pred_check_branch
      %54 = sbr.rel (0) target = $region25
    $region24: #{tpu_custom_call.1} parent=1 // pred_region
      %55 = dma.done [#allocation3], 4096
    $region25: #{tpu_custom_call.1} parent=1 // pred_fallthru
      _
    // Predicated region
    $region26: #{tpu_custom_call.1} parent=1 // pred_check
      _
    $region27: #{tpu_custom_call.1} parent=1 // pred_check_branch
      %57 = sbr.rel (0) target = $region29
    $region28: #{tpu_custom_call.1} parent=1 // pred_region
      %58 = dma.done [#allocation6], 3072
    $region29: #{tpu_custom_call.1} parent=1 // pred_fallthru
      _
    // Predicated region
    $region30: #{tpu_custom_call.1} parent=1 // pred_check
      _
    $region31: #{tpu_custom_call.1} parent=1 // pred_check_branch
      %60 = sbr.rel (0) target = $region33
    $region32: #{tpu_custom_call.1} parent=1 // pred_region
      %61 = dma.done [#allocation6], 3072
    $region33: #{tpu_custom_call.1} parent=1 // pred_fallthru
      _
    %v63 = vld [vmem:[#allocation2] sm:$0xf]
    %v64 = vld [vmem:[#allocation2 + $0x4] sm:$0xf]
    %v65 = vld [vmem:[#allocation2 + $0x8] sm:$0xf]
    %v66 = vld [vmem:[#allocation2 + $0xc] sm:$0xf]
    %v67 = vld [vmem:[#allocation2 + $0x10] sm:$0xf]
    %v68 = vld [vmem:[#allocation2 + $0x14] sm:$0xf]
    %v69 = vld [vmem:[#allocation2 + $0x18] sm:$0xf]
    %v70 = vld [vmem:[#allocation2 + $0x1c] sm:$0xf]
    %v71 = vld [vmem:[#allocation2 + $0x20] sm:$0xf]
    %v72 = vld [vmem:[#allocation2 + $0x24] sm:$0xf]
    %v73 = vld [vmem:[#allocation2 + $0x28] sm:$0xf]
    %v74 = vld [vmem:[#allocation2 + $0x2c] sm:$0xf]
    %v75 = vld [vmem:[#allocation2 + $0x30] sm:$0xf]
    %v76 = vld [vmem:[#allocation2 + $0x34] sm:$0xf]
    %v77 = vld [vmem:[#allocation2 + $0x38] sm:$0xf]
    %v78 = vld [vmem:[#allocation2 + $0x3c] sm:$0xf]
    %v79 = vld [vmem:[#allocation2 + $0x40] sm:$0xf]
    %v80 = vld [vmem:[#allocation2 + $0x44] sm:$0xf]
    %v81 = vld [vmem:[#allocation2 + $0x48] sm:$0xf]
    %v82 = vld [vmem:[#allocation2 + $0x4c] sm:$0xf]
    %v83 = vld [vmem:[#allocation2 + $0x50] sm:$0xf]
    %v84 = vld [vmem:[#allocation2 + $0x54] sm:$0xf]
    %v85 = vld [vmem:[#allocation2 + $0x58] sm:$0xf]
    %v86 = vld [vmem:[#allocation2 + $0x5c] sm:$0xf]
    %v87 = vld [vmem:[#allocation2 + $0x60] sm:$0xf]
    %v88 = vld [vmem:[#allocation2 + $0x64] sm:$0xf]
    %v89 = vld [vmem:[#allocation2 + $0x68] sm:$0xf]
    %v90 = vld [vmem:[#allocation2 + $0x6c] sm:$0xf]
    %v91 = vld [vmem:[#allocation2 + $0x70] sm:$0xf]
    %v92 = vld [vmem:[#allocation2 + $0x74] sm:$0xf]
    %v93 = vld [vmem:[#allocation2 + $0x78] sm:$0xf]
    %v94 = vld [vmem:[#allocation2 + $0x7c] sm:$0xf]
    %v95 = vld [vmem:[#allocation2 + $0x80] sm:$0xf]
    %v96 = vld [vmem:[#allocation2 + $0x84] sm:$0xf]
    %v97 = vld [vmem:[#allocation2 + $0x88] sm:$0xf]
    %v98 = vld [vmem:[#allocation2 + $0x8c] sm:$0xf]
    %v99 = vld [vmem:[#allocation2 + $0x90] sm:$0xf]
    %v100 = vld [vmem:[#allocation2 + $0x94] sm:$0xf]
    %v101 = vld [vmem:[#allocation2 + $0x98] sm:$0xf]
    %v102 = vld [vmem:[#allocation2 + $0x9c] sm:$0xf]
    %v103 = vld [vmem:[#allocation2 + $0xa0] sm:$0xf]
    %v104 = vld [vmem:[#allocation2 + $0xa4] sm:$0xf]
    %v105 = vld [vmem:[#allocation2 + $0xa8] sm:$0xf]
    %v106 = vld [vmem:[#allocation2 + $0xac] sm:$0xf]
    %v107 = vld [vmem:[#allocation2 + $0xb0] sm:$0xf]
    %v108 = vld [vmem:[#allocation2 + $0xb4] sm:$0xf]
    %v109 = vld [vmem:[#allocation2 + $0xb8] sm:$0xf]
    %v110 = vld [vmem:[#allocation2 + $0xbc] sm:$0xf]
    %v111 = vld [vmem:[#allocation2 + $0xc0] sm:$0xf]
    %v112 = vld [vmem:[#allocation2 + $0xc4] sm:$0xf]
    %v113 = vld [vmem:[#allocation2 + $0xc8] sm:$0xf]
    %v114 = vld [vmem:[#allocation2 + $0xcc] sm:$0xf]
    %v115 = vld [vmem:[#allocation2 + $0xd0] sm:$0xf]
    %v116 = vld [vmem:[#allocation2 + $0xd4] sm:$0xf]
    %v117 = vld [vmem:[#allocation2 + $0xd8] sm:$0xf]
    %v118 = vld [vmem:[#allocation2 + $0xdc] sm:$0xf]
    %v119 = vld [vmem:[#allocation2 + $0xe0] sm:$0xf]
    %v120 = vld [vmem:[#allocation2 + $0xe4] sm:$0xf]
    %v121 = vld [vmem:[#allocation2 + $0xe8] sm:$0xf]
    %v122 = vld [vmem:[#allocation2 + $0xec] sm:$0xf]
    %v123 = vld [vmem:[#allocation2 + $0xf0] sm:$0xf]
    %v124 = vld [vmem:[#allocation2 + $0xf4] sm:$0xf]
    %v125 = vld [vmem:[#allocation2 + $0xf8] sm:$0xf]
    %v126 = vld [vmem:[#allocation2 + $0xfc] sm:$0xf]
    %v127 = vld [vmem:[#allocation5] sm:$0xff]
    %v128 = vld [vmem:[#allocation5 + $0x8] sm:$0xf]
    %v129 = vld [vmem:[#allocation5 + $0xc] sm:$0xff]
    %v130 = vld [vmem:[#allocation5 + $0x14] sm:$0xf]
    %v131 = vld [vmem:[#allocation5 + $0x18] sm:$0xff]
    %v132 = vld [vmem:[#allocation5 + $0x20] sm:$0xf]
    %v133 = vld [vmem:[#allocation5 + $0x24] sm:$0xff]
    %v134 = vld [vmem:[#allocation5 + $0x2c] sm:$0xf]
    %v135 = vld [vmem:[#allocation5 + $0x30] sm:$0xff]
    %v136 = vld [vmem:[#allocation5 + $0x38] sm:$0xf]
    %v137 = vld [vmem:[#allocation5 + $0x3c] sm:$0xff]
    %v138 = vld [vmem:[#allocation5 + $0x44] sm:$0xf]
    %v139 = vld [vmem:[#allocation5 + $0x48] sm:$0xff]
    %v140 = vld [vmem:[#allocation5 + $0x50] sm:$0xf]
    %v141 = vld [vmem:[#allocation5 + $0x54] sm:$0xff]
    %v142 = vld [vmem:[#allocation5 + $0x5c] sm:$0xf]
    %v143 = vld [vmem:[#allocation5 + $0x60] sm:$0xff]
    %v144 = vld [vmem:[#allocation5 + $0x68] sm:$0xf]
    %v145 = vld [vmem:[#allocation5 + $0x6c] sm:$0xff]
    %v146 = vld [vmem:[#allocation5 + $0x74] sm:$0xf]
    %v147 = vld [vmem:[#allocation5 + $0x78] sm:$0xff]
    %v148 = vld [vmem:[#allocation5 + $0x80] sm:$0xf]
    %v149 = vld [vmem:[#allocation5 + $0x84] sm:$0xff]
    %v150 = vld [vmem:[#allocation5 + $0x8c] sm:$0xf]
    %v151 = vld [vmem:[#allocation5 + $0x90] sm:$0xff]
    %v152 = vld [vmem:[#allocation5 + $0x98] sm:$0xf]
    %v153 = vld [vmem:[#allocation5 + $0x9c] sm:$0xff]
    %v154 = vld [vmem:[#allocation5 + $0xa4] sm:$0xf]
    %v155 = vld [vmem:[#allocation5 + $0xa8] sm:$0xff]
    %v156 = vld [vmem:[#allocation5 + $0xb0] sm:$0xf]
    %v157 = vld [vmem:[#allocation5 + $0xb4] sm:$0xff]
    %v158 = vld [vmem:[#allocation5 + $0xbc] sm:$0xf]
    %v159 = vld [vmem:[%s2] sm:$0x7]
    %v161 = vlaneseq
    %v162 = vshrl.u32 %v161, 7
    %v163 = vsub.s32 0, %v162
    %v164 = vrot.slane %v159, %v163
    %v165 = vlaneseq
    %v166 = vshrl.u32 %v165, 7
    %v167 = vsub.s32 1, %v166
    %v168 = vrot.slane %v159, %v167
    %v169 = vlaneseq
    %v170 = vshrl.u32 %v169, 7
    %v171 = vsub.s32 2, %v170
    %v172 = vrot.slane %v159, %v171
    %v240 = vunpack.c.l.b16 %v63
    %v241 = vunpack.c.l.b16 %v64
    %v242 = vunpack.c.l.b16 %v65
    %v243 = vunpack.c.l.b16 %v66
    %v244 = vunpack.c.l.b16 %v67
    %v245 = vunpack.c.l.b16 %v68
    %v246 = vunpack.c.l.b16 %v69
    %v247 = vunpack.c.l.b16 %v70
    %v248 = vunpack.c.l.b16 %v71
    %v249 = vunpack.c.l.b16 %v72
    %v250 = vunpack.c.l.b16 %v73
    %v251 = vunpack.c.l.b16 %v74
    %v252 = vunpack.c.l.b16 %v75
    %v253 = vunpack.c.l.b16 %v76
    %v254 = vunpack.c.l.b16 %v77
    %v255 = vunpack.c.l.b16 %v78
    %v256 = vunpack.c.l.b16 %v79
    %v257 = vunpack.c.l.b16 %v80
    %v258 = vunpack.c.l.b16 %v81
    %v259 = vunpack.c.l.b16 %v82
    %v260 = vunpack.c.l.b16 %v83
    %v261 = vunpack.c.l.b16 %v84
    %v262 = vunpack.c.l.b16 %v85
    %v263 = vunpack.c.l.b16 %v86
    %v264 = vunpack.c.l.b16 %v87
    %v265 = vunpack.c.l.b16 %v88
    %v266 = vunpack.c.l.b16 %v89
    %v267 = vunpack.c.l.b16 %v90
    %v268 = vunpack.c.l.b16 %v91
    %v269 = vunpack.c.l.b16 %v92
    %v270 = vunpack.c.l.b16 %v93
    %v271 = vunpack.c.l.b16 %v94
    %v272 = vunpack.c.l.b16 %v95
    %v273 = vunpack.c.l.b16 %v96
    %v274 = vunpack.c.l.b16 %v97
    %v275 = vunpack.c.l.b16 %v98
    %v276 = vunpack.c.l.b16 %v99
    %v277 = vunpack.c.l.b16 %v100
    %v278 = vunpack.c.l.b16 %v101
    %v279 = vunpack.c.l.b16 %v102
    %v280 = vunpack.c.l.b16 %v103
    %v281 = vunpack.c.l.b16 %v104
    %v282 = vunpack.c.l.b16 %v105
    %v283 = vunpack.c.l.b16 %v106
    %v284 = vunpack.c.l.b16 %v107
    %v285 = vunpack.c.l.b16 %v108
    %v286 = vunpack.c.l.b16 %v109
    %v287 = vunpack.c.l.b16 %v110
    %v288 = vunpack.c.l.b16 %v111
    %v289 = vunpack.c.l.b16 %v112
    %v290 = vunpack.c.l.b16 %v113
    %v291 = vunpack.c.l.b16 %v114
    %v292 = vunpack.c.l.b16 %v115
    %v293 = vunpack.c.l.b16 %v116
    %v294 = vunpack.c.l.b16 %v117
    %v295 = vunpack.c.l.b16 %v118
    %v296 = vunpack.c.l.b16 %v119
    %v297 = vunpack.c.l.b16 %v120
    %v298 = vunpack.c.l.b16 %v121
    %v299 = vunpack.c.l.b16 %v122
    %v300 = vunpack.c.l.b16 %v123
    %v301 = vunpack.c.l.b16 %v124
    %v302 = vunpack.c.l.b16 %v125
    %v303 = vunpack.c.l.b16 %v126
    %v304 = vpack.c.b16 %v241, %v240
    %v305 = vpack.c.b16 %v243, %v242
    %v306 = vpack.c.b16 %v245, %v244
    %v307 = vpack.c.b16 %v247, %v246
    %v308 = vpack.c.b16 %v249, %v248
    %v309 = vpack.c.b16 %v251, %v250
    %v310 = vpack.c.b16 %v253, %v252
    %v311 = vpack.c.b16 %v255, %v254
    %v312 = vpack.c.b16 %v257, %v256
    %v313 = vpack.c.b16 %v259, %v258
    %v314 = vpack.c.b16 %v261, %v260
    %v315 = vpack.c.b16 %v263, %v262
    %v316 = vpack.c.b16 %v265, %v264
    %v317 = vpack.c.b16 %v267, %v266
    %v318 = vpack.c.b16 %v269, %v268
    %v319 = vpack.c.b16 %v271, %v270
    %v320 = vpack.c.b16 %v273, %v272
    %v321 = vpack.c.b16 %v275, %v274
    %v322 = vpack.c.b16 %v277, %v276
    %v323 = vpack.c.b16 %v279, %v278
    %v324 = vpack.c.b16 %v281, %v280
    %v325 = vpack.c.b16 %v283, %v282
    %v326 = vpack.c.b16 %v285, %v284
    %v327 = vpack.c.b16 %v287, %v286
    %v328 = vpack.c.b16 %v289, %v288
    %v329 = vpack.c.b16 %v291, %v290
    %v330 = vpack.c.b16 %v293, %v292
    %v331 = vpack.c.b16 %v295, %v294
    %v332 = vpack.c.b16 %v297, %v296
    %v333 = vpack.c.b16 %v299, %v298
    %v334 = vpack.c.b16 %v301, %v300
    %v335 = vpack.c.b16 %v303, %v302
    %v400 = vunpack.c.l.b16 %v127
    %v401 = vunpack.c.h.b16 %v127
    %v402 = vunpack.c.l.b16 %v128
    %v403 = vunpack.c.l.b16 %v129
    %v404 = vunpack.c.h.b16 %v129
    %v405 = vunpack.c.l.b16 %v130
    %v406 = vunpack.c.l.b16 %v131
    %v407 = vunpack.c.h.b16 %v131
    %v408 = vunpack.c.l.b16 %v132
    %v409 = vunpack.c.l.b16 %v133
    %v410 = vunpack.c.h.b16 %v133
    %v411 = vunpack.c.l.b16 %v134
    %v412 = vunpack.c.l.b16 %v135
    %v413 = vunpack.c.h.b16 %v135
    %v414 = vunpack.c.l.b16 %v136
    %v415 = vunpack.c.l.b16 %v137
    %v416 = vunpack.c.h.b16 %v137
    %v417 = vunpack.c.l.b16 %v138
    %v418 = vunpack.c.l.b16 %v139
    %v419 = vunpack.c.h.b16 %v139
    %v420 = vunpack.c.l.b16 %v140
    %v421 = vunpack.c.l.b16 %v141
    %v422 = vunpack.c.h.b16 %v141
    %v423 = vunpack.c.l.b16 %v142
    %v424 = vunpack.c.l.b16 %v143
    %v425 = vunpack.c.h.b16 %v143
    %v426 = vunpack.c.l.b16 %v144
    %v427 = vunpack.c.l.b16 %v145
    %v428 = vunpack.c.h.b16 %v145
    %v429 = vunpack.c.l.b16 %v146
    %v430 = vunpack.c.l.b16 %v147
    %v431 = vunpack.c.h.b16 %v147
    %v432 = vunpack.c.l.b16 %v148
    %v433 = vunpack.c.l.b16 %v149
    %v434 = vunpack.c.h.b16 %v149
    %v435 = vunpack.c.l.b16 %v150
    %v436 = vunpack.c.l.b16 %v151
    %v437 = vunpack.c.h.b16 %v151
    %v438 = vunpack.c.l.b16 %v152
    %v439 = vunpack.c.l.b16 %v153
    %v440 = vunpack.c.h.b16 %v153
    %v441 = vunpack.c.l.b16 %v154
    %v442 = vunpack.c.l.b16 %v155
    %v443 = vunpack.c.h.b16 %v155
    %v444 = vunpack.c.l.b16 %v156
    %v445 = vunpack.c.l.b16 %v157
    %v446 = vunpack.c.h.b16 %v157
    %v447 = vunpack.c.l.b16 %v158
    %v448 = vpack.c.b16 %v403, %v400
    %v449 = vpack.c.b16 %v404, %v401
    %v450 = vpack.c.b16 %v405, %v402
    %v451 = vpack.c.b16 %v409, %v406
    %v452 = vpack.c.b16 %v410, %v407
    %v453 = vpack.c.b16 %v411, %v408
    %v454 = vpack.c.b16 %v415, %v412
    %v455 = vpack.c.b16 %v416, %v413
    %v456 = vpack.c.b16 %v417, %v414
    %v457 = vpack.c.b16 %v421, %v418
    %v458 = vpack.c.b16 %v422, %v419
    %v459 = vpack.c.b16 %v423, %v420
    %v460 = vpack.c.b16 %v427, %v424
    %v461 = vpack.c.b16 %v428, %v425
    %v462 = vpack.c.b16 %v429, %v426
    %v463 = vpack.c.b16 %v433, %v430
    %v464 = vpack.c.b16 %v434, %v431
    %v465 = vpack.c.b16 %v435, %v432
    %v466 = vpack.c.b16 %v439, %v436
    %v467 = vpack.c.b16 %v440, %v437
    %v468 = vpack.c.b16 %v441, %v438
    %v469 = vpack.c.b16 %v445, %v442
    %v470 = vpack.c.b16 %v446, %v443
    %v471 = vpack.c.b16 %v447, %v444
    %496 = vmatprep.subr.bf16.mxu0 %v449
    %497 = vmatpush1.bf16.msra.mxu0 %v448
    %498 = vmatprep.subr.bf16.mxu0 %v452
    %499 = vmatpush1.bf16.msra.mxu0 %v451
    %500 = vmatprep.subr.bf16.mxu0 %v455
    %501 = vmatpush1.bf16.msra.mxu0 %v454
    %502 = vmatprep.subr.bf16.mxu0 %v458
    %503 = vmatpush1.bf16.msra.mxu0 %v457
    %504 = vmatprep.subr.bf16.mxu0 %v461
    %505 = vmatpush1.bf16.msra.mxu0 %v460
    %506 = vmatprep.subr.bf16.mxu0 %v464
    %507 = vmatpush1.bf16.msra.mxu0 %v463
    %508 = vmatprep.subr.bf16.mxu0 %v467
    %509 = vmatpush1.bf16.msra.mxu0 %v466
    %510 = vmatprep.subr.bf16.mxu0 %v470
    %511 = vmatpush1.bf16.msra.mxu0 %v469
    %512 = vmatprep.subr.bf16.mxu0 0
    %513 = vmatpush1.bf16.msra.mxu0 0
    %514 = vmatprep.subr.bf16.mxu0 0
    %515 = vmatpush1.bf16.msra.mxu0 0
    %516 = vmatprep.subr.bf16.mxu0 0
    %517 = vmatpush1.bf16.msra.mxu0 0
    %518 = vmatprep.subr.bf16.mxu0 0
    %519 = vmatpush1.bf16.msra.mxu0 0
    %520 = vmatprep.subr.bf16.mxu0 0
    %521 = vmatpush1.bf16.msra.mxu0 0
    %522 = vmatprep.subr.bf16.mxu0 0
    %523 = vmatpush1.bf16.msra.mxu0 0
    %524 = vmatprep.subr.bf16.mxu0 0
    %525 = vmatpush1.bf16.msra.mxu0 0
    %526 = vmatprep.subr.bf16.mxu0 0
    %527 = vmatpush1.bf16.msra.mxu0 0
    %528 = vmatprep.mubr.bf16.mxu0 0
    %529 = vmatmul.mubr.bf16.gmra.mrb[0].mxu0 %v304
    %v530 = vpop.f32.mrb[0].mxu0
    %v531 = vadd.f32 %v164, %v530
    %v532 = vpop.f32.mrb[0].mxu0
    %v533 = vadd.f32 %v168, %v532
    %v534 = vpop.f32.mrb[0].mxu0
    %v535 = vadd.f32 %v164, %v534
    %v536 = vpop.f32.mrb[0].mxu0
    %v537 = vadd.f32 %v168, %v536
    %538 = vmatprep.mubr.bf16.mxu0 0
    %539 = vmatmul.mubr.bf16.gmra.mrb[0].mxu0 %v305
    %v540 = vpop.f32.mrb[0].mxu0
    %v541 = vadd.f32 %v164, %v540
    %v542 = vpop.f32.mrb[0].mxu0
    %v543 = vadd.f32 %v168, %v542
    %v544 = vpop.f32.mrb[0].mxu0
    %v545 = vadd.f32 %v164, %v544
    %v546 = vpop.f32.mrb[0].mxu0
    %v547 = vadd.f32 %v168, %v546
    %548 = vmatprep.mubr.bf16.mxu0 0
    %549 = vmatmul.mubr.bf16.gmra.mrb[0].mxu0 %v306
    %v550 = vpop.f32.mrb[0].mxu0
    %v551 = vadd.f32 %v164, %v550
    %v552 = vpop.f32.mrb[0].mxu0
    %v553 = vadd.f32 %v168, %v552
    %v554 = vpop.f32.mrb[0].mxu0
    %v555 = vadd.f32 %v164, %v554
    %v556 = vpop.f32.mrb[0].mxu0
    %v557 = vadd.f32 %v168, %v556
    %558 = vmatprep.mubr.bf16.mxu0 0
    %559 = vmatmul.mubr.bf16.gmra.mrb[0].mxu0 %v307
    %v560 = vpop.f32.mrb[0].mxu0
    %v561 = vadd.f32 %v164, %v560
    %v562 = vpop.f32.mrb[0].mxu0
    %v563 = vadd.f32 %v168, %v562
    %v564 = vpop.f32.mrb[0].mxu0
    %v565 = vadd.f32 %v164, %v564
    %v566 = vpop.f32.mrb[0].mxu0
    %v567 = vadd.f32 %v168, %v566
    %568 = vmatprep.mubr.bf16.mxu0 0
    %569 = vmatmul.mubr.bf16.gmra.mrb[0].mxu0 %v308
    %v570 = vpop.f32.mrb[0].mxu0
    %v571 = vadd.f32 %v164, %v570
    %v572 = vpop.f32.mrb[0].mxu0
    %v573 = vadd.f32 %v168, %v572
    %v574 = vpop.f32.mrb[0].mxu0
    %v575 = vadd.f32 %v164, %v574
    %v576 = vpop.f32.mrb[0].mxu0
    %v577 = vadd.f32 %v168, %v576
    %578 = vmatprep.mubr.bf16.mxu0 0
    %579 = vmatmul.mubr.bf16.gmra.mrb[0].mxu0 %v309
    %v580 = vpop.f32.mrb[0].mxu0
    %v581 = vadd.f32 %v164, %v580
    %v582 = vpop.f32.mrb[0].mxu0
    %v583 = vadd.f32 %v168, %v582
    %v584 = vpop.f32.mrb[0].mxu0
    %v585 = vadd.f32 %v164, %v584
    %v586 = vpop.f32.mrb[0].mxu0
    %v587 = vadd.f32 %v168, %v586
    %588 = vmatprep.mubr.bf16.mxu0 0
    %589 = vmatmul.mubr.bf16.gmra.mrb[0].mxu0 %v310
    %v590 = vpop.f32.mrb[0].mxu0
    %v591 = vadd.f32 %v164, %v590
    %v592 = vpop.f32.mrb[0].mxu0
    %v593 = vadd.f32 %v168, %v592
    %v594 = vpop.f32.mrb[0].mxu0
    %v595 = vadd.f32 %v164, %v594
    %v596 = vpop.f32.mrb[0].mxu0
    %v597 = vadd.f32 %v168, %v596
    %598 = vmatprep.mubr.bf16.mxu0 0
    %599 = vmatmul.mubr.bf16.gmra.mrb[0].mxu0 %v311
    %v600 = vpop.f32.mrb[0].mxu0
    %v601 = vadd.f32 %v164, %v600
    %v602 = vpop.f32.mrb[0].mxu0
    %v603 = vadd.f32 %v168, %v602
    %v604 = vpop.f32.mrb[0].mxu0
    %v605 = vadd.f32 %v164, %v604
    %v606 = vpop.f32.mrb[0].mxu0
    %v607 = vadd.f32 %v168, %v606
    %608 = vmatprep.mubr.bf16.mxu0 0
    %609 = vmatmul.mubr.bf16.gmra.mrb[0].mxu0 %v312
    %v610 = vpop.f32.mrb[0].mxu0
    %v611 = vadd.f32 %v164, %v610
    %v612 = vpop.f32.mrb[0].mxu0
    %v613 = vadd.f32 %v168, %v612
    %v614 = vpop.f32.mrb[0].mxu0
    %v615 = vadd.f32 %v164, %v614
    %v616 = vpop.f32.mrb[0].mxu0
    %v617 = vadd.f32 %v168, %v616
    %618 = vmatprep.mubr.bf16.mxu0 0
    %619 = vmatmul.mubr.bf16.gmra.mrb[0].mxu0 %v313
    %v620 = vpop.f32.mrb[0].mxu0
    %v621 = vadd.f32 %v164, %v620
    %v622 = vpop.f32.mrb[0].mxu0
    %v623 = vadd.f32 %v168, %v622
    %v624 = vpop.f32.mrb[0].mxu0
    %v625 = vadd.f32 %v164, %v624
    %v626 = vpop.f32.mrb[0].mxu0
    %v627 = vadd.f32 %v168, %v626
    %628 = vmatprep.mubr.bf16.mxu0 0
    %629 = vmatmul.mubr.bf16.gmra.mrb[0].mxu0 %v314
    %v630 = vpop.f32.mrb[0].mxu0
    %v631 = vadd.f32 %v164, %v630
    %v632 = vpop.f32.mrb[0].mxu0
    %v633 = vadd.f32 %v168, %v632
    %v634 = vpop.f32.mrb[0].mxu0
    %v635 = vadd.f32 %v164, %v634
    %v636 = vpop.f32.mrb[0].mxu0
    %v637 = vadd.f32 %v168, %v636
    %638 = vmatprep.mubr.bf16.mxu0 0
    %639 = vmatmul.mubr.bf16.gmra.mrb[0].mxu0 %v315
    %v640 = vpop.f32.mrb[0].mxu0
    %v641 = vadd.f32 %v164, %v640
    %v642 = vpop.f32.mrb[0].mxu0
    %v643 = vadd.f32 %v168, %v642
    %v644 = vpop.f32.mrb[0].mxu0
    %v645 = vadd.f32 %v164, %v644
    %v646 = vpop.f32.mrb[0].mxu0
    %v647 = vadd.f32 %v168, %v646
    %648 = vmatprep.mubr.bf16.mxu0 0
    %649 = vmatmul.mubr.bf16.gmra.mrb[0].mxu0 %v316
    %v650 = vpop.f32.mrb[0].mxu0
    %v651 = vadd.f32 %v164, %v650
    %v652 = vpop.f32.mrb[0].mxu0
    %v653 = vadd.f32 %v168, %v652
    %v654 = vpop.f32.mrb[0].mxu0
    %v655 = vadd.f32 %v164, %v654
    %v656 = vpop.f32.mrb[0].mxu0
    %v657 = vadd.f32 %v168, %v656
    %658 = vmatprep.mubr.bf16.mxu0 0
    %659 = vmatmul.mubr.bf16.gmra.mrb[0].mxu0 %v317
    %v660 = vpop.f32.mrb[0].mxu0
    %v661 = vadd.f32 %v164, %v660
    %v662 = vpop.f32.mrb[0].mxu0
    %v663 = vadd.f32 %v168, %v662
    %v664 = vpop.f32.mrb[0].mxu0
    %v665 = vadd.f32 %v164, %v664
    %v666 = vpop.f32.mrb[0].mxu0
    %v667 = vadd.f32 %v168, %v666
    %668 = vmatprep.mubr.bf16.mxu0 0
    %669 = vmatmul.mubr.bf16.gmra.mrb[0].mxu0 %v318
    %v670 = vpop.f32.mrb[0].mxu0
    %v671 = vadd.f32 %v164, %v670
    %v672 = vpop.f32.mrb[0].mxu0
    %v673 = vadd.f32 %v168, %v672
    %v674 = vpop.f32.mrb[0].mxu0
    %v675 = vadd.f32 %v164, %v674
    %v676 = vpop.f32.mrb[0].mxu0
    %v677 = vadd.f32 %v168, %v676
    %678 = vmatprep.mubr.bf16.mxu0 0
    %679 = vmatmul.mubr.bf16.gmra.mrb[0].mxu0 %v319
    %v680 = vpop.f32.mrb[0].mxu0
    %v681 = vadd.f32 %v164, %v680
    %v682 = vpop.f32.mrb[0].mxu0
    %v683 = vadd.f32 %v168, %v682
    %v684 = vpop.f32.mrb[0].mxu0
    %v685 = vadd.f32 %v164, %v684
    %v686 = vpop.f32.mrb[0].mxu0
    %v687 = vadd.f32 %v168, %v686
    %688 = vmatprep.mubr.bf16.mxu0 0
    %689 = vmatmul.mubr.bf16.gmra.mrb[0].mxu0 %v320
    %v690 = vpop.f32.mrb[0].mxu0
    %v691 = vadd.f32 %v164, %v690
    %v692 = vpop.f32.mrb[0].mxu0
    %v693 = vadd.f32 %v168, %v692
    %v694 = vpop.f32.mrb[0].mxu0
    %v695 = vadd.f32 %v164, %v694
    %v696 = vpop.f32.mrb[0].mxu0
    %v697 = vadd.f32 %v168, %v696
    %698 = vmatprep.mubr.bf16.mxu0 0
    %699 = vmatmul.mubr.bf16.gmra.mrb[0].mxu0 %v321
    %v700 = vpop.f32.mrb[0].mxu0
    %v701 = vadd.f32 %v164, %v700
    %v702 = vpop.f32.mrb[0].mxu0
    %v703 = vadd.f32 %v168, %v702
    %v704 = vpop.f32.mrb[0].mxu0
    %v705 = vadd.f32 %v164, %v704
    %v706 = vpop.f32.mrb[0].mxu0
    %v707 = vadd.f32 %v168, %v706
    %708 = vmatprep.mubr.bf16.mxu0 0
    %709 = vmatmul.mubr.bf16.gmra.mrb[0].mxu0 %v322
    %v710 = vpop.f32.mrb[0].mxu0
    %v711 = vadd.f32 %v164, %v710
    %v712 = vpop.f32.mrb[0].mxu0
    %v713 = vadd.f32 %v168, %v712
    %v714 = vpop.f32.mrb[0].mxu0
    %v715 = vadd.f32 %v164, %v714
    %v716 = vpop.f32.mrb[0].mxu0
    %v717 = vadd.f32 %v168, %v716
    %718 = vmatprep.mubr.bf16.mxu0 0
    %719 = vmatmul.mubr.bf16.gmra.mrb[0].mxu0 %v323
    %v720 = vpop.f32.mrb[0].mxu0
    %v721 = vadd.f32 %v164, %v720
    %v722 = vpop.f32.mrb[0].mxu0
    %v723 = vadd.f32 %v168, %v722
    %v724 = vpop.f32.mrb[0].mxu0
    %v725 = vadd.f32 %v164, %v724
    %v726 = vpop.f32.mrb[0].mxu0
    %v727 = vadd.f32 %v168, %v726
    %728 = vmatprep.mubr.bf16.mxu0 0
    %729 = vmatmul.mubr.bf16.gmra.mrb[0].mxu0 %v324
    %v730 = vpop.f32.mrb[0].mxu0
    %v731 = vadd.f32 %v164, %v730
    %v732 = vpop.f32.mrb[0].mxu0
    %v733 = vadd.f32 %v168, %v732
    %v734 = vpop.f32.mrb[0].mxu0
    %v735 = vadd.f32 %v164, %v734
    %v736 = vpop.f32.mrb[0].mxu0
    %v737 = vadd.f32 %v168, %v736
    %738 = vmatprep.mubr.bf16.mxu0 0
    %739 = vmatmul.mubr.bf16.gmra.mrb[0].mxu0 %v325
    %v740 = vpop.f32.mrb[0].mxu0
    %v741 = vadd.f32 %v164, %v740
    %v742 = vpop.f32.mrb[0].mxu0
    %v743 = vadd.f32 %v168, %v742
    %v744 = vpop.f32.mrb[0].mxu0
    %v745 = vadd.f32 %v164, %v744
    %v746 = vpop.f32.mrb[0].mxu0
    %v747 = vadd.f32 %v168, %v746
    %748 = vmatprep.mubr.bf16.mxu0 0
    %749 = vmatmul.mubr.bf16.gmra.mrb[0].mxu0 %v326
    %v750 = vpop.f32.mrb[0].mxu0
    %v751 = vadd.f32 %v164, %v750
    %v752 = vpop.f32.mrb[0].mxu0
    %v753 = vadd.f32 %v168, %v752
    %v754 = vpop.f32.mrb[0].mxu0
    %v755 = vadd.f32 %v164, %v754
    %v756 = vpop.f32.mrb[0].mxu0
    %v757 = vadd.f32 %v168, %v756
    %758 = vmatprep.mubr.bf16.mxu0 0
    %759 = vmatmul.mubr.bf16.gmra.mrb[0].mxu0 %v327
    %v760 = vpop.f32.mrb[0].mxu0
    %v761 = vadd.f32 %v164, %v760
    %v762 = vpop.f32.mrb[0].mxu0
    %v763 = vadd.f32 %v168, %v762
    %v764 = vpop.f32.mrb[0].mxu0
    %v765 = vadd.f32 %v164, %v764
    %v766 = vpop.f32.mrb[0].mxu0
    %v767 = vadd.f32 %v168, %v766
    %768 = vmatprep.mubr.bf16.mxu0 0
    %769 = vmatmul.mubr.bf16.gmra.mrb[0].mxu0 %v328
    %v770 = vpop.f32.mrb[0].mxu0
    %v771 = vadd.f32 %v164, %v770
    %v772 = vpop.f32.mrb[0].mxu0
    %v773 = vadd.f32 %v168, %v772
    %v774 = vpop.f32.mrb[0].mxu0
    %v775 = vadd.f32 %v164, %v774
    %v776 = vpop.f32.mrb[0].mxu0
    %v777 = vadd.f32 %v168, %v776
    %778 = vmatprep.mubr.bf16.mxu0 0
    %779 = vmatmul.mubr.bf16.gmra.mrb[0].mxu0 %v329
    %v780 = vpop.f32.mrb[0].mxu0
    %v781 = vadd.f32 %v164, %v780
    %v782 = vpop.f32.mrb[0].mxu0
    %v783 = vadd.f32 %v168, %v782
    %v784 = vpop.f32.mrb[0].mxu0
    %v785 = vadd.f32 %v164, %v784
    %v786 = vpop.f32.mrb[0].mxu0
    %v787 = vadd.f32 %v168, %v786
    %788 = vmatprep.mubr.bf16.mxu0 0
    %789 = vmatmul.mubr.bf16.gmra.mrb[0].mxu0 %v330
    %v790 = vpop.f32.mrb[0].mxu0
    %v791 = vadd.f32 %v164, %v790
    %v792 = vpop.f32.mrb[0].mxu0
    %v793 = vadd.f32 %v168, %v792
    %v794 = vpop.f32.mrb[0].mxu0
    %v795 = vadd.f32 %v164, %v794
    %v796 = vpop.f32.mrb[0].mxu0
    %v797 = vadd.f32 %v168, %v796
    %798 = vmatprep.mubr.bf16.mxu0 0
    %799 = vmatmul.mubr.bf16.gmra.mrb[0].mxu0 %v331
    %v800 = vpop.f32.mrb[0].mxu0
    %v801 = vadd.f32 %v164, %v800
    %v802 = vpop.f32.mrb[0].mxu0
    %v803 = vadd.f32 %v168, %v802
    %v804 = vpop.f32.mrb[0].mxu0
    %v805 = vadd.f32 %v164, %v804
    %v806 = vpop.f32.mrb[0].mxu0
    %v807 = vadd.f32 %v168, %v806
    %808 = vmatprep.mubr.bf16.mxu0 0
    %809 = vmatmul.mubr.bf16.gmra.mrb[0].mxu0 %v332
    %v810 = vpop.f32.mrb[0].mxu0
    %v811 = vadd.f32 %v164, %v810
    %v812 = vpop.f32.mrb[0].mxu0
    %v813 = vadd.f32 %v168, %v812
    %v814 = vpop.f32.mrb[0].mxu0
    %v815 = vadd.f32 %v164, %v814
    %v816 = vpop.f32.mrb[0].mxu0
    %v817 = vadd.f32 %v168, %v816
    %818 = vmatprep.mubr.bf16.mxu0 0
    %819 = vmatmul.mubr.bf16.gmra.mrb[0].mxu0 %v333
    %v820 = vpop.f32.mrb[0].mxu0
    %v821 = vadd.f32 %v164, %v820
    %v822 = vpop.f32.mrb[0].mxu0
    %v823 = vadd.f32 %v168, %v822
    %v824 = vpop.f32.mrb[0].mxu0
    %v825 = vadd.f32 %v164, %v824
    %v826 = vpop.f32.mrb[0].mxu0
    %v827 = vadd.f32 %v168, %v826
    %828 = vmatprep.mubr.bf16.mxu0 0
    %829 = vmatmul.mubr.bf16.gmra.mrb[0].mxu0 %v334
    %v830 = vpop.f32.mrb[0].mxu0
    %v831 = vadd.f32 %v164, %v830
    %v832 = vpop.f32.mrb[0].mxu0
    %v833 = vadd.f32 %v168, %v832
    %v834 = vpop.f32.mrb[0].mxu0
    %v835 = vadd.f32 %v164, %v834
    %v836 = vpop.f32.mrb[0].mxu0
    %v837 = vadd.f32 %v168, %v836
    %838 = vmatprep.mubr.bf16.mxu0 0
    %839 = vmatmul.mubr.bf16.gmra.mrb[0].mxu0 %v335
    %v840 = vpop.f32.mrb[0].mxu0
    %v841 = vadd.f32 %v164, %v840
    %v842 = vpop.f32.mrb[0].mxu0
    %v843 = vadd.f32 %v168, %v842
    %v844 = vpop.f32.mrb[0].mxu0
    %v845 = vadd.f32 %v164, %v844
    %v846 = vpop.f32.mrb[0].mxu0
    %v847 = vadd.f32 %v168, %v846
    %848 = vdwg.mxu0
    %849 = vmatprep.subr.bf16.mxu0 0
    %850 = vmatpush1.bf16.msra.mxu0 %v450
    %851 = vmatprep.subr.bf16.mxu0 0
    %852 = vmatpush1.bf16.msra.mxu0 %v453
    %853 = vmatprep.subr.bf16.mxu0 0
    %854 = vmatpush1.bf16.msra.mxu0 %v456
    %855 = vmatprep.subr.bf16.mxu0 0
    %856 = vmatpush1.bf16.msra.mxu0 %v459
    %857 = vmatprep.subr.bf16.mxu0 0
    %858 = vmatpush1.bf16.msra.mxu0 %v462
    %859 = vmatprep.subr.bf16.mxu0 0
    %860 = vmatpush1.bf16.msra.mxu0 %v465
    %861 = vmatprep.subr.bf16.mxu0 0
    %862 = vmatpush1.bf16.msra.mxu0 %v468
    %863 = vmatprep.subr.bf16.mxu0 0
    %864 = vmatpush1.bf16.msra.mxu0 %v471
    %865 = vmatprep.subr.bf16.mxu0 0
    %866 = vmatpush1.bf16.msra.mxu0 0
    %867 = vmatprep.subr.bf16.mxu0 0
    %868 = vmatpush1.bf16.msra.mxu0 0
    %869 = vmatprep.subr.bf16.mxu0 0
    %870 = vmatpush1.bf16.msra.mxu0 0
    %871 = vmatprep.subr.bf16.mxu0 0
    %872 = vmatpush1.bf16.msra.mxu0 0
    %873 = vmatprep.subr.bf16.mxu0 0
    %874 = vmatpush1.bf16.msra.mxu0 0
    %875 = vmatprep.subr.bf16.mxu0 0
    %876 = vmatpush1.bf16.msra.mxu0 0
    %877 = vmatprep.subr.bf16.mxu0 0
    %878 = vmatpush1.bf16.msra.mxu0 0
    %879 = vmatprep.subr.bf16.mxu0 0
    %880 = vmatpush1.bf16.msra.mxu0 0
    %881 = vmatprep.mubr.bf16.mxu0 0
    %882 = vmatmul.mubr.bf16.gmra.mrb[0].mxu0 %v304
    %v883 = vpop.f32.mrb[0].mxu0
    %v884 = vadd.f32 %v172, %v883
    %v885 = vpop.f32.mrb[0].mxu0
    %v886 = vpop.f32.mrb[0].mxu0
    %v887 = vadd.f32 %v172, %v886
    %v888 = vpop.f32.mrb[0].mxu0
    %889 = vmatprep.mubr.bf16.mxu0 0
    %890 = vmatmul.mubr.bf16.gmra.mrb[0].mxu0 %v305
    %v891 = vpop.f32.mrb[0].mxu0
    %v892 = vadd.f32 %v172, %v891
    %v893 = vpop.f32.mrb[0].mxu0
    %v894 = vpop.f32.mrb[0].mxu0
    %v895 = vadd.f32 %v172, %v894
    %v896 = vpop.f32.mrb[0].mxu0
    %897 = vmatprep.mubr.bf16.mxu0 0
    %898 = vmatmul.mubr.bf16.gmra.mrb[0].mxu0 %v306
    %v899 = vpop.f32.mrb[0].mxu0
    %v900 = vadd.f32 %v172, %v899
    %v901 = vpop.f32.mrb[0].mxu0
    %v902 = vpop.f32.mrb[0].mxu0
    %v903 = vadd.f32 %v172, %v902
    %v904 = vpop.f32.mrb[0].mxu0
    %905 = vmatprep.mubr.bf16.mxu0 0
    %906 = vmatmul.mubr.bf16.gmra.mrb[0].mxu0 %v307
    %v907 = vpop.f32.mrb[0].mxu0
    %v908 = vadd.f32 %v172, %v907
    %v909 = vpop.f32.mrb[0].mxu0
    %v910 = vpop.f32.mrb[0].mxu0
    %v911 = vadd.f32 %v172, %v910
    %v912 = vpop.f32.mrb[0].mxu0
    %913 = vmatprep.mubr.bf16.mxu0 0
    %914 = vmatmul.mubr.bf16.gmra.mrb[0].mxu0 %v308
    %v915 = vpop.f32.mrb[0].mxu0
    %v916 = vadd.f32 %v172, %v915
    %v917 = vpop.f32.mrb[0].mxu0
    %v918 = vpop.f32.mrb[0].mxu0
    %v919 = vadd.f32 %v172, %v918
    %v920 = vpop.f32.mrb[0].mxu0
    %921 = vmatprep.mubr.bf16.mxu0 0
    %922 = vmatmul.mubr.bf16.gmra.mrb[0].mxu0 %v309
    %v923 = vpop.f32.mrb[0].mxu0
    %v924 = vadd.f32 %v172, %v923
    %v925 = vpop.f32.mrb[0].mxu0
    %v926 = vpop.f32.mrb[0].mxu0
    %v927 = vadd.f32 %v172, %v926
    %v928 = vpop.f32.mrb[0].mxu0
    %929 = vmatprep.mubr.bf16.mxu0 0
    %930 = vmatmul.mubr.bf16.gmra.mrb[0].mxu0 %v310
    %v931 = vpop.f32.mrb[0].mxu0
    %v932 = vadd.f32 %v172, %v931
    %v933 = vpop.f32.mrb[0].mxu0
    %v934 = vpop.f32.mrb[0].mxu0
    %v935 = vadd.f32 %v172, %v934
    %v936 = vpop.f32.mrb[0].mxu0
    %937 = vmatprep.mubr.bf16.mxu0 0
    %938 = vmatmul.mubr.bf16.gmra.mrb[0].mxu0 %v311
    %v939 = vpop.f32.mrb[0].mxu0
    %v940 = vadd.f32 %v172, %v939
    %v941 = vpop.f32.mrb[0].mxu0
    %v942 = vpop.f32.mrb[0].mxu0
    %v943 = vadd.f32 %v172, %v942
    %v944 = vpop.f32.mrb[0].mxu0
    %945 = vmatprep.mubr.bf16.mxu0 0
    %946 = vmatmul.mubr.bf16.gmra.mrb[0].mxu0 %v312
    %v947 = vpop.f32.mrb[0].mxu0
    %v948 = vadd.f32 %v172, %v947
    %v949 = vpop.f32.mrb[0].mxu0
    %v950 = vpop.f32.mrb[0].mxu0
    %v951 = vadd.f32 %v172, %v950
    %v952 = vpop.f32.mrb[0].mxu0
    %953 = vmatprep.mubr.bf16.mxu0 0
    %954 = vmatmul.mubr.bf16.gmra.mrb[0].mxu0 %v313
    %v955 = vpop.f32.mrb[0].mxu0
    %v956 = vadd.f32 %v172, %v955
    %v957 = vpop.f32.mrb[0].mxu0
    %v958 = vpop.f32.mrb[0].mxu0
    %v959 = vadd.f32 %v172, %v958
    %v960 = vpop.f32.mrb[0].mxu0
    %961 = vmatprep.mubr.bf16.mxu0 0
    %962 = vmatmul.mubr.bf16.gmra.mrb[0].mxu0 %v314
    %v963 = vpop.f32.mrb[0].mxu0
    %v964 = vadd.f32 %v172, %v963
    %v965 = vpop.f32.mrb[0].mxu0
    %v966 = vpop.f32.mrb[0].mxu0
    %v967 = vadd.f32 %v172, %v966
    %v968 = vpop.f32.mrb[0].mxu0
    %969 = vmatprep.mubr.bf16.mxu0 0
    %970 = vmatmul.mubr.bf16.gmra.mrb[0].mxu0 %v315
    %v971 = vpop.f32.mrb[0].mxu0
    %v972 = vadd.f32 %v172, %v971
    %v973 = vpop.f32.mrb[0].mxu0
    %v974 = vpop.f32.mrb[0].mxu0
    %v975 = vadd.f32 %v172, %v974
    %v976 = vpop.f32.mrb[0].mxu0
    %977 = vmatprep.mubr.bf16.mxu0 0
    %978 = vmatmul.mubr.bf16.gmra.mrb[0].mxu0 %v316
    %v979 = vpop.f32.mrb[0].mxu0
    %v980 = vadd.f32 %v172, %v979
    %v981 = vpop.f32.mrb[0].mxu0
    %v982 = vpop.f32.mrb[0].mxu0
    %v983 = vadd.f32 %v172, %v982
    %v984 = vpop.f32.mrb[0].mxu0
    %985 = vmatprep.mubr.bf16.mxu0 0
    %986 = vmatmul.mubr.bf16.gmra.mrb[0].mxu0 %v317
    %v987 = vpop.f32.mrb[0].mxu0
    %v988 = vadd.f32 %v172, %v987
    %v989 = vpop.f32.mrb[0].mxu0
    %v990 = vpop.f32.mrb[0].mxu0
    %v991 = vadd.f32 %v172, %v990
    %v992 = vpop.f32.mrb[0].mxu0
    %993 = vmatprep.mubr.bf16.mxu0 0
    %994 = vmatmul.mubr.bf16.gmra.mrb[0].mxu0 %v318
    %v995 = vpop.f32.mrb[0].mxu0
    %v996 = vadd.f32 %v172, %v995
    %v997 = vpop.f32.mrb[0].mxu0
    %v998 = vpop.f32.mrb[0].mxu0
    %v999 = vadd.f32 %v172, %v998
    %v1000 = vpop.f32.mrb[0].mxu0
    %1001 = vmatprep.mubr.bf16.mxu0 0
    %1002 = vmatmul.mubr.bf16.gmra.mrb[0].mxu0 %v319
    %v1003 = vpop.f32.mrb[0].mxu0
    %v1004 = vadd.f32 %v172, %v1003
    %v1005 = vpop.f32.mrb[0].mxu0
    %v1006 = vpop.f32.mrb[0].mxu0
    %v1007 = vadd.f32 %v172, %v1006
    %v1008 = vpop.f32.mrb[0].mxu0
    %1009 = vmatprep.mubr.bf16.mxu0 0
    %1010 = vmatmul.mubr.bf16.gmra.mrb[0].mxu0 %v320
    %v1011 = vpop.f32.mrb[0].mxu0
    %v1012 = vadd.f32 %v172, %v1011
    %v1013 = vpop.f32.mrb[0].mxu0
    %v1014 = vpop.f32.mrb[0].mxu0
    %v1015 = vadd.f32 %v172, %v1014
    %v1016 = vpop.f32.mrb[0].mxu0
    %1017 = vmatprep.mubr.bf16.mxu0 0
    %1018 = vmatmul.mubr.bf16.gmra.mrb[0].mxu0 %v321
    %v1019 = vpop.f32.mrb[0].mxu0
    %v1020 = vadd.f32 %v172, %v1019
    %v1021 = vpop.f32.mrb[0].mxu0
    %v1022 = vpop.f32.mrb[0].mxu0
    %v1023 = vadd.f32 %v172, %v1022
    %v1024 = vpop.f32.mrb[0].mxu0
    %1025 = vmatprep.mubr.bf16.mxu0 0
    %1026 = vmatmul.mubr.bf16.gmra.mrb[0].mxu0 %v322
    %v1027 = vpop.f32.mrb[0].mxu0
    %v1028 = vadd.f32 %v172, %v1027
    %v1029 = vpop.f32.mrb[0].mxu0
    %v1030 = vpop.f32.mrb[0].mxu0
    %v1031 = vadd.f32 %v172, %v1030
    %v1032 = vpop.f32.mrb[0].mxu0
    %1033 = vmatprep.mubr.bf16.mxu0 0
    %1034 = vmatmul.mubr.bf16.gmra.mrb[0].mxu0 %v323
    %v1035 = vpop.f32.mrb[0].mxu0
    %v1036 = vadd.f32 %v172, %v1035
    %v1037 = vpop.f32.mrb[0].mxu0
    %v1038 = vpop.f32.mrb[0].mxu0
    %v1039 = vadd.f32 %v172, %v1038
    %v1040 = vpop.f32.mrb[0].mxu0
    %1041 = vmatprep.mubr.bf16.mxu0 0
    %1042 = vmatmul.mubr.bf16.gmra.mrb[0].mxu0 %v324
    %v1043 = vpop.f32.mrb[0].mxu0
    %v1044 = vadd.f32 %v172, %v1043
    %v1045 = vpop.f32.mrb[0].mxu0
    %v1046 = vpop.f32.mrb[0].mxu0
    %v1047 = vadd.f32 %v172, %v1046
    %v1048 = vpop.f32.mrb[0].mxu0
    %1049 = vmatprep.mubr.bf16.mxu0 0
    %1050 = vmatmul.mubr.bf16.gmra.mrb[0].mxu0 %v325
    %v1051 = vpop.f32.mrb[0].mxu0
    %v1052 = vadd.f32 %v172, %v1051
    %v1053 = vpop.f32.mrb[0].mxu0
    %v1054 = vpop.f32.mrb[0].mxu0
    %v1055 = vadd.f32 %v172, %v1054
    %v1056 = vpop.f32.mrb[0].mxu0
    %1057 = vmatprep.mubr.bf16.mxu0 0
    %1058 = vmatmul.mubr.bf16.gmra.mrb[0].mxu0 %v326
    %v1059 = vpop.f32.mrb[0].mxu0
    %v1060 = vadd.f32 %v172, %v1059
    %v1061 = vpop.f32.mrb[0].mxu0
    %v1062 = vpop.f32.mrb[0].mxu0
    %v1063 = vadd.f32 %v172, %v1062
    %v1064 = vpop.f32.mrb[0].mxu0
    %1065 = vmatprep.mubr.bf16.mxu0 0
    %1066 = vmatmul.mubr.bf16.gmra.mrb[0].mxu0 %v327
    %v1067 = vpop.f32.mrb[0].mxu0
    %v1068 = vadd.f32 %v172, %v1067
    %v1069 = vpop.f32.mrb[0].mxu0
    %v1070 = vpop.f32.mrb[0].mxu0
    %v1071 = vadd.f32 %v172, %v1070
    %v1072 = vpop.f32.mrb[0].mxu0
    %1073 = vmatprep.mubr.bf16.mxu0 0
    %1074 = vmatmul.mubr.bf16.gmra.mrb[0].mxu0 %v328
    %v1075 = vpop.f32.mrb[0].mxu0
    %v1076 = vadd.f32 %v172, %v1075
    %v1077 = vpop.f32.mrb[0].mxu0
    %v1078 = vpop.f32.mrb[0].mxu0
    %v1079 = vadd.f32 %v172, %v1078
    %v1080 = vpop.f32.mrb[0].mxu0
    %1081 = vmatprep.mubr.bf16.mxu0 0
    %1082 = vmatmul.mubr.bf16.gmra.mrb[0].mxu0 %v329
    %v1083 = vpop.f32.mrb[0].mxu0
    %v1084 = vadd.f32 %v172, %v1083
    %v1085 = vpop.f32.mrb[0].mxu0
    %v1086 = vpop.f32.mrb[0].mxu0
    %v1087 = vadd.f32 %v172, %v1086
    %v1088 = vpop.f32.mrb[0].mxu0
    %1089 = vmatprep.mubr.bf16.mxu0 0
    %1090 = vmatmul.mubr.bf16.gmra.mrb[0].mxu0 %v330
    %v1091 = vpop.f32.mrb[0].mxu0
    %v1092 = vadd.f32 %v172, %v1091
    %v1093 = vpop.f32.mrb[0].mxu0
    %v1094 = vpop.f32.mrb[0].mxu0
    %v1095 = vadd.f32 %v172, %v1094
    %v1096 = vpop.f32.mrb[0].mxu0
    %1097 = vmatprep.mubr.bf16.mxu0 0
    %1098 = vmatmul.mubr.bf16.gmra.mrb[0].mxu0 %v331
    %v1099 = vpop.f32.mrb[0].mxu0
    %v1100 = vadd.f32 %v172, %v1099
    %v1101 = vpop.f32.mrb[0].mxu0
    %v1102 = vpop.f32.mrb[0].mxu0
    %v1103 = vadd.f32 %v172, %v1102
    %v1104 = vpop.f32.mrb[0].mxu0
    %1105 = vmatprep.mubr.bf16.mxu0 0
    %1106 = vmatmul.mubr.bf16.gmra.mrb[0].mxu0 %v332
    %v1107 = vpop.f32.mrb[0].mxu0
    %v1108 = vadd.f32 %v172, %v1107
    %v1109 = vpop.f32.mrb[0].mxu0
    %v1110 = vpop.f32.mrb[0].mxu0
    %v1111 = vadd.f32 %v172, %v1110
    %v1112 = vpop.f32.mrb[0].mxu0
    %1113 = vmatprep.mubr.bf16.mxu0 0
    %1114 = vmatmul.mubr.bf16.gmra.mrb[0].mxu0 %v333
    %v1115 = vpop.f32.mrb[0].mxu0
    %v1116 = vadd.f32 %v172, %v1115
    %v1117 = vpop.f32.mrb[0].mxu0
    %v1118 = vpop.f32.mrb[0].mxu0
    %v1119 = vadd.f32 %v172, %v1118
    %v1120 = vpop.f32.mrb[0].mxu0
    %1121 = vmatprep.mubr.bf16.mxu0 0
    %1122 = vmatmul.mubr.bf16.gmra.mrb[0].mxu0 %v334
    %v1123 = vpop.f32.mrb[0].mxu0
    %v1124 = vadd.f32 %v172, %v1123
    %v1125 = vpop.f32.mrb[0].mxu0
    %v1126 = vpop.f32.mrb[0].mxu0
    %v1127 = vadd.f32 %v172, %v1126
    %v1128 = vpop.f32.mrb[0].mxu0
    %1129 = vmatprep.mubr.bf16.mxu0 0
    %1130 = vmatmul.mubr.bf16.gmra.mrb[0].mxu0 %v335
    %v1131 = vpop.f32.mrb[0].mxu0
    %v1132 = vadd.f32 %v172, %v1131
    %v1133 = vpop.f32.mrb[0].mxu0
    %v1134 = vpop.f32.mrb[0].mxu0
    %v1135 = vadd.f32 %v172, %v1134
    %v1136 = vpop.f32.mrb[0].mxu0
    %1137 = vdwg.mxu0
    %v1138 = vmul.f32 %v531, %v531
    %v1139 = vmul.f32 %v533, %v533
    %v1140 = vmul.f32 %v884, %v884
    %v1141 = vmul.f32 %v535, %v535
    %v1142 = vmul.f32 %v537, %v537
    %v1143 = vmul.f32 %v887, %v887
    %v1144 = vmul.f32 %v541, %v541
    %v1145 = vmul.f32 %v543, %v543
    %v1146 = vmul.f32 %v892, %v892
    %v1147 = vmul.f32 %v545, %v545
    %v1148 = vmul.f32 %v547, %v547
    %v1149 = vmul.f32 %v895, %v895
    %v1150 = vmul.f32 %v551, %v551
    %v1151 = vmul.f32 %v553, %v553
    %v1152 = vmul.f32 %v900, %v900
    %v1153 = vmul.f32 %v555, %v555
    %v1154 = vmul.f32 %v557, %v557
    %v1155 = vmul.f32 %v903, %v903
    %v1156 = vmul.f32 %v561, %v561
    %v1157 = vmul.f32 %v563, %v563
    %v1158 = vmul.f32 %v908, %v908
    %v1159 = vmul.f32 %v565, %v565
    %v1160 = vmul.f32 %v567, %v567
    %v1161 = vmul.f32 %v911, %v911
    %v1162 = vmul.f32 %v571, %v571
    %v1163 = vmul.f32 %v573, %v573
    %v1164 = vmul.f32 %v916, %v916
    %v1165 = vmul.f32 %v575, %v575
    %v1166 = vmul.f32 %v577, %v577
    %v1167 = vmul.f32 %v919, %v919
    %v1168 = vmul.f32 %v581, %v581
    %v1169 = vmul.f32 %v583, %v583
    %v1170 = vmul.f32 %v924, %v924
    %v1171 = vmul.f32 %v585, %v585
    %v1172 = vmul.f32 %v587, %v587
    %v1173 = vmul.f32 %v927, %v927
    %v1174 = vmul.f32 %v591, %v591
    %v1175 = vmul.f32 %v593, %v593
    %v1176 = vmul.f32 %v932, %v932
    %v1177 = vmul.f32 %v595, %v595
    %v1178 = vmul.f32 %v597, %v597
    %v1179 = vmul.f32 %v935, %v935
    %v1180 = vmul.f32 %v601, %v601
    %v1181 = vmul.f32 %v603, %v603
    %v1182 = vmul.f32 %v940, %v940
    %v1183 = vmul.f32 %v605, %v605
    %v1184 = vmul.f32 %v607, %v607
    %v1185 = vmul.f32 %v943, %v943
    %v1186 = vmul.f32 %v611, %v611
    %v1187 = vmul.f32 %v613, %v613
    %v1188 = vmul.f32 %v948, %v948
    %v1189 = vmul.f32 %v615, %v615
    %v1190 = vmul.f32 %v617, %v617
    %v1191 = vmul.f32 %v951, %v951
    %v1192 = vmul.f32 %v621, %v621
    %v1193 = vmul.f32 %v623, %v623
    %v1194 = vmul.f32 %v956, %v956
    %v1195 = vmul.f32 %v625, %v625
    %v1196 = vmul.f32 %v627, %v627
    %v1197 = vmul.f32 %v959, %v959
    %v1198 = vmul.f32 %v631, %v631
    %v1199 = vmul.f32 %v633, %v633
    %v1200 = vmul.f32 %v964, %v964
    %v1201 = vmul.f32 %v635, %v635
    %v1202 = vmul.f32 %v637, %v637
    %v1203 = vmul.f32 %v967, %v967
    %v1204 = vmul.f32 %v641, %v641
    %v1205 = vmul.f32 %v643, %v643
    %v1206 = vmul.f32 %v972, %v972
    %v1207 = vmul.f32 %v645, %v645
    %v1208 = vmul.f32 %v647, %v647
    %v1209 = vmul.f32 %v975, %v975
    %v1210 = vmul.f32 %v651, %v651
    %v1211 = vmul.f32 %v653, %v653
    %v1212 = vmul.f32 %v980, %v980
    %v1213 = vmul.f32 %v655, %v655
    %v1214 = vmul.f32 %v657, %v657
    %v1215 = vmul.f32 %v983, %v983
    %v1216 = vmul.f32 %v661, %v661
    %v1217 = vmul.f32 %v663, %v663
    %v1218 = vmul.f32 %v988, %v988
    %v1219 = vmul.f32 %v665, %v665
    %v1220 = vmul.f32 %v667, %v667
    %v1221 = vmul.f32 %v991, %v991
    %v1222 = vmul.f32 %v671, %v671
    %v1223 = vmul.f32 %v673, %v673
    %v1224 = vmul.f32 %v996, %v996
    %v1225 = vmul.f32 %v675, %v675
    %v1226 = vmul.f32 %v677, %v677
    %v1227 = vmul.f32 %v999, %v999
    %v1228 = vmul.f32 %v681, %v681
    %v1229 = vmul.f32 %v683, %v683
    %v1230 = vmul.f32 %v1004, %v1004
    %v1231 = vmul.f32 %v685, %v685
    %v1232 = vmul.f32 %v687, %v687
    %v1233 = vmul.f32 %v1007, %v1007
    %v1234 = vmul.f32 %v691, %v691
    %v1235 = vmul.f32 %v693, %v693
    %v1236 = vmul.f32 %v1012, %v1012
    %v1237 = vmul.f32 %v695, %v695
    %v1238 = vmul.f32 %v697, %v697
    %v1239 = vmul.f32 %v1015, %v1015
    %v1240 = vmul.f32 %v701, %v701
    %v1241 = vmul.f32 %v703, %v703
    %v1242 = vmul.f32 %v1020, %v1020
    %v1243 = vmul.f32 %v705, %v705
    %v1244 = vmul.f32 %v707, %v707
    %v1245 = vmul.f32 %v1023, %v1023
    %v1246 = vmul.f32 %v711, %v711
    %v1247 = vmul.f32 %v713, %v713
    %v1248 = vmul.f32 %v1028, %v1028
    %v1249 = vmul.f32 %v715, %v715
    %v1250 = vmul.f32 %v717, %v717
    %v1251 = vmul.f32 %v1031, %v1031
    %v1252 = vmul.f32 %v721, %v721
    %v1253 = vmul.f32 %v723, %v723
    %v1254 = vmul.f32 %v1036, %v1036
    %v1255 = vmul.f32 %v725, %v725
    %v1256 = vmul.f32 %v727, %v727
    %v1257 = vmul.f32 %v1039, %v1039
    %v1258 = vmul.f32 %v731, %v731
    %v1259 = vmul.f32 %v733, %v733
    %v1260 = vmul.f32 %v1044, %v1044
    %v1261 = vmul.f32 %v735, %v735
    %v1262 = vmul.f32 %v737, %v737
    %v1263 = vmul.f32 %v1047, %v1047
    %v1264 = vmul.f32 %v741, %v741
    %v1265 = vmul.f32 %v743, %v743
    %v1266 = vmul.f32 %v1052, %v1052
    %v1267 = vmul.f32 %v745, %v745
    %v1268 = vmul.f32 %v747, %v747
    %v1269 = vmul.f32 %v1055, %v1055
    %v1270 = vmul.f32 %v751, %v751
    %v1271 = vmul.f32 %v753, %v753
    %v1272 = vmul.f32 %v1060, %v1060
    %v1273 = vmul.f32 %v755, %v755
    %v1274 = vmul.f32 %v757, %v757
    %v1275 = vmul.f32 %v1063, %v1063
    %v1276 = vmul.f32 %v761, %v761
    %v1277 = vmul.f32 %v763, %v763
    %v1278 = vmul.f32 %v1068, %v1068
    %v1279 = vmul.f32 %v765, %v765
    %v1280 = vmul.f32 %v767, %v767
    %v1281 = vmul.f32 %v1071, %v1071
    %v1282 = vmul.f32 %v771, %v771
    %v1283 = vmul.f32 %v773, %v773
    %v1284 = vmul.f32 %v1076, %v1076
    %v1285 = vmul.f32 %v775, %v775
    %v1286 = vmul.f32 %v777, %v777
    %v1287 = vmul.f32 %v1079, %v1079
    %v1288 = vmul.f32 %v781, %v781
    %v1289 = vmul.f32 %v783, %v783
    %v1290 = vmul.f32 %v1084, %v1084
    %v1291 = vmul.f32 %v785, %v785
    %v1292 = vmul.f32 %v787, %v787
    %v1293 = vmul.f32 %v1087, %v1087
    %v1294 = vmul.f32 %v791, %v791
    %v1295 = vmul.f32 %v793, %v793
    %v1296 = vmul.f32 %v1092, %v1092
    %v1297 = vmul.f32 %v795, %v795
    %v1298 = vmul.f32 %v797, %v797
    %v1299 = vmul.f32 %v1095, %v1095
    %v1300 = vmul.f32 %v801, %v801
    %v1301 = vmul.f32 %v803, %v803
    %v1302 = vmul.f32 %v1100, %v1100
    %v1303 = vmul.f32 %v805, %v805
    %v1304 = vmul.f32 %v807, %v807
    %v1305 = vmul.f32 %v1103, %v1103
    %v1306 = vmul.f32 %v811, %v811
    %v1307 = vmul.f32 %v813, %v813
    %v1308 = vmul.f32 %v1108, %v1108
    %v1309 = vmul.f32 %v815, %v815
    %v1310 = vmul.f32 %v817, %v817
    %v1311 = vmul.f32 %v1111, %v1111
    %v1312 = vmul.f32 %v821, %v821
    %v1313 = vmul.f32 %v823, %v823
    %v1314 = vmul.f32 %v1116, %v1116
    %v1315 = vmul.f32 %v825, %v825
    %v1316 = vmul.f32 %v827, %v827
    %v1317 = vmul.f32 %v1119, %v1119
    %v1318 = vmul.f32 %v831, %v831
    %v1319 = vmul.f32 %v833, %v833
    %v1320 = vmul.f32 %v1124, %v1124
    %v1321 = vmul.f32 %v835, %v835
    %v1322 = vmul.f32 %v837, %v837
    %v1323 = vmul.f32 %v1127, %v1127
    %v1324 = vmul.f32 %v841, %v841
    %v1325 = vmul.f32 %v843, %v843
    %v1326 = vmul.f32 %v1132, %v1132
    %v1327 = vmul.f32 %v845, %v845
    %v1328 = vmul.f32 %v847, %v847
    %v1329 = vmul.f32 %v1135, %v1135
    %v1330 = vmul.f32 %v531, %v1138
    %v1331 = vmul.f32 %v533, %v1139
    %v1332 = vmul.f32 %v884, %v1140
    %v1333 = vmul.f32 %v535, %v1141
    %v1334 = vmul.f32 %v537, %v1142
    %v1335 = vmul.f32 %v887, %v1143
    %v1336 = vmul.f32 %v541, %v1144
    %v1337 = vmul.f32 %v543, %v1145
    %v1338 = vmul.f32 %v892, %v1146
    %v1339 = vmul.f32 %v545, %v1147
    %v1340 = vmul.f32 %v547, %v1148
    %v1341 = vmul.f32 %v895, %v1149
    %v1342 = vmul.f32 %v551, %v1150
    %v1343 = vmul.f32 %v553, %v1151
    %v1344 = vmul.f32 %v900, %v1152
    %v1345 = vmul.f32 %v555, %v1153
    %v1346 = vmul.f32 %v557, %v1154
    %v1347 = vmul.f32 %v903, %v1155
    %v1348 = vmul.f32 %v561, %v1156
    %v1349 = vmul.f32 %v563, %v1157
    %v1350 = vmul.f32 %v908, %v1158
    %v1351 = vmul.f32 %v565, %v1159
    %v1352 = vmul.f32 %v567, %v1160
    %v1353 = vmul.f32 %v911, %v1161
    %v1354 = vmul.f32 %v571, %v1162
    %v1355 = vmul.f32 %v573, %v1163
    %v1356 = vmul.f32 %v916, %v1164
    %v1357 = vmul.f32 %v575, %v1165
    %v1358 = vmul.f32 %v577, %v1166
    %v1359 = vmul.f32 %v919, %v1167
    %v1360 = vmul.f32 %v581, %v1168
    %v1361 = vmul.f32 %v583, %v1169
    %v1362 = vmul.f32 %v924, %v1170
    %v1363 = vmul.f32 %v585, %v1171
    %v1364 = vmul.f32 %v587, %v1172
    %v1365 = vmul.f32 %v927, %v1173
    %v1366 = vmul.f32 %v591, %v1174
    %v1367 = vmul.f32 %v593, %v1175
    %v1368 = vmul.f32 %v932, %v1176
    %v1369 = vmul.f32 %v595, %v1177
    %v1370 = vmul.f32 %v597, %v1178
    %v1371 = vmul.f32 %v935, %v1179
    %v1372 = vmul.f32 %v601, %v1180
    %v1373 = vmul.f32 %v603, %v1181
    %v1374 = vmul.f32 %v940, %v1182
    %v1375 = vmul.f32 %v605, %v1183
    %v1376 = vmul.f32 %v607, %v1184
    %v1377 = vmul.f32 %v943, %v1185
    %v1378 = vmul.f32 %v611, %v1186
    %v1379 = vmul.f32 %v613, %v1187
    %v1380 = vmul.f32 %v948, %v1188
    %v1381 = vmul.f32 %v615, %v1189
    %v1382 = vmul.f32 %v617, %v1190
    %v1383 = vmul.f32 %v951, %v1191
    %v1384 = vmul.f32 %v621, %v1192
    %v1385 = vmul.f32 %v623, %v1193
    %v1386 = vmul.f32 %v956, %v1194
    %v1387 = vmul.f32 %v625, %v1195
    %v1388 = vmul.f32 %v627, %v1196
    %v1389 = vmul.f32 %v959, %v1197
    %v1390 = vmul.f32 %v631, %v1198
    %v1391 = vmul.f32 %v633, %v1199
    %v1392 = vmul.f32 %v964, %v1200
    %v1393 = vmul.f32 %v635, %v1201
    %v1394 = vmul.f32 %v637, %v1202
    %v1395 = vmul.f32 %v967, %v1203
    %v1396 = vmul.f32 %v641, %v1204
    %v1397 = vmul.f32 %v643, %v1205
    %v1398 = vmul.f32 %v972, %v1206
    %v1399 = vmul.f32 %v645, %v1207
    %v1400 = vmul.f32 %v647, %v1208
    %v1401 = vmul.f32 %v975, %v1209
    %v1402 = vmul.f32 %v651, %v1210
    %v1403 = vmul.f32 %v653, %v1211
    %v1404 = vmul.f32 %v980, %v1212
    %v1405 = vmul.f32 %v655, %v1213
    %v1406 = vmul.f32 %v657, %v1214
    %v1407 = vmul.f32 %v983, %v1215
    %v1408 = vmul.f32 %v661, %v1216
    %v1409 = vmul.f32 %v663, %v1217
    %v1410 = vmul.f32 %v988, %v1218
    %v1411 = vmul.f32 %v665, %v1219
    %v1412 = vmul.f32 %v667, %v1220
    %v1413 = vmul.f32 %v991, %v1221
    %v1414 = vmul.f32 %v671, %v1222
    %v1415 = vmul.f32 %v673, %v1223
    %v1416 = vmul.f32 %v996, %v1224
    %v1417 = vmul.f32 %v675, %v1225
    %v1418 = vmul.f32 %v677, %v1226
    %v1419 = vmul.f32 %v999, %v1227
    %v1420 = vmul.f32 %v681, %v1228
    %v1421 = vmul.f32 %v683, %v1229
    %v1422 = vmul.f32 %v1004, %v1230
    %v1423 = vmul.f32 %v685, %v1231
    %v1424 = vmul.f32 %v687, %v1232
    %v1425 = vmul.f32 %v1007, %v1233
    %v1426 = vmul.f32 %v691, %v1234
    %v1427 = vmul.f32 %v693, %v1235
    %v1428 = vmul.f32 %v1012, %v1236
    %v1429 = vmul.f32 %v695, %v1237
    %v1430 = vmul.f32 %v697, %v1238
    %v1431 = vmul.f32 %v1015, %v1239
    %v1432 = vmul.f32 %v701, %v1240
    %v1433 = vmul.f32 %v703, %v1241
    %v1434 = vmul.f32 %v1020, %v1242
    %v1435 = vmul.f32 %v705, %v1243
    %v1436 = vmul.f32 %v707, %v1244
    %v1437 = vmul.f32 %v1023, %v1245
    %v1438 = vmul.f32 %v711, %v1246
    %v1439 = vmul.f32 %v713, %v1247
    %v1440 = vmul.f32 %v1028, %v1248
    %v1441 = vmul.f32 %v715, %v1249
    %v1442 = vmul.f32 %v717, %v1250
    %v1443 = vmul.f32 %v1031, %v1251
    %v1444 = vmul.f32 %v721, %v1252
    %v1445 = vmul.f32 %v723, %v1253
    %v1446 = vmul.f32 %v1036, %v1254
    %v1447 = vmul.f32 %v725, %v1255
    %v1448 = vmul.f32 %v727, %v1256
    %v1449 = vmul.f32 %v1039, %v1257
    %v1450 = vmul.f32 %v731, %v1258
    %v1451 = vmul.f32 %v733, %v1259
    %v1452 = vmul.f32 %v1044, %v1260
    %v1453 = vmul.f32 %v735, %v1261
    %v1454 = vmul.f32 %v737, %v1262
    %v1455 = vmul.f32 %v1047, %v1263
    %v1456 = vmul.f32 %v741, %v1264
    %v1457 = vmul.f32 %v743, %v1265
    %v1458 = vmul.f32 %v1052, %v1266
    %v1459 = vmul.f32 %v745, %v1267
    %v1460 = vmul.f32 %v747, %v1268
    %v1461 = vmul.f32 %v1055, %v1269
    %v1462 = vmul.f32 %v751, %v1270
    %v1463 = vmul.f32 %v753, %v1271
    %v1464 = vmul.f32 %v1060, %v1272
    %v1465 = vmul.f32 %v755, %v1273
    %v1466 = vmul.f32 %v757, %v1274
    %v1467 = vmul.f32 %v1063, %v1275
    %v1468 = vmul.f32 %v761, %v1276
    %v1469 = vmul.f32 %v763, %v1277
    %v1470 = vmul.f32 %v1068, %v1278
    %v1471 = vmul.f32 %v765, %v1279
    %v1472 = vmul.f32 %v767, %v1280
    %v1473 = vmul.f32 %v1071, %v1281
    %v1474 = vmul.f32 %v771, %v1282
    %v1475 = vmul.f32 %v773, %v1283
    %v1476 = vmul.f32 %v1076, %v1284
    %v1477 = vmul.f32 %v775, %v1285
    %v1478 = vmul.f32 %v777, %v1286
    %v1479 = vmul.f32 %v1079, %v1287
    %v1480 = vmul.f32 %v781, %v1288
    %v1481 = vmul.f32 %v783, %v1289
    %v1482 = vmul.f32 %v1084, %v1290
    %v1483 = vmul.f32 %v785, %v1291
    %v1484 = vmul.f32 %v787, %v1292
    %v1485 = vmul.f32 %v1087, %v1293
    %v1486 = vmul.f32 %v791, %v1294
    %v1487 = vmul.f32 %v793, %v1295
    %v1488 = vmul.f32 %v1092, %v1296
    %v1489 = vmul.f32 %v795, %v1297
    %v1490 = vmul.f32 %v797, %v1298
    %v1491 = vmul.f32 %v1095, %v1299
    %v1492 = vmul.f32 %v801, %v1300
    %v1493 = vmul.f32 %v803, %v1301
    %v1494 = vmul.f32 %v1100, %v1302
    %v1495 = vmul.f32 %v805, %v1303
    %v1496 = vmul.f32 %v807, %v1304
    %v1497 = vmul.f32 %v1103, %v1305
    %v1498 = vmul.f32 %v811, %v1306
    %v1499 = vmul.f32 %v813, %v1307
    %v1500 = vmul.f32 %v1108, %v1308
    %v1501 = vmul.f32 %v815, %v1309
    %v1502 = vmul.f32 %v817, %v1310
    %v1503 = vmul.f32 %v1111, %v1311
    %v1504 = vmul.f32 %v821, %v1312
    %v1505 = vmul.f32 %v823, %v1313
    %v1506 = vmul.f32 %v1116, %v1314
    %v1507 = vmul.f32 %v825, %v1315
    %v1508 = vmul.f32 %v827, %v1316
    %v1509 = vmul.f32 %v1119, %v1317
    %v1510 = vmul.f32 %v831, %v1318
    %v1511 = vmul.f32 %v833, %v1319
    %v1512 = vmul.f32 %v1124, %v1320
    %v1513 = vmul.f32 %v835, %v1321
    %v1514 = vmul.f32 %v837, %v1322
    %v1515 = vmul.f32 %v1127, %v1323
    %v1516 = vmul.f32 %v841, %v1324
    %v1517 = vmul.f32 %v843, %v1325
    %v1518 = vmul.f32 %v1132, %v1326
    %v1519 = vmul.f32 %v845, %v1327
    %v1520 = vmul.f32 %v847, %v1328
    %v1521 = vmul.f32 %v1135, %v1329
    %v1522 = vmul.f32 %v1330, 0.044715
    %v1523 = vmul.f32 %v1331, 0.044715
    %v1524 = vmul.f32 %v1332, 0.044715
    %v1525 = vmul.f32 %v1333, 0.044715
    %v1526 = vmul.f32 %v1334, 0.044715
    %v1527 = vmul.f32 %v1335, 0.044715
    %v1528 = vmul.f32 %v1336, 0.044715
    %v1529 = vmul.f32 %v1337, 0.044715
    %v1530 = vmul.f32 %v1338, 0.044715
    %v1531 = vmul.f32 %v1339, 0.044715
    %v1532 = vmul.f32 %v1340, 0.044715
    %v1533 = vmul.f32 %v1341, 0.044715
    %v1534 = vmul.f32 %v1342, 0.044715
    %v1535 = vmul.f32 %v1343, 0.044715
    %v1536 = vmul.f32 %v1344, 0.044715
    %v1537 = vmul.f32 %v1345, 0.044715
    %v1538 = vmul.f32 %v1346, 0.044715
    %v1539 = vmul.f32 %v1347, 0.044715
    %v1540 = vmul.f32 %v1348, 0.044715
    %v1541 = vmul.f32 %v1349, 0.044715
    %v1542 = vmul.f32 %v1350, 0.044715
    %v1543 = vmul.f32 %v1351, 0.044715
    %v1544 = vmul.f32 %v1352, 0.044715
    %v1545 = vmul.f32 %v1353, 0.044715
    %v1546 = vmul.f32 %v1354, 0.044715
    %v1547 = vmul.f32 %v1355, 0.044715
    %v1548 = vmul.f32 %v1356, 0.044715
    %v1549 = vmul.f32 %v1357, 0.044715
    %v1550 = vmul.f32 %v1358, 0.044715
    %v1551 = vmul.f32 %v1359, 0.044715
    %v1552 = vmul.f32 %v1360, 0.044715
    %v1553 = vmul.f32 %v1361, 0.044715
    %v1554 = vmul.f32 %v1362, 0.044715
    %v1555 = vmul.f32 %v1363, 0.044715
    %v1556 = vmul.f32 %v1364, 0.044715
    %v1557 = vmul.f32 %v1365, 0.044715
    %v1558 = vmul.f32 %v1366, 0.044715
    %v1559 = vmul.f32 %v1367, 0.044715
    %v1560 = vmul.f32 %v1368, 0.044715
    %v1561 = vmul.f32 %v1369, 0.044715
    %v1562 = vmul.f32 %v1370, 0.044715
    %v1563 = vmul.f32 %v1371, 0.044715
    %v1564 = vmul.f32 %v1372, 0.044715
    %v1565 = vmul.f32 %v1373, 0.044715
    %v1566 = vmul.f32 %v1374, 0.044715
    %v1567 = vmul.f32 %v1375, 0.044715
    %v1568 = vmul.f32 %v1376, 0.044715
    %v1569 = vmul.f32 %v1377, 0.044715
    %v1570 = vmul.f32 %v1378, 0.044715
    %v1571 = vmul.f32 %v1379, 0.044715
    %v1572 = vmul.f32 %v1380, 0.044715
    %v1573 = vmul.f32 %v1381, 0.044715
    %v1574 = vmul.f32 %v1382, 0.044715
    %v1575 = vmul.f32 %v1383, 0.044715
    %v1576 = vmul.f32 %v1384, 0.044715
    %v1577 = vmul.f32 %v1385, 0.044715
    %v1578 = vmul.f32 %v1386, 0.044715
    %v1579 = vmul.f32 %v1387, 0.044715
    %v1580 = vmul.f32 %v1388, 0.044715
    %v1581 = vmul.f32 %v1389, 0.044715
    %v1582 = vmul.f32 %v1390, 0.044715
    %v1583 = vmul.f32 %v1391, 0.044715
    %v1584 = vmul.f32 %v1392, 0.044715
    %v1585 = vmul.f32 %v1393, 0.044715
    %v1586 = vmul.f32 %v1394, 0.044715
    %v1587 = vmul.f32 %v1395, 0.044715
    %v1588 = vmul.f32 %v1396, 0.044715
    %v1589 = vmul.f32 %v1397, 0.044715
    %v1590 = vmul.f32 %v1398, 0.044715
    %v1591 = vmul.f32 %v1399, 0.044715
    %v1592 = vmul.f32 %v1400, 0.044715
    %v1593 = vmul.f32 %v1401, 0.044715
    %v1594 = vmul.f32 %v1402, 0.044715
    %v1595 = vmul.f32 %v1403, 0.044715
    %v1596 = vmul.f32 %v1404, 0.044715
    %v1597 = vmul.f32 %v1405, 0.044715
    %v1598 = vmul.f32 %v1406, 0.044715
    %v1599 = vmul.f32 %v1407, 0.044715
    %v1600 = vmul.f32 %v1408, 0.044715
    %v1601 = vmul.f32 %v1409, 0.044715
    %v1602 = vmul.f32 %v1410, 0.044715
    %v1603 = vmul.f32 %v1411, 0.044715
    %v1604 = vmul.f32 %v1412, 0.044715
    %v1605 = vmul.f32 %v1413, 0.044715
    %v1606 = vmul.f32 %v1414, 0.044715
    %v1607 = vmul.f32 %v1415, 0.044715
    %v1608 = vmul.f32 %v1416, 0.044715
    %v1609 = vmul.f32 %v1417, 0.044715
    %v1610 = vmul.f32 %v1418, 0.044715
    %v1611 = vmul.f32 %v1419, 0.044715
    %v1612 = vmul.f32 %v1420, 0.044715
    %v1613 = vmul.f32 %v1421, 0.044715
    %v1614 = vmul.f32 %v1422, 0.044715
    %v1615 = vmul.f32 %v1423, 0.044715
    %v1616 = vmul.f32 %v1424, 0.044715
    %v1617 = vmul.f32 %v1425, 0.044715
    %v1618 = vmul.f32 %v1426, 0.044715
    %v1619 = vmul.f32 %v1427, 0.044715
    %v1620 = vmul.f32 %v1428, 0.044715
    %v1621 = vmul.f32 %v1429, 0.044715
    %v1622 = vmul.f32 %v1430, 0.044715
    %v1623 = vmul.f32 %v1431, 0.044715
    %v1624 = vmul.f32 %v1432, 0.044715
    %v1625 = vmul.f32 %v1433, 0.044715
    %v1626 = vmul.f32 %v1434, 0.044715
    %v1627 = vmul.f32 %v1435, 0.044715
    %v1628 = vmul.f32 %v1436, 0.044715
    %v1629 = vmul.f32 %v1437, 0.044715
    %v1630 = vmul.f32 %v1438, 0.044715
    %v1631 = vmul.f32 %v1439, 0.044715
    %v1632 = vmul.f32 %v1440, 0.044715
    %v1633 = vmul.f32 %v1441, 0.044715
    %v1634 = vmul.f32 %v1442, 0.044715
    %v1635 = vmul.f32 %v1443, 0.044715
    %v1636 = vmul.f32 %v1444, 0.044715
    %v1637 = vmul.f32 %v1445, 0.044715
    %v1638 = vmul.f32 %v1446, 0.044715
    %v1639 = vmul.f32 %v1447, 0.044715
    %v1640 = vmul.f32 %v1448, 0.044715
    %v1641 = vmul.f32 %v1449, 0.044715
    %v1642 = vmul.f32 %v1450, 0.044715
    %v1643 = vmul.f32 %v1451, 0.044715
    %v1644 = vmul.f32 %v1452, 0.044715
    %v1645 = vmul.f32 %v1453, 0.044715
    %v1646 = vmul.f32 %v1454, 0.044715
    %v1647 = vmul.f32 %v1455, 0.044715
    %v1648 = vmul.f32 %v1456, 0.044715
    %v1649 = vmul.f32 %v1457, 0.044715
    %v1650 = vmul.f32 %v1458, 0.044715
    %v1651 = vmul.f32 %v1459, 0.044715
    %v1652 = vmul.f32 %v1460, 0.044715
    %v1653 = vmul.f32 %v1461, 0.044715
    %v1654 = vmul.f32 %v1462, 0.044715
    %v1655 = vmul.f32 %v1463, 0.044715
    %v1656 = vmul.f32 %v1464, 0.044715
    %v1657 = vmul.f32 %v1465, 0.044715
    %v1658 = vmul.f32 %v1466, 0.044715
    %v1659 = vmul.f32 %v1467, 0.044715
    %v1660 = vmul.f32 %v1468, 0.044715
    %v1661 = vmul.f32 %v1469, 0.044715
    %v1662 = vmul.f32 %v1470, 0.044715
    %v1663 = vmul.f32 %v1471, 0.044715
    %v1664 = vmul.f32 %v1472, 0.044715
    %v1665 = vmul.f32 %v1473, 0.044715
    %v1666 = vmul.f32 %v1474, 0.044715
    %v1667 = vmul.f32 %v1475, 0.044715
    %v1668 = vmul.f32 %v1476, 0.044715
    %v1669 = vmul.f32 %v1477, 0.044715
    %v1670 = vmul.f32 %v1478, 0.044715
    %v1671 = vmul.f32 %v1479, 0.044715
    %v1672 = vmul.f32 %v1480, 0.044715
    %v1673 = vmul.f32 %v1481, 0.044715
    %v1674 = vmul.f32 %v1482, 0.044715
    %v1675 = vmul.f32 %v1483, 0.044715
    %v1676 = vmul.f32 %v1484, 0.044715
    %v1677 = vmul.f32 %v1485, 0.044715
    %v1678 = vmul.f32 %v1486, 0.044715
    %v1679 = vmul.f32 %v1487, 0.044715
    %v1680 = vmul.f32 %v1488, 0.044715
    %v1681 = vmul.f32 %v1489, 0.044715
    %v1682 = vmul.f32 %v1490, 0.044715
    %v1683 = vmul.f32 %v1491, 0.044715
    %v1684 = vmul.f32 %v1492, 0.044715
    %v1685 = vmul.f32 %v1493, 0.044715
    %v1686 = vmul.f32 %v1494, 0.044715
    %v1687 = vmul.f32 %v1495, 0.044715
    %v1688 = vmul.f32 %v1496, 0.044715
    %v1689 = vmul.f32 %v1497, 0.044715
    %v1690 = vmul.f32 %v1498, 0.044715
    %v1691 = vmul.f32 %v1499, 0.044715
    %v1692 = vmul.f32 %v1500, 0.044715
    %v1693 = vmul.f32 %v1501, 0.044715
    %v1694 = vmul.f32 %v1502, 0.044715
    %v1695 = vmul.f32 %v1503, 0.044715
    %v1696 = vmul.f32 %v1504, 0.044715
    %v1697 = vmul.f32 %v1505, 0.044715
    %v1698 = vmul.f32 %v1506, 0.044715
    %v1699 = vmul.f32 %v1507, 0.044715
    %v1700 = vmul.f32 %v1508, 0.044715
    %v1701 = vmul.f32 %v1509, 0.044715
    %v1702 = vmul.f32 %v1510, 0.044715
    %v1703 = vmul.f32 %v1511, 0.044715
    %v1704 = vmul.f32 %v1512, 0.044715
    %v1705 = vmul.f32 %v1513, 0.044715
    %v1706 = vmul.f32 %v1514, 0.044715
    %v1707 = vmul.f32 %v1515, 0.044715
    %v1708 = vmul.f32 %v1516, 0.044715
    %v1709 = vmul.f32 %v1517, 0.044715
    %v1710 = vmul.f32 %v1518, 0.044715
    %v1711 = vmul.f32 %v1519, 0.044715
    %v1712 = vmul.f32 %v1520, 0.044715
    %v1713 = vmul.f32 %v1521, 0.044715
    %v1714 = vadd.f32 %v531, %v1522
    %v1715 = vadd.f32 %v533, %v1523
    %v1716 = vadd.f32 %v884, %v1524
    %v1717 = vadd.f32 %v535, %v1525
    %v1718 = vadd.f32 %v537, %v1526
    %v1719 = vadd.f32 %v887, %v1527
    %v1720 = vadd.f32 %v541, %v1528
    %v1721 = vadd.f32 %v543, %v1529
    %v1722 = vadd.f32 %v892, %v1530
    %v1723 = vadd.f32 %v545, %v1531
    %v1724 = vadd.f32 %v547, %v1532
    %v1725 = vadd.f32 %v895, %v1533
    %v1726 = vadd.f32 %v551, %v1534
    %v1727 = vadd.f32 %v553, %v1535
    %v1728 = vadd.f32 %v900, %v1536
    %v1729 = vadd.f32 %v555, %v1537
    %v1730 = vadd.f32 %v557, %v1538
    %v1731 = vadd.f32 %v903, %v1539
    %v1732 = vadd.f32 %v561, %v1540
    %v1733 = vadd.f32 %v563, %v1541
    %v1734 = vadd.f32 %v908, %v1542
    %v1735 = vadd.f32 %v565, %v1543
    %v1736 = vadd.f32 %v567, %v1544
    %v1737 = vadd.f32 %v911, %v1545
    %v1738 = vadd.f32 %v571, %v1546
    %v1739 = vadd.f32 %v573, %v1547
    %v1740 = vadd.f32 %v916, %v1548
    %v1741 = vadd.f32 %v575, %v1549
    %v1742 = vadd.f32 %v577, %v1550
    %v1743 = vadd.f32 %v919, %v1551
    %v1744 = vadd.f32 %v581, %v1552
    %v1745 = vadd.f32 %v583, %v1553
    %v1746 = vadd.f32 %v924, %v1554
    %v1747 = vadd.f32 %v585, %v1555
    %v1748 = vadd.f32 %v587, %v1556
    %v1749 = vadd.f32 %v927, %v1557
    %v1750 = vadd.f32 %v591, %v1558
    %v1751 = vadd.f32 %v593, %v1559
    %v1752 = vadd.f32 %v932, %v1560
    %v1753 = vadd.f32 %v595, %v1561
    %v1754 = vadd.f32 %v597, %v1562
    %v1755 = vadd.f32 %v935, %v1563
    %v1756 = vadd.f32 %v601, %v1564
    %v1757 = vadd.f32 %v603, %v1565
    %v1758 = vadd.f32 %v940, %v1566
    %v1759 = vadd.f32 %v605, %v1567
    %v1760 = vadd.f32 %v607, %v1568
    %v1761 = vadd.f32 %v943, %v1569
    %v1762 = vadd.f32 %v611, %v1570
    %v1763 = vadd.f32 %v613, %v1571
    %v1764 = vadd.f32 %v948, %v1572
    %v1765 = vadd.f32 %v615, %v1573
    %v1766 = vadd.f32 %v617, %v1574
    %v1767 = vadd.f32 %v951, %v1575
    %v1768 = vadd.f32 %v621, %v1576
    %v1769 = vadd.f32 %v623, %v1577
    %v1770 = vadd.f32 %v956, %v1578
    %v1771 = vadd.f32 %v625, %v1579
    %v1772 = vadd.f32 %v627, %v1580
    %v1773 = vadd.f32 %v959, %v1581
    %v1774 = vadd.f32 %v631, %v1582
    %v1775 = vadd.f32 %v633, %v1583
    %v1776 = vadd.f32 %v964, %v1584
    %v1777 = vadd.f32 %v635, %v1585
    %v1778 = vadd.f32 %v637, %v1586
    %v1779 = vadd.f32 %v967, %v1587
    %v1780 = vadd.f32 %v641, %v1588
    %v1781 = vadd.f32 %v643, %v1589
    %v1782 = vadd.f32 %v972, %v1590
    %v1783 = vadd.f32 %v645, %v1591
    %v1784 = vadd.f32 %v647, %v1592
    %v1785 = vadd.f32 %v975, %v1593
    %v1786 = vadd.f32 %v651, %v1594
    %v1787 = vadd.f32 %v653, %v1595
    %v1788 = vadd.f32 %v980, %v1596
    %v1789 = vadd.f32 %v655, %v1597
    %v1790 = vadd.f32 %v657, %v1598
    %v1791 = vadd.f32 %v983, %v1599
    %v1792 = vadd.f32 %v661, %v1600
    %v1793 = vadd.f32 %v663, %v1601
    %v1794 = vadd.f32 %v988, %v1602
    %v1795 = vadd.f32 %v665, %v1603
    %v1796 = vadd.f32 %v667, %v1604
    %v1797 = vadd.f32 %v991, %v1605
    %v1798 = vadd.f32 %v671, %v1606
    %v1799 = vadd.f32 %v673, %v1607
    %v1800 = vadd.f32 %v996, %v1608
    %v1801 = vadd.f32 %v675, %v1609
    %v1802 = vadd.f32 %v677, %v1610
    %v1803 = vadd.f32 %v999, %v1611
    %v1804 = vadd.f32 %v681, %v1612
    %v1805 = vadd.f32 %v683, %v1613
    %v1806 = vadd.f32 %v1004, %v1614
    %v1807 = vadd.f32 %v685, %v1615
    %v1808 = vadd.f32 %v687, %v1616
    %v1809 = vadd.f32 %v1007, %v1617
    %v1810 = vadd.f32 %v691, %v1618
    %v1811 = vadd.f32 %v693, %v1619
    %v1812 = vadd.f32 %v1012, %v1620
    %v1813 = vadd.f32 %v695, %v1621
    %v1814 = vadd.f32 %v697, %v1622
    %v1815 = vadd.f32 %v1015, %v1623
    %v1816 = vadd.f32 %v701, %v1624
    %v1817 = vadd.f32 %v703, %v1625
    %v1818 = vadd.f32 %v1020, %v1626
    %v1819 = vadd.f32 %v705, %v1627
    %v1820 = vadd.f32 %v707, %v1628
    %v1821 = vadd.f32 %v1023, %v1629
    %v1822 = vadd.f32 %v711, %v1630
    %v1823 = vadd.f32 %v713, %v1631
    %v1824 = vadd.f32 %v1028, %v1632
    %v1825 = vadd.f32 %v715, %v1633
    %v1826 = vadd.f32 %v717, %v1634
    %v1827 = vadd.f32 %v1031, %v1635
    %v1828 = vadd.f32 %v721, %v1636
    %v1829 = vadd.f32 %v723, %v1637
    %v1830 = vadd.f32 %v1036, %v1638
    %v1831 = vadd.f32 %v725, %v1639
    %v1832 = vadd.f32 %v727, %v1640
    %v1833 = vadd.f32 %v1039, %v1641
    %v1834 = vadd.f32 %v731, %v1642
    %v1835 = vadd.f32 %v733, %v1643
    %v1836 = vadd.f32 %v1044, %v1644
    %v1837 = vadd.f32 %v735, %v1645
    %v1838 = vadd.f32 %v737, %v1646
    %v1839 = vadd.f32 %v1047, %v1647
    %v1840 = vadd.f32 %v741, %v1648
    %v1841 = vadd.f32 %v743, %v1649
    %v1842 = vadd.f32 %v1052, %v1650
    %v1843 = vadd.f32 %v745, %v1651
    %v1844 = vadd.f32 %v747, %v1652
    %v1845 = vadd.f32 %v1055, %v1653
    %v1846 = vadd.f32 %v751, %v1654
    %v1847 = vadd.f32 %v753, %v1655
    %v1848 = vadd.f32 %v1060, %v1656
    %v1849 = vadd.f32 %v755, %v1657
    %v1850 = vadd.f32 %v757, %v1658
    %v1851 = vadd.f32 %v1063, %v1659
    %v1852 = vadd.f32 %v761, %v1660
    %v1853 = vadd.f32 %v763, %v1661
    %v1854 = vadd.f32 %v1068, %v1662
    %v1855 = vadd.f32 %v765, %v1663
    %v1856 = vadd.f32 %v767, %v1664
    %v1857 = vadd.f32 %v1071, %v1665
    %v1858 = vadd.f32 %v771, %v1666
    %v1859 = vadd.f32 %v773, %v1667
    %v1860 = vadd.f32 %v1076, %v1668
    %v1861 = vadd.f32 %v775, %v1669
    %v1862 = vadd.f32 %v777, %v1670
    %v1863 = vadd.f32 %v1079, %v1671
    %v1864 = vadd.f32 %v781, %v1672
    %v1865 = vadd.f32 %v783, %v1673
    %v1866 = vadd.f32 %v1084, %v1674
    %v1867 = vadd.f32 %v785, %v1675
    %v1868 = vadd.f32 %v787, %v1676
    %v1869 = vadd.f32 %v1087, %v1677
    %v1870 = vadd.f32 %v791, %v1678
    %v1871 = vadd.f32 %v793, %v1679
    %v1872 = vadd.f32 %v1092, %v1680
    %v1873 = vadd.f32 %v795, %v1681
    %v1874 = vadd.f32 %v797, %v1682
    %v1875 = vadd.f32 %v1095, %v1683
    %v1876 = vadd.f32 %v801, %v1684
    %v1877 = vadd.f32 %v803, %v1685
    %v1878 = vadd.f32 %v1100, %v1686
    %v1879 = vadd.f32 %v805, %v1687
    %v1880 = vadd.f32 %v807, %v1688
    %v1881 = vadd.f32 %v1103, %v1689
    %v1882 = vadd.f32 %v811, %v1690
    %v1883 = vadd.f32 %v813, %v1691
    %v1884 = vadd.f32 %v1108, %v1692
    %v1885 = vadd.f32 %v815, %v1693
    %v1886 = vadd.f32 %v817, %v1694
    %v1887 = vadd.f32 %v1111, %v1695
    %v1888 = vadd.f32 %v821, %v1696
    %v1889 = vadd.f32 %v823, %v1697
    %v1890 = vadd.f32 %v1116, %v1698
    %v1891 = vadd.f32 %v825, %v1699
    %v1892 = vadd.f32 %v827, %v1700
    %v1893 = vadd.f32 %v1119, %v1701
    %v1894 = vadd.f32 %v831, %v1702
    %v1895 = vadd.f32 %v833, %v1703
    %v1896 = vadd.f32 %v1124, %v1704
    %v1897 = vadd.f32 %v835, %v1705
    %v1898 = vadd.f32 %v837, %v1706
    %v1899 = vadd.f32 %v1127, %v1707
    %v1900 = vadd.f32 %v841, %v1708
    %v1901 = vadd.f32 %v843, %v1709
    %v1902 = vadd.f32 %v1132, %v1710
    %v1903 = vadd.f32 %v845, %v1711
    %v1904 = vadd.f32 %v847, %v1712
    %v1905 = vadd.f32 %v1135, %v1713
    %v1906 = vmul.f32 %v1714, 0.7978846
    %v1907 = vmul.f32 %v1715, 0.7978846
    %v1908 = vmul.f32 %v1716, 0.7978846
    %v1909 = vmul.f32 %v1717, 0.7978846
    %v1910 = vmul.f32 %v1718, 0.7978846
    %v1911 = vmul.f32 %v1719, 0.7978846
    %v1912 = vmul.f32 %v1720, 0.7978846
    %v1913 = vmul.f32 %v1721, 0.7978846
    %v1914 = vmul.f32 %v1722, 0.7978846
    %v1915 = vmul.f32 %v1723, 0.7978846
    %v1916 = vmul.f32 %v1724, 0.7978846
    %v1917 = vmul.f32 %v1725, 0.7978846
    %v1918 = vmul.f32 %v1726, 0.7978846
    %v1919 = vmul.f32 %v1727, 0.7978846
    %v1920 = vmul.f32 %v1728, 0.7978846
    %v1921 = vmul.f32 %v1729, 0.7978846
    %v1922 = vmul.f32 %v1730, 0.7978846
    %v1923 = vmul.f32 %v1731, 0.7978846
    %v1924 = vmul.f32 %v1732, 0.7978846
    %v1925 = vmul.f32 %v1733, 0.7978846
    %v1926 = vmul.f32 %v1734, 0.7978846
    %v1927 = vmul.f32 %v1735, 0.7978846
    %v1928 = vmul.f32 %v1736, 0.7978846
    %v1929 = vmul.f32 %v1737, 0.7978846
    %v1930 = vmul.f32 %v1738, 0.7978846
    %v1931 = vmul.f32 %v1739, 0.7978846
    %v1932 = vmul.f32 %v1740, 0.7978846
    %v1933 = vmul.f32 %v1741, 0.7978846
    %v1934 = vmul.f32 %v1742, 0.7978846
    %v1935 = vmul.f32 %v1743, 0.7978846
    %v1936 = vmul.f32 %v1744, 0.7978846
    %v1937 = vmul.f32 %v1745, 0.7978846
    %v1938 = vmul.f32 %v1746, 0.7978846
    %v1939 = vmul.f32 %v1747, 0.7978846
    %v1940 = vmul.f32 %v1748, 0.7978846
    %v1941 = vmul.f32 %v1749, 0.7978846
    %v1942 = vmul.f32 %v1750, 0.7978846
    %v1943 = vmul.f32 %v1751, 0.7978846
    %v1944 = vmul.f32 %v1752, 0.7978846
    %v1945 = vmul.f32 %v1753, 0.7978846
    %v1946 = vmul.f32 %v1754, 0.7978846
    %v1947 = vmul.f32 %v1755, 0.7978846
    %v1948 = vmul.f32 %v1756, 0.7978846
    %v1949 = vmul.f32 %v1757, 0.7978846
    %v1950 = vmul.f32 %v1758, 0.7978846
    %v1951 = vmul.f32 %v1759, 0.7978846
    %v1952 = vmul.f32 %v1760, 0.7978846
    %v1953 = vmul.f32 %v1761, 0.7978846
    %v1954 = vmul.f32 %v1762, 0.7978846
    %v1955 = vmul.f32 %v1763, 0.7978846
    %v1956 = vmul.f32 %v1764, 0.7978846
    %v1957 = vmul.f32 %v1765, 0.7978846
    %v1958 = vmul.f32 %v1766, 0.7978846
    %v1959 = vmul.f32 %v1767, 0.7978846
    %v1960 = vmul.f32 %v1768, 0.7978846
    %v1961 = vmul.f32 %v1769, 0.7978846
    %v1962 = vmul.f32 %v1770, 0.7978846
    %v1963 = vmul.f32 %v1771, 0.7978846
    %v1964 = vmul.f32 %v1772, 0.7978846
    %v1965 = vmul.f32 %v1773, 0.7978846
    %v1966 = vmul.f32 %v1774, 0.7978846
    %v1967 = vmul.f32 %v1775, 0.7978846
    %v1968 = vmul.f32 %v1776, 0.7978846
    %v1969 = vmul.f32 %v1777, 0.7978846
    %v1970 = vmul.f32 %v1778, 0.7978846
    %v1971 = vmul.f32 %v1779, 0.7978846
    %v1972 = vmul.f32 %v1780, 0.7978846
    %v1973 = vmul.f32 %v1781, 0.7978846
    %v1974 = vmul.f32 %v1782, 0.7978846
    %v1975 = vmul.f32 %v1783, 0.7978846
    %v1976 = vmul.f32 %v1784, 0.7978846
    %v1977 = vmul.f32 %v1785, 0.7978846
    %v1978 = vmul.f32 %v1786, 0.7978846
    %v1979 = vmul.f32 %v1787, 0.7978846
    %v1980 = vmul.f32 %v1788, 0.7978846
    %v1981 = vmul.f32 %v1789, 0.7978846
    %v1982 = vmul.f32 %v1790, 0.7978846
    %v1983 = vmul.f32 %v1791, 0.7978846
    %v1984 = vmul.f32 %v1792, 0.7978846
    %v1985 = vmul.f32 %v1793, 0.7978846
    %v1986 = vmul.f32 %v1794, 0.7978846
    %v1987 = vmul.f32 %v1795, 0.7978846
    %v1988 = vmul.f32 %v1796, 0.7978846
    %v1989 = vmul.f32 %v1797, 0.7978846
    %v1990 = vmul.f32 %v1798, 0.7978846
    %v1991 = vmul.f32 %v1799, 0.7978846
    %v1992 = vmul.f32 %v1800, 0.7978846
    %v1993 = vmul.f32 %v1801, 0.7978846
    %v1994 = vmul.f32 %v1802, 0.7978846
    %v1995 = vmul.f32 %v1803, 0.7978846
    %v1996 = vmul.f32 %v1804, 0.7978846
    %v1997 = vmul.f32 %v1805, 0.7978846
    %v1998 = vmul.f32 %v1806, 0.7978846
    %v1999 = vmul.f32 %v1807, 0.7978846
    %v2000 = vmul.f32 %v1808, 0.7978846
    %v2001 = vmul.f32 %v1809, 0.7978846
    %v2002 = vmul.f32 %v1810, 0.7978846
    %v2003 = vmul.f32 %v1811, 0.7978846
    %v2004 = vmul.f32 %v1812, 0.7978846
    %v2005 = vmul.f32 %v1813, 0.7978846
    %v2006 = vmul.f32 %v1814, 0.7978846
    %v2007 = vmul.f32 %v1815, 0.7978846
    %v2008 = vmul.f32 %v1816, 0.7978846
    %v2009 = vmul.f32 %v1817, 0.7978846
    %v2010 = vmul.f32 %v1818, 0.7978846
    %v2011 = vmul.f32 %v1819, 0.7978846
    %v2012 = vmul.f32 %v1820, 0.7978846
    %v2013 = vmul.f32 %v1821, 0.7978846
    %v2014 = vmul.f32 %v1822, 0.7978846
    %v2015 = vmul.f32 %v1823, 0.7978846
    %v2016 = vmul.f32 %v1824, 0.7978846
    %v2017 = vmul.f32 %v1825, 0.7978846
    %v2018 = vmul.f32 %v1826, 0.7978846
    %v2019 = vmul.f32 %v1827, 0.7978846
    %v2020 = vmul.f32 %v1828, 0.7978846
    %v2021 = vmul.f32 %v1829, 0.7978846
    %v2022 = vmul.f32 %v1830, 0.7978846
    %v2023 = vmul.f32 %v1831, 0.7978846
    %v2024 = vmul.f32 %v1832, 0.7978846
    %v2025 = vmul.f32 %v1833, 0.7978846
    %v2026 = vmul.f32 %v1834, 0.7978846
    %v2027 = vmul.f32 %v1835, 0.7978846
    %v2028 = vmul.f32 %v1836, 0.7978846
    %v2029 = vmul.f32 %v1837, 0.7978846
    %v2030 = vmul.f32 %v1838, 0.7978846
    %v2031 = vmul.f32 %v1839, 0.7978846
    %v2032 = vmul.f32 %v1840, 0.7978846
    %v2033 = vmul.f32 %v1841, 0.7978846
    %v2034 = vmul.f32 %v1842, 0.7978846
    %v2035 = vmul.f32 %v1843, 0.7978846
    %v2036 = vmul.f32 %v1844, 0.7978846
    %v2037 = vmul.f32 %v1845, 0.7978846
    %v2038 = vmul.f32 %v1846, 0.7978846
    %v2039 = vmul.f32 %v1847, 0.7978846
    %v2040 = vmul.f32 %v1848, 0.7978846
    %v2041 = vmul.f32 %v1849, 0.7978846
    %v2042 = vmul.f32 %v1850, 0.7978846
    %v2043 = vmul.f32 %v1851, 0.7978846
    %v2044 = vmul.f32 %v1852, 0.7978846
    %v2045 = vmul.f32 %v1853, 0.7978846
    %v2046 = vmul.f32 %v1854, 0.7978846
    %v2047 = vmul.f32 %v1855, 0.7978846
    %v2048 = vmul.f32 %v1856, 0.7978846
    %v2049 = vmul.f32 %v1857, 0.7978846
    %v2050 = vmul.f32 %v1858, 0.7978846
    %v2051 = vmul.f32 %v1859, 0.7978846
    %v2052 = vmul.f32 %v1860, 0.7978846
    %v2053 = vmul.f32 %v1861, 0.7978846
    %v2054 = vmul.f32 %v1862, 0.7978846
    %v2055 = vmul.f32 %v1863, 0.7978846
    %v2056 = vmul.f32 %v1864, 0.7978846
    %v2057 = vmul.f32 %v1865, 0.7978846
    %v2058 = vmul.f32 %v1866, 0.7978846
    %v2059 = vmul.f32 %v1867, 0.7978846
    %v2060 = vmul.f32 %v1868, 0.7978846
    %v2061 = vmul.f32 %v1869, 0.7978846
    %v2062 = vmul.f32 %v1870, 0.7978846
    %v2063 = vmul.f32 %v1871, 0.7978846
    %v2064 = vmul.f32 %v1872, 0.7978846
    %v2065 = vmul.f32 %v1873, 0.7978846
    %v2066 = vmul.f32 %v1874, 0.7978846
    %v2067 = vmul.f32 %v1875, 0.7978846
    %v2068 = vmul.f32 %v1876, 0.7978846
    %v2069 = vmul.f32 %v1877, 0.7978846
    %v2070 = vmul.f32 %v1878, 0.7978846
    %v2071 = vmul.f32 %v1879, 0.7978846
    %v2072 = vmul.f32 %v1880, 0.7978846
    %v2073 = vmul.f32 %v1881, 0.7978846
    %v2074 = vmul.f32 %v1882, 0.7978846
    %v2075 = vmul.f32 %v1883, 0.7978846
    %v2076 = vmul.f32 %v1884, 0.7978846
    %v2077 = vmul.f32 %v1885, 0.7978846
    %v2078 = vmul.f32 %v1886, 0.7978846
    %v2079 = vmul.f32 %v1887, 0.7978846
    %v2080 = vmul.f32 %v1888, 0.7978846
    %v2081 = vmul.f32 %v1889, 0.7978846
    %v2082 = vmul.f32 %v1890, 0.7978846
    %v2083 = vmul.f32 %v1891, 0.7978846
    %v2084 = vmul.f32 %v1892, 0.7978846
    %v2085 = vmul.f32 %v1893, 0.7978846
    %v2086 = vmul.f32 %v1894, 0.7978846
    %v2087 = vmul.f32 %v1895, 0.7978846
    %v2088 = vmul.f32 %v1896, 0.7978846
    %v2089 = vmul.f32 %v1897, 0.7978846
    %v2090 = vmul.f32 %v1898, 0.7978846
    %v2091 = vmul.f32 %v1899, 0.7978846
    %v2092 = vmul.f32 %v1900, 0.7978846
    %v2093 = vmul.f32 %v1901, 0.7978846
    %v2094 = vmul.f32 %v1902, 0.7978846
    %v2095 = vmul.f32 %v1903, 0.7978846
    %v2096 = vmul.f32 %v1904, 0.7978846
    %v2097 = vmul.f32 %v1905, 0.7978846
    %v2098 = vtanh.pop %v1906
    %v2099 = vtanh.pop %v1907
    %v2100 = vtanh.pop %v1908
    %v2101 = vtanh.pop %v1909
    %v2102 = vtanh.pop %v1910
    %v2103 = vtanh.pop %v1911
    %v2104 = vtanh.pop %v1912
    %v2105 = vtanh.pop %v1913
    %v2106 = vtanh.pop %v1914
    %v2107 = vtanh.pop %v1915
    %v2108 = vtanh.pop %v1916
    %v2109 = vtanh.pop %v1917
    %v2110 = vtanh.pop %v1918
    %v2111 = vtanh.pop %v1919
    %v2112 = vtanh.pop %v1920
    %v2113 = vtanh.pop %v1921
    %v2114 = vtanh.pop %v1922
    %v2115 = vtanh.pop %v1923
    %v2116 = vtanh.pop %v1924
    %v2117 = vtanh.pop %v1925
    %v2118 = vtanh.pop %v1926
    %v2119 = vtanh.pop %v1927
    %v2120 = vtanh.pop %v1928
    %v2121 = vtanh.pop %v1929
    %v2122 = vtanh.pop %v1930
    %v2123 = vtanh.pop %v1931
    %v2124 = vtanh.pop %v1932
    %v2125 = vtanh.pop %v1933
    %v2126 = vtanh.pop %v1934
    %v2127 = vtanh.pop %v1935
    %v2128 = vtanh.pop %v1936
    %v2129 = vtanh.pop %v1937
    %v2130 = vtanh.pop %v1938
    %v2131 = vtanh.pop %v1939
    %v2132 = vtanh.pop %v1940
    %v2133 = vtanh.pop %v1941
    %v2134 = vtanh.pop %v1942
    %v2135 = vtanh.pop %v1943
    %v2136 = vtanh.pop %v1944
    %v2137 = vtanh.pop %v1945
    %v2138 = vtanh.pop %v1946
    %v2139 = vtanh.pop %v1947
    %v2140 = vtanh.pop %v1948
    %v2141 = vtanh.pop %v1949
    %v2142 = vtanh.pop %v1950
    %v2143 = vtanh.pop %v1951
    %v2144 = vtanh.pop %v1952
    %v2145 = vtanh.pop %v1953
    %v2146 = vtanh.pop %v1954
    %v2147 = vtanh.pop %v1955
    %v2148 = vtanh.pop %v1956
    %v2149 = vtanh.pop %v1957
    %v2150 = vtanh.pop %v1958
    %v2151 = vtanh.pop %v1959
    %v2152 = vtanh.pop %v1960
    %v2153 = vtanh.pop %v1961
    %v2154 = vtanh.pop %v1962
    %v2155 = vtanh.pop %v1963
    %v2156 = vtanh.pop %v1964
    %v2157 = vtanh.pop %v1965
    %v2158 = vtanh.pop %v1966
    %v2159 = vtanh.pop %v1967
    %v2160 = vtanh.pop %v1968
    %v2161 = vtanh.pop %v1969
    %v2162 = vtanh.pop %v1970
    %v2163 = vtanh.pop %v1971
    %v2164 = vtanh.pop %v1972
    %v2165 = vtanh.pop %v1973
    %v2166 = vtanh.pop %v1974
    %v2167 = vtanh.pop %v1975
    %v2168 = vtanh.pop %v1976
    %v2169 = vtanh.pop %v1977
    %v2170 = vtanh.pop %v1978
    %v2171 = vtanh.pop %v1979
    %v2172 = vtanh.pop %v1980
    %v2173 = vtanh.pop %v1981
    %v2174 = vtanh.pop %v1982
    %v2175 = vtanh.pop %v1983
    %v2176 = vtanh.pop %v1984
    %v2177 = vtanh.pop %v1985
    %v2178 = vtanh.pop %v1986
    %v2179 = vtanh.pop %v1987
    %v2180 = vtanh.pop %v1988
    %v2181 = vtanh.pop %v1989
    %v2182 = vtanh.pop %v1990
    %v2183 = vtanh.pop %v1991
    %v2184 = vtanh.pop %v1992
    %v2185 = vtanh.pop %v1993
    %v2186 = vtanh.pop %v1994
    %v2187 = vtanh.pop %v1995
    %v2188 = vtanh.pop %v1996
    %v2189 = vtanh.pop %v1997
    %v2190 = vtanh.pop %v1998
    %v2191 = vtanh.pop %v1999
    %v2192 = vtanh.pop %v2000
    %v2193 = vtanh.pop %v2001
    %v2194 = vtanh.pop %v2002
    %v2195 = vtanh.pop %v2003
    %v2196 = vtanh.pop %v2004
    %v2197 = vtanh.pop %v2005
    %v2198 = vtanh.pop %v2006
    %v2199 = vtanh.pop %v2007
    %v2200 = vtanh.pop %v2008
    %v2201 = vtanh.pop %v2009
    %v2202 = vtanh.pop %v2010
    %v2203 = vtanh.pop %v2011
    %v2204 = vtanh.pop %v2012
    %v2205 = vtanh.pop %v2013
    %v2206 = vtanh.pop %v2014
    %v2207 = vtanh.pop %v2015
    %v2208 = vtanh.pop %v2016
    %v2209 = vtanh.pop %v2017
    %v2210 = vtanh.pop %v2018
    %v2211 = vtanh.pop %v2019
    %v2212 = vtanh.pop %v2020
    %v2213 = vtanh.pop %v2021
    %v2214 = vtanh.pop %v2022
    %v2215 = vtanh.pop %v2023
    %v2216 = vtanh.pop %v2024
    %v2217 = vtanh.pop %v2025
    %v2218 = vtanh.pop %v2026
    %v2219 = vtanh.pop %v2027
    %v2220 = vtanh.pop %v2028
    %v2221 = vtanh.pop %v2029
    %v2222 = vtanh.pop %v2030
    %v2223 = vtanh.pop %v2031
    %v2224 = vtanh.pop %v2032
    %v2225 = vtanh.pop %v2033
    %v2226 = vtanh.pop %v2034
    %v2227 = vtanh.pop %v2035
    %v2228 = vtanh.pop %v2036
    %v2229 = vtanh.pop %v2037
    %v2230 = vtanh.pop %v2038
    %v2231 = vtanh.pop %v2039
    %v2232 = vtanh.pop %v2040
    %v2233 = vtanh.pop %v2041
    %v2234 = vtanh.pop %v2042
    %v2235 = vtanh.pop %v2043
    %v2236 = vtanh.pop %v2044
    %v2237 = vtanh.pop %v2045
    %v2238 = vtanh.pop %v2046
    %v2239 = vtanh.pop %v2047
    %v2240 = vtanh.pop %v2048
    %v2241 = vtanh.pop %v2049
    %v2242 = vtanh.pop %v2050
    %v2243 = vtanh.pop %v2051
    %v2244 = vtanh.pop %v2052
    %v2245 = vtanh.pop %v2053
    %v2246 = vtanh.pop %v2054
    %v2247 = vtanh.pop %v2055
    %v2248 = vtanh.pop %v2056
    %v2249 = vtanh.pop %v2057
    %v2250 = vtanh.pop %v2058
    %v2251 = vtanh.pop %v2059
    %v2252 = vtanh.pop %v2060
    %v2253 = vtanh.pop %v2061
    %v2254 = vtanh.pop %v2062
    %v2255 = vtanh.pop %v2063
    %v2256 = vtanh.pop %v2064
    %v2257 = vtanh.pop %v2065
    %v2258 = vtanh.pop %v2066
    %v2259 = vtanh.pop %v2067
    %v2260 = vtanh.pop %v2068
    %v2261 = vtanh.pop %v2069
    %v2262 = vtanh.pop %v2070
    %v2263 = vtanh.pop %v2071
    %v2264 = vtanh.pop %v2072
    %v2265 = vtanh.pop %v2073
    %v2266 = vtanh.pop %v2074
    %v2267 = vtanh.pop %v2075
    %v2268 = vtanh.pop %v2076
    %v2269 = vtanh.pop %v2077
    %v2270 = vtanh.pop %v2078
    %v2271 = vtanh.pop %v2079
    %v2272 = vtanh.pop %v2080
    %v2273 = vtanh.pop %v2081
    %v2274 = vtanh.pop %v2082
    %v2275 = vtanh.pop %v2083
    %v2276 = vtanh.pop %v2084
    %v2277 = vtanh.pop %v2085
    %v2278 = vtanh.pop %v2086
    %v2279 = vtanh.pop %v2087
    %v2280 = vtanh.pop %v2088
    %v2281 = vtanh.pop %v2089
    %v2282 = vtanh.pop %v2090
    %v2283 = vtanh.pop %v2091
    %v2284 = vtanh.pop %v2092
    %v2285 = vtanh.pop %v2093
    %v2286 = vtanh.pop %v2094
    %v2287 = vtanh.pop %v2095
    %v2288 = vtanh.pop %v2096
    %v2289 = vtanh.pop %v2097
    %v2290 = vadd.f32 %v2098, 1.0
    %v2291 = vadd.f32 %v2099, 1.0
    %v2292 = vadd.f32 %v2100, 1.0
    %v2293 = vadd.f32 %v2101, 1.0
    %v2294 = vadd.f32 %v2102, 1.0
    %v2295 = vadd.f32 %v2103, 1.0
    %v2296 = vadd.f32 %v2104, 1.0
    %v2297 = vadd.f32 %v2105, 1.0
    %v2298 = vadd.f32 %v2106, 1.0
    %v2299 = vadd.f32 %v2107, 1.0
    %v2300 = vadd.f32 %v2108, 1.0
    %v2301 = vadd.f32 %v2109, 1.0
    %v2302 = vadd.f32 %v2110, 1.0
    %v2303 = vadd.f32 %v2111, 1.0
    %v2304 = vadd.f32 %v2112, 1.0
    %v2305 = vadd.f32 %v2113, 1.0
    %v2306 = vadd.f32 %v2114, 1.0
    %v2307 = vadd.f32 %v2115, 1.0
    %v2308 = vadd.f32 %v2116, 1.0
    %v2309 = vadd.f32 %v2117, 1.0
    %v2310 = vadd.f32 %v2118, 1.0
    %v2311 = vadd.f32 %v2119, 1.0
    %v2312 = vadd.f32 %v2120, 1.0
    %v2313 = vadd.f32 %v2121, 1.0
    %v2314 = vadd.f32 %v2122, 1.0
    %v2315 = vadd.f32 %v2123, 1.0
    %v2316 = vadd.f32 %v2124, 1.0
    %v2317 = vadd.f32 %v2125, 1.0
    %v2318 = vadd.f32 %v2126, 1.0
    %v2319 = vadd.f32 %v2127, 1.0
    %v2320 = vadd.f32 %v2128, 1.0
    %v2321 = vadd.f32 %v2129, 1.0
    %v2322 = vadd.f32 %v2130, 1.0
    %v2323 = vadd.f32 %v2131, 1.0
    %v2324 = vadd.f32 %v2132, 1.0
    %v2325 = vadd.f32 %v2133, 1.0
    %v2326 = vadd.f32 %v2134, 1.0
    %v2327 = vadd.f32 %v2135, 1.0
    %v2328 = vadd.f32 %v2136, 1.0
    %v2329 = vadd.f32 %v2137, 1.0
    %v2330 = vadd.f32 %v2138, 1.0
    %v2331 = vadd.f32 %v2139, 1.0
    %v2332 = vadd.f32 %v2140, 1.0
    %v2333 = vadd.f32 %v2141, 1.0
    %v2334 = vadd.f32 %v2142, 1.0
    %v2335 = vadd.f32 %v2143, 1.0
    %v2336 = vadd.f32 %v2144, 1.0
    %v2337 = vadd.f32 %v2145, 1.0
    %v2338 = vadd.f32 %v2146, 1.0
    %v2339 = vadd.f32 %v2147, 1.0
    %v2340 = vadd.f32 %v2148, 1.0
    %v2341 = vadd.f32 %v2149, 1.0
    %v2342 = vadd.f32 %v2150, 1.0
    %v2343 = vadd.f32 %v2151, 1.0
    %v2344 = vadd.f32 %v2152, 1.0
    %v2345 = vadd.f32 %v2153, 1.0
    %v2346 = vadd.f32 %v2154, 1.0
    %v2347 = vadd.f32 %v2155, 1.0
    %v2348 = vadd.f32 %v2156, 1.0
    %v2349 = vadd.f32 %v2157, 1.0
    %v2350 = vadd.f32 %v2158, 1.0
    %v2351 = vadd.f32 %v2159, 1.0
    %v2352 = vadd.f32 %v2160, 1.0
    %v2353 = vadd.f32 %v2161, 1.0
    %v2354 = vadd.f32 %v2162, 1.0
    %v2355 = vadd.f32 %v2163, 1.0
    %v2356 = vadd.f32 %v2164, 1.0
    %v2357 = vadd.f32 %v2165, 1.0
    %v2358 = vadd.f32 %v2166, 1.0
    %v2359 = vadd.f32 %v2167, 1.0
    %v2360 = vadd.f32 %v2168, 1.0
    %v2361 = vadd.f32 %v2169, 1.0
    %v2362 = vadd.f32 %v2170, 1.0
    %v2363 = vadd.f32 %v2171, 1.0
    %v2364 = vadd.f32 %v2172, 1.0
    %v2365 = vadd.f32 %v2173, 1.0
    %v2366 = vadd.f32 %v2174, 1.0
    %v2367 = vadd.f32 %v2175, 1.0
    %v2368 = vadd.f32 %v2176, 1.0
    %v2369 = vadd.f32 %v2177, 1.0
    %v2370 = vadd.f32 %v2178, 1.0
    %v2371 = vadd.f32 %v2179, 1.0
    %v2372 = vadd.f32 %v2180, 1.0
    %v2373 = vadd.f32 %v2181, 1.0
    %v2374 = vadd.f32 %v2182, 1.0
    %v2375 = vadd.f32 %v2183, 1.0
    %v2376 = vadd.f32 %v2184, 1.0
    %v2377 = vadd.f32 %v2185, 1.0
    %v2378 = vadd.f32 %v2186, 1.0
    %v2379 = vadd.f32 %v2187, 1.0
    %v2380 = vadd.f32 %v2188, 1.0
    %v2381 = vadd.f32 %v2189, 1.0
    %v2382 = vadd.f32 %v2190, 1.0
    %v2383 = vadd.f32 %v2191, 1.0
    %v2384 = vadd.f32 %v2192, 1.0
    %v2385 = vadd.f32 %v2193, 1.0
    %v2386 = vadd.f32 %v2194, 1.0
    %v2387 = vadd.f32 %v2195, 1.0
    %v2388 = vadd.f32 %v2196, 1.0
    %v2389 = vadd.f32 %v2197, 1.0
    %v2390 = vadd.f32 %v2198, 1.0
    %v2391 = vadd.f32 %v2199, 1.0
    %v2392 = vadd.f32 %v2200, 1.0
    %v2393 = vadd.f32 %v2201, 1.0
    %v2394 = vadd.f32 %v2202, 1.0
    %v2395 = vadd.f32 %v2203, 1.0
    %v2396 = vadd.f32 %v2204, 1.0
    %v2397 = vadd.f32 %v2205, 1.0
    %v2398 = vadd.f32 %v2206, 1.0
    %v2399 = vadd.f32 %v2207, 1.0
    %v2400 = vadd.f32 %v2208, 1.0
    %v2401 = vadd.f32 %v2209, 1.0
    %v2402 = vadd.f32 %v2210, 1.0
    %v2403 = vadd.f32 %v2211, 1.0
    %v2404 = vadd.f32 %v2212, 1.0
    %v2405 = vadd.f32 %v2213, 1.0
    %v2406 = vadd.f32 %v2214, 1.0
    %v2407 = vadd.f32 %v2215, 1.0
    %v2408 = vadd.f32 %v2216, 1.0
    %v2409 = vadd.f32 %v2217, 1.0
    %v2410 = vadd.f32 %v2218, 1.0
    %v2411 = vadd.f32 %v2219, 1.0
    %v2412 = vadd.f32 %v2220, 1.0
    %v2413 = vadd.f32 %v2221, 1.0
    %v2414 = vadd.f32 %v2222, 1.0
    %v2415 = vadd.f32 %v2223, 1.0
    %v2416 = vadd.f32 %v2224, 1.0
    %v2417 = vadd.f32 %v2225, 1.0
    %v2418 = vadd.f32 %v2226, 1.0
    %v2419 = vadd.f32 %v2227, 1.0
    %v2420 = vadd.f32 %v2228, 1.0
    %v2421 = vadd.f32 %v2229, 1.0
    %v2422 = vadd.f32 %v2230, 1.0
    %v2423 = vadd.f32 %v2231, 1.0
    %v2424 = vadd.f32 %v2232, 1.0
    %v2425 = vadd.f32 %v2233, 1.0
    %v2426 = vadd.f32 %v2234, 1.0
    %v2427 = vadd.f32 %v2235, 1.0
    %v2428 = vadd.f32 %v2236, 1.0
    %v2429 = vadd.f32 %v2237, 1.0
    %v2430 = vadd.f32 %v2238, 1.0
    %v2431 = vadd.f32 %v2239, 1.0
    %v2432 = vadd.f32 %v2240, 1.0
    %v2433 = vadd.f32 %v2241, 1.0
    %v2434 = vadd.f32 %v2242, 1.0
    %v2435 = vadd.f32 %v2243, 1.0
    %v2436 = vadd.f32 %v2244, 1.0
    %v2437 = vadd.f32 %v2245, 1.0
    %v2438 = vadd.f32 %v2246, 1.0
    %v2439 = vadd.f32 %v2247, 1.0
    %v2440 = vadd.f32 %v2248, 1.0
    %v2441 = vadd.f32 %v2249, 1.0
    %v2442 = vadd.f32 %v2250, 1.0
    %v2443 = vadd.f32 %v2251, 1.0
    %v2444 = vadd.f32 %v2252, 1.0
    %v2445 = vadd.f32 %v2253, 1.0
    %v2446 = vadd.f32 %v2254, 1.0
    %v2447 = vadd.f32 %v2255, 1.0
    %v2448 = vadd.f32 %v2256, 1.0
    %v2449 = vadd.f32 %v2257, 1.0
    %v2450 = vadd.f32 %v2258, 1.0
    %v2451 = vadd.f32 %v2259, 1.0
    %v2452 = vadd.f32 %v2260, 1.0
    %v2453 = vadd.f32 %v2261, 1.0
    %v2454 = vadd.f32 %v2262, 1.0
    %v2455 = vadd.f32 %v2263, 1.0
    %v2456 = vadd.f32 %v2264, 1.0
    %v2457 = vadd.f32 %v2265, 1.0
    %v2458 = vadd.f32 %v2266, 1.0
    %v2459 = vadd.f32 %v2267, 1.0
    %v2460 = vadd.f32 %v2268, 1.0
    %v2461 = vadd.f32 %v2269, 1.0
    %v2462 = vadd.f32 %v2270, 1.0
    %v2463 = vadd.f32 %v2271, 1.0
    %v2464 = vadd.f32 %v2272, 1.0
    %v2465 = vadd.f32 %v2273, 1.0
    %v2466 = vadd.f32 %v2274, 1.0
    %v2467 = vadd.f32 %v2275, 1.0
    %v2468 = vadd.f32 %v2276, 1.0
    %v2469 = vadd.f32 %v2277, 1.0
    %v2470 = vadd.f32 %v2278, 1.0
    %v2471 = vadd.f32 %v2279, 1.0
    %v2472 = vadd.f32 %v2280, 1.0
    %v2473 = vadd.f32 %v2281, 1.0
    %v2474 = vadd.f32 %v2282, 1.0
    %v2475 = vadd.f32 %v2283, 1.0
    %v2476 = vadd.f32 %v2284, 1.0
    %v2477 = vadd.f32 %v2285, 1.0
    %v2478 = vadd.f32 %v2286, 1.0
    %v2479 = vadd.f32 %v2287, 1.0
    %v2480 = vadd.f32 %v2288, 1.0
    %v2481 = vadd.f32 %v2289, 1.0
    %v2482 = vmul.f32 %v2290, 0.5
    %v2483 = vmul.f32 %v2291, 0.5
    %v2484 = vmul.f32 %v2292, 0.5
    %v2485 = vmul.f32 %v2293, 0.5
    %v2486 = vmul.f32 %v2294, 0.5
    %v2487 = vmul.f32 %v2295, 0.5
    %v2488 = vmul.f32 %v2296, 0.5
    %v2489 = vmul.f32 %v2297, 0.5
    %v2490 = vmul.f32 %v2298, 0.5
    %v2491 = vmul.f32 %v2299, 0.5
    %v2492 = vmul.f32 %v2300, 0.5
    %v2493 = vmul.f32 %v2301, 0.5
    %v2494 = vmul.f32 %v2302, 0.5
    %v2495 = vmul.f32 %v2303, 0.5
    %v2496 = vmul.f32 %v2304, 0.5
    %v2497 = vmul.f32 %v2305, 0.5
    %v2498 = vmul.f32 %v2306, 0.5
    %v2499 = vmul.f32 %v2307, 0.5
    %v2500 = vmul.f32 %v2308, 0.5
    %v2501 = vmul.f32 %v2309, 0.5
    %v2502 = vmul.f32 %v2310, 0.5
    %v2503 = vmul.f32 %v2311, 0.5
    %v2504 = vmul.f32 %v2312, 0.5
    %v2505 = vmul.f32 %v2313, 0.5
    %v2506 = vmul.f32 %v2314, 0.5
    %v2507 = vmul.f32 %v2315, 0.5
    %v2508 = vmul.f32 %v2316, 0.5
    %v2509 = vmul.f32 %v2317, 0.5
    %v2510 = vmul.f32 %v2318, 0.5
    %v2511 = vmul.f32 %v2319, 0.5
    %v2512 = vmul.f32 %v2320, 0.5
    %v2513 = vmul.f32 %v2321, 0.5
    %v2514 = vmul.f32 %v2322, 0.5
    %v2515 = vmul.f32 %v2323, 0.5
    %v2516 = vmul.f32 %v2324, 0.5
    %v2517 = vmul.f32 %v2325, 0.5
    %v2518 = vmul.f32 %v2326, 0.5
    %v2519 = vmul.f32 %v2327, 0.5
    %v2520 = vmul.f32 %v2328, 0.5
    %v2521 = vmul.f32 %v2329, 0.5
    %v2522 = vmul.f32 %v2330, 0.5
    %v2523 = vmul.f32 %v2331, 0.5
    %v2524 = vmul.f32 %v2332, 0.5
    %v2525 = vmul.f32 %v2333, 0.5
    %v2526 = vmul.f32 %v2334, 0.5
    %v2527 = vmul.f32 %v2335, 0.5
    %v2528 = vmul.f32 %v2336, 0.5
    %v2529 = vmul.f32 %v2337, 0.5
    %v2530 = vmul.f32 %v2338, 0.5
    %v2531 = vmul.f32 %v2339, 0.5
    %v2532 = vmul.f32 %v2340, 0.5
    %v2533 = vmul.f32 %v2341, 0.5
    %v2534 = vmul.f32 %v2342, 0.5
    %v2535 = vmul.f32 %v2343, 0.5
    %v2536 = vmul.f32 %v2344, 0.5
    %v2537 = vmul.f32 %v2345, 0.5
    %v2538 = vmul.f32 %v2346, 0.5
    %v2539 = vmul.f32 %v2347, 0.5
    %v2540 = vmul.f32 %v2348, 0.5
    %v2541 = vmul.f32 %v2349, 0.5
    %v2542 = vmul.f32 %v2350, 0.5
    %v2543 = vmul.f32 %v2351, 0.5
    %v2544 = vmul.f32 %v2352, 0.5
    %v2545 = vmul.f32 %v2353, 0.5
    %v2546 = vmul.f32 %v2354, 0.5
    %v2547 = vmul.f32 %v2355, 0.5
    %v2548 = vmul.f32 %v2356, 0.5
    %v2549 = vmul.f32 %v2357, 0.5
    %v2550 = vmul.f32 %v2358, 0.5
    %v2551 = vmul.f32 %v2359, 0.5
    %v2552 = vmul.f32 %v2360, 0.5
    %v2553 = vmul.f32 %v2361, 0.5
    %v2554 = vmul.f32 %v2362, 0.5
    %v2555 = vmul.f32 %v2363, 0.5
    %v2556 = vmul.f32 %v2364, 0.5
    %v2557 = vmul.f32 %v2365, 0.5
    %v2558 = vmul.f32 %v2366, 0.5
    %v2559 = vmul.f32 %v2367, 0.5
    %v2560 = vmul.f32 %v2368, 0.5
    %v2561 = vmul.f32 %v2369, 0.5
    %v2562 = vmul.f32 %v2370, 0.5
    %v2563 = vmul.f32 %v2371, 0.5
    %v2564 = vmul.f32 %v2372, 0.5
    %v2565 = vmul.f32 %v2373, 0.5
    %v2566 = vmul.f32 %v2374, 0.5
    %v2567 = vmul.f32 %v2375, 0.5
    %v2568 = vmul.f32 %v2376, 0.5
    %v2569 = vmul.f32 %v2377, 0.5
    %v2570 = vmul.f32 %v2378, 0.5
    %v2571 = vmul.f32 %v2379, 0.5
    %v2572 = vmul.f32 %v2380, 0.5
    %v2573 = vmul.f32 %v2381, 0.5
    %v2574 = vmul.f32 %v2382, 0.5
    %v2575 = vmul.f32 %v2383, 0.5
    %v2576 = vmul.f32 %v2384, 0.5
    %v2577 = vmul.f32 %v2385, 0.5
    %v2578 = vmul.f32 %v2386, 0.5
    %v2579 = vmul.f32 %v2387, 0.5
    %v2580 = vmul.f32 %v2388, 0.5
    %v2581 = vmul.f32 %v2389, 0.5
    %v2582 = vmul.f32 %v2390, 0.5
    %v2583 = vmul.f32 %v2391, 0.5
    %v2584 = vmul.f32 %v2392, 0.5
    %v2585 = vmul.f32 %v2393, 0.5
    %v2586 = vmul.f32 %v2394, 0.5
    %v2587 = vmul.f32 %v2395, 0.5
    %v2588 = vmul.f32 %v2396, 0.5
    %v2589 = vmul.f32 %v2397, 0.5
    %v2590 = vmul.f32 %v2398, 0.5
    %v2591 = vmul.f32 %v2399, 0.5
    %v2592 = vmul.f32 %v2400, 0.5
    %v2593 = vmul.f32 %v2401, 0.5
    %v2594 = vmul.f32 %v2402, 0.5
    %v2595 = vmul.f32 %v2403, 0.5
    %v2596 = vmul.f32 %v2404, 0.5
    %v2597 = vmul.f32 %v2405, 0.5
    %v2598 = vmul.f32 %v2406, 0.5
    %v2599 = vmul.f32 %v2407, 0.5
    %v2600 = vmul.f32 %v2408, 0.5
    %v2601 = vmul.f32 %v2409, 0.5
    %v2602 = vmul.f32 %v2410, 0.5
    %v2603 = vmul.f32 %v2411, 0.5
    %v2604 = vmul.f32 %v2412, 0.5
    %v2605 = vmul.f32 %v2413, 0.5
    %v2606 = vmul.f32 %v2414, 0.5
    %v2607 = vmul.f32 %v2415, 0.5
    %v2608 = vmul.f32 %v2416, 0.5
    %v2609 = vmul.f32 %v2417, 0.5
    %v2610 = vmul.f32 %v2418, 0.5
    %v2611 = vmul.f32 %v2419, 0.5
    %v2612 = vmul.f32 %v2420, 0.5
    %v2613 = vmul.f32 %v2421, 0.5
    %v2614 = vmul.f32 %v2422, 0.5
    %v2615 = vmul.f32 %v2423, 0.5
    %v2616 = vmul.f32 %v2424, 0.5
    %v2617 = vmul.f32 %v2425, 0.5
    %v2618 = vmul.f32 %v2426, 0.5
    %v2619 = vmul.f32 %v2427, 0.5
    %v2620 = vmul.f32 %v2428, 0.5
    %v2621 = vmul.f32 %v2429, 0.5
    %v2622 = vmul.f32 %v2430, 0.5
    %v2623 = vmul.f32 %v2431, 0.5
    %v2624 = vmul.f32 %v2432, 0.5
    %v2625 = vmul.f32 %v2433, 0.5
    %v2626 = vmul.f32 %v2434, 0.5
    %v2627 = vmul.f32 %v2435, 0.5
    %v2628 = vmul.f32 %v2436, 0.5
    %v2629 = vmul.f32 %v2437, 0.5
    %v2630 = vmul.f32 %v2438, 0.5
    %v2631 = vmul.f32 %v2439, 0.5
    %v2632 = vmul.f32 %v2440, 0.5
    %v2633 = vmul.f32 %v2441, 0.5
    %v2634 = vmul.f32 %v2442, 0.5
    %v2635 = vmul.f32 %v2443, 0.5
    %v2636 = vmul.f32 %v2444, 0.5
    %v2637 = vmul.f32 %v2445, 0.5
    %v2638 = vmul.f32 %v2446, 0.5
    %v2639 = vmul.f32 %v2447, 0.5
    %v2640 = vmul.f32 %v2448, 0.5
    %v2641 = vmul.f32 %v2449, 0.5
    %v2642 = vmul.f32 %v2450, 0.5
    %v2643 = vmul.f32 %v2451, 0.5
    %v2644 = vmul.f32 %v2452, 0.5
    %v2645 = vmul.f32 %v2453, 0.5
    %v2646 = vmul.f32 %v2454, 0.5
    %v2647 = vmul.f32 %v2455, 0.5
    %v2648 = vmul.f32 %v2456, 0.5
    %v2649 = vmul.f32 %v2457, 0.5
    %v2650 = vmul.f32 %v2458, 0.5
    %v2651 = vmul.f32 %v2459, 0.5
    %v2652 = vmul.f32 %v2460, 0.5
    %v2653 = vmul.f32 %v2461, 0.5
    %v2654 = vmul.f32 %v2462, 0.5
    %v2655 = vmul.f32 %v2463, 0.5
    %v2656 = vmul.f32 %v2464, 0.5
    %v2657 = vmul.f32 %v2465, 0.5
    %v2658 = vmul.f32 %v2466, 0.5
    %v2659 = vmul.f32 %v2467, 0.5
    %v2660 = vmul.f32 %v2468, 0.5
    %v2661 = vmul.f32 %v2469, 0.5
    %v2662 = vmul.f32 %v2470, 0.5
    %v2663 = vmul.f32 %v2471, 0.5
    %v2664 = vmul.f32 %v2472, 0.5
    %v2665 = vmul.f32 %v2473, 0.5
    %v2666 = vmul.f32 %v2474, 0.5
    %v2667 = vmul.f32 %v2475, 0.5
    %v2668 = vmul.f32 %v2476, 0.5
    %v2669 = vmul.f32 %v2477, 0.5
    %v2670 = vmul.f32 %v2478, 0.5
    %v2671 = vmul.f32 %v2479, 0.5
    %v2672 = vmul.f32 %v2480, 0.5
    %v2673 = vmul.f32 %v2481, 0.5
    %v2674 = vmul.f32 %v531, %v2482
    %v2675 = vmul.f32 %v533, %v2483
    %v2676 = vmul.f32 %v884, %v2484
    %v2677 = vmul.f32 %v535, %v2485
    %v2678 = vmul.f32 %v537, %v2486
    %v2679 = vmul.f32 %v887, %v2487
    %v2680 = vmul.f32 %v541, %v2488
    %v2681 = vmul.f32 %v543, %v2489
    %v2682 = vmul.f32 %v892, %v2490
    %v2683 = vmul.f32 %v545, %v2491
    %v2684 = vmul.f32 %v547, %v2492
    %v2685 = vmul.f32 %v895, %v2493
    %v2686 = vmul.f32 %v551, %v2494
    %v2687 = vmul.f32 %v553, %v2495
    %v2688 = vmul.f32 %v900, %v2496
    %v2689 = vmul.f32 %v555, %v2497
    %v2690 = vmul.f32 %v557, %v2498
    %v2691 = vmul.f32 %v903, %v2499
    %v2692 = vmul.f32 %v561, %v2500
    %v2693 = vmul.f32 %v563, %v2501
    %v2694 = vmul.f32 %v908, %v2502
    %v2695 = vmul.f32 %v565, %v2503
    %v2696 = vmul.f32 %v567, %v2504
    %v2697 = vmul.f32 %v911, %v2505
    %v2698 = vmul.f32 %v571, %v2506
    %v2699 = vmul.f32 %v573, %v2507
    %v2700 = vmul.f32 %v916, %v2508
    %v2701 = vmul.f32 %v575, %v2509
    %v2702 = vmul.f32 %v577, %v2510
    %v2703 = vmul.f32 %v919, %v2511
    %v2704 = vmul.f32 %v581, %v2512
    %v2705 = vmul.f32 %v583, %v2513
    %v2706 = vmul.f32 %v924, %v2514
    %v2707 = vmul.f32 %v585, %v2515
    %v2708 = vmul.f32 %v587, %v2516
    %v2709 = vmul.f32 %v927, %v2517
    %v2710 = vmul.f32 %v591, %v2518
    %v2711 = vmul.f32 %v593, %v2519
    %v2712 = vmul.f32 %v932, %v2520
    %v2713 = vmul.f32 %v595, %v2521
    %v2714 = vmul.f32 %v597, %v2522
    %v2715 = vmul.f32 %v935, %v2523
    %v2716 = vmul.f32 %v601, %v2524
    %v2717 = vmul.f32 %v603, %v2525
    %v2718 = vmul.f32 %v940, %v2526
    %v2719 = vmul.f32 %v605, %v2527
    %v2720 = vmul.f32 %v607, %v2528
    %v2721 = vmul.f32 %v943, %v2529
    %v2722 = vmul.f32 %v611, %v2530
    %v2723 = vmul.f32 %v613, %v2531
    %v2724 = vmul.f32 %v948, %v2532
    %v2725 = vmul.f32 %v615, %v2533
    %v2726 = vmul.f32 %v617, %v2534
    %v2727 = vmul.f32 %v951, %v2535
    %v2728 = vmul.f32 %v621, %v2536
    %v2729 = vmul.f32 %v623, %v2537
    %v2730 = vmul.f32 %v956, %v2538
    %v2731 = vmul.f32 %v625, %v2539
    %v2732 = vmul.f32 %v627, %v2540
    %v2733 = vmul.f32 %v959, %v2541
    %v2734 = vmul.f32 %v631, %v2542
    %v2735 = vmul.f32 %v633, %v2543
    %v2736 = vmul.f32 %v964, %v2544
    %v2737 = vmul.f32 %v635, %v2545
    %v2738 = vmul.f32 %v637, %v2546
    %v2739 = vmul.f32 %v967, %v2547
    %v2740 = vmul.f32 %v641, %v2548
    %v2741 = vmul.f32 %v643, %v2549
    %v2742 = vmul.f32 %v972, %v2550
    %v2743 = vmul.f32 %v645, %v2551
    %v2744 = vmul.f32 %v647, %v2552
    %v2745 = vmul.f32 %v975, %v2553
    %v2746 = vmul.f32 %v651, %v2554
    %v2747 = vmul.f32 %v653, %v2555
    %v2748 = vmul.f32 %v980, %v2556
    %v2749 = vmul.f32 %v655, %v2557
    %v2750 = vmul.f32 %v657, %v2558
    %v2751 = vmul.f32 %v983, %v2559
    %v2752 = vmul.f32 %v661, %v2560
    %v2753 = vmul.f32 %v663, %v2561
    %v2754 = vmul.f32 %v988, %v2562
    %v2755 = vmul.f32 %v665, %v2563
    %v2756 = vmul.f32 %v667, %v2564
    %v2757 = vmul.f32 %v991, %v2565
    %v2758 = vmul.f32 %v671, %v2566
    %v2759 = vmul.f32 %v673, %v2567
    %v2760 = vmul.f32 %v996, %v2568
    %v2761 = vmul.f32 %v675, %v2569
    %v2762 = vmul.f32 %v677, %v2570
    %v2763 = vmul.f32 %v999, %v2571
    %v2764 = vmul.f32 %v681, %v2572
    %v2765 = vmul.f32 %v683, %v2573
    %v2766 = vmul.f32 %v1004, %v2574
    %v2767 = vmul.f32 %v685, %v2575
    %v2768 = vmul.f32 %v687, %v2576
    %v2769 = vmul.f32 %v1007, %v2577
    %v2770 = vmul.f32 %v691, %v2578
    %v2771 = vmul.f32 %v693, %v2579
    %v2772 = vmul.f32 %v1012, %v2580
    %v2773 = vmul.f32 %v695, %v2581
    %v2774 = vmul.f32 %v697, %v2582
    %v2775 = vmul.f32 %v1015, %v2583
    %v2776 = vmul.f32 %v701, %v2584
    %v2777 = vmul.f32 %v703, %v2585
    %v2778 = vmul.f32 %v1020, %v2586
    %v2779 = vmul.f32 %v705, %v2587
    %v2780 = vmul.f32 %v707, %v2588
    %v2781 = vmul.f32 %v1023, %v2589
    %v2782 = vmul.f32 %v711, %v2590
    %v2783 = vmul.f32 %v713, %v2591
    %v2784 = vmul.f32 %v1028, %v2592
    %v2785 = vmul.f32 %v715, %v2593
    %v2786 = vmul.f32 %v717, %v2594
    %v2787 = vmul.f32 %v1031, %v2595
    %v2788 = vmul.f32 %v721, %v2596
    %v2789 = vmul.f32 %v723, %v2597
    %v2790 = vmul.f32 %v1036, %v2598
    %v2791 = vmul.f32 %v725, %v2599
    %v2792 = vmul.f32 %v727, %v2600
    %v2793 = vmul.f32 %v1039, %v2601
    %v2794 = vmul.f32 %v731, %v2602
    %v2795 = vmul.f32 %v733, %v2603
    %v2796 = vmul.f32 %v1044, %v2604
    %v2797 = vmul.f32 %v735, %v2605
    %v2798 = vmul.f32 %v737, %v2606
    %v2799 = vmul.f32 %v1047, %v2607
    %v2800 = vmul.f32 %v741, %v2608
    %v2801 = vmul.f32 %v743, %v2609
    %v2802 = vmul.f32 %v1052, %v2610
    %v2803 = vmul.f32 %v745, %v2611
    %v2804 = vmul.f32 %v747, %v2612
    %v2805 = vmul.f32 %v1055, %v2613
    %v2806 = vmul.f32 %v751, %v2614
    %v2807 = vmul.f32 %v753, %v2615
    %v2808 = vmul.f32 %v1060, %v2616
    %v2809 = vmul.f32 %v755, %v2617
    %v2810 = vmul.f32 %v757, %v2618
    %v2811 = vmul.f32 %v1063, %v2619
    %v2812 = vmul.f32 %v761, %v2620
    %v2813 = vmul.f32 %v763, %v2621
    %v2814 = vmul.f32 %v1068, %v2622
    %v2815 = vmul.f32 %v765, %v2623
    %v2816 = vmul.f32 %v767, %v2624
    %v2817 = vmul.f32 %v1071, %v2625
    %v2818 = vmul.f32 %v771, %v2626
    %v2819 = vmul.f32 %v773, %v2627
    %v2820 = vmul.f32 %v1076, %v2628
    %v2821 = vmul.f32 %v775, %v2629
    %v2822 = vmul.f32 %v777, %v2630
    %v2823 = vmul.f32 %v1079, %v2631
    %v2824 = vmul.f32 %v781, %v2632
    %v2825 = vmul.f32 %v783, %v2633
    %v2826 = vmul.f32 %v1084, %v2634
    %v2827 = vmul.f32 %v785, %v2635
    %v2828 = vmul.f32 %v787, %v2636
    %v2829 = vmul.f32 %v1087, %v2637
    %v2830 = vmul.f32 %v791, %v2638
    %v2831 = vmul.f32 %v793, %v2639
    %v2832 = vmul.f32 %v1092, %v2640
    %v2833 = vmul.f32 %v795, %v2641
    %v2834 = vmul.f32 %v797, %v2642
    %v2835 = vmul.f32 %v1095, %v2643
    %v2836 = vmul.f32 %v801, %v2644
    %v2837 = vmul.f32 %v803, %v2645
    %v2838 = vmul.f32 %v1100, %v2646
    %v2839 = vmul.f32 %v805, %v2647
    %v2840 = vmul.f32 %v807, %v2648
    %v2841 = vmul.f32 %v1103, %v2649
    %v2842 = vmul.f32 %v811, %v2650
    %v2843 = vmul.f32 %v813, %v2651
    %v2844 = vmul.f32 %v1108, %v2652
    %v2845 = vmul.f32 %v815, %v2653
    %v2846 = vmul.f32 %v817, %v2654
    %v2847 = vmul.f32 %v1111, %v2655
    %v2848 = vmul.f32 %v821, %v2656
    %v2849 = vmul.f32 %v823, %v2657
    %v2850 = vmul.f32 %v1116, %v2658
    %v2851 = vmul.f32 %v825, %v2659
    %v2852 = vmul.f32 %v827, %v2660
    %v2853 = vmul.f32 %v1119, %v2661
    %v2854 = vmul.f32 %v831, %v2662
    %v2855 = vmul.f32 %v833, %v2663
    %v2856 = vmul.f32 %v1124, %v2664
    %v2857 = vmul.f32 %v835, %v2665
    %v2858 = vmul.f32 %v837, %v2666
    %v2859 = vmul.f32 %v1127, %v2667
    %v2860 = vmul.f32 %v841, %v2668
    %v2861 = vmul.f32 %v843, %v2669
    %v2862 = vmul.f32 %v1132, %v2670
    %v2863 = vmul.f32 %v845, %v2671
    %v2864 = vmul.f32 %v847, %v2672
    %v2865 = vmul.f32 %v1135, %v2673
    %v2866 = vpack.c.bf16 %v2677, %v2674
    %v2867 = vpack.c.bf16 %v2678, %v2675
    %v2868 = vpack.c.bf16 %v2679, %v2676
    %v2869 = vpack.c.bf16 %v2683, %v2680
    %v2870 = vpack.c.bf16 %v2684, %v2681
    %v2871 = vpack.c.bf16 %v2685, %v2682
    %v2872 = vpack.c.bf16 %v2689, %v2686
    %v2873 = vpack.c.bf16 %v2690, %v2687
    %v2874 = vpack.c.bf16 %v2691, %v2688
    %v2875 = vpack.c.bf16 %v2695, %v2692
    %v2876 = vpack.c.bf16 %v2696, %v2693
    %v2877 = vpack.c.bf16 %v2697, %v2694
    %v2878 = vpack.c.bf16 %v2701, %v2698
    %v2879 = vpack.c.bf16 %v2702, %v2699
    %v2880 = vpack.c.bf16 %v2703, %v2700
    %v2881 = vpack.c.bf16 %v2707, %v2704
    %v2882 = vpack.c.bf16 %v2708, %v2705
    %v2883 = vpack.c.bf16 %v2709, %v2706
    %v2884 = vpack.c.bf16 %v2713, %v2710
    %v2885 = vpack.c.bf16 %v2714, %v2711
    %v2886 = vpack.c.bf16 %v2715, %v2712
    %v2887 = vpack.c.bf16 %v2719, %v2716
    %v2888 = vpack.c.bf16 %v2720, %v2717
    %v2889 = vpack.c.bf16 %v2721, %v2718
    %v2890 = vpack.c.bf16 %v2725, %v2722
    %v2891 = vpack.c.bf16 %v2726, %v2723
    %v2892 = vpack.c.bf16 %v2727, %v2724
    %v2893 = vpack.c.bf16 %v2731, %v2728
    %v2894 = vpack.c.bf16 %v2732, %v2729
    %v2895 = vpack.c.bf16 %v2733, %v2730
    %v2896 = vpack.c.bf16 %v2737, %v2734
    %v2897 = vpack.c.bf16 %v2738, %v2735
    %v2898 = vpack.c.bf16 %v2739, %v2736
    %v2899 = vpack.c.bf16 %v2743, %v2740
    %v2900 = vpack.c.bf16 %v2744, %v2741
    %v2901 = vpack.c.bf16 %v2745, %v2742
    %v2902 = vpack.c.bf16 %v2749, %v2746
    %v2903 = vpack.c.bf16 %v2750, %v2747
    %v2904 = vpack.c.bf16 %v2751, %v2748
    %v2905 = vpack.c.bf16 %v2755, %v2752
    %v2906 = vpack.c.bf16 %v2756, %v2753
    %v2907 = vpack.c.bf16 %v2757, %v2754
    %v2908 = vpack.c.bf16 %v2761, %v2758
    %v2909 = vpack.c.bf16 %v2762, %v2759
    %v2910 = vpack.c.bf16 %v2763, %v2760
    %v2911 = vpack.c.bf16 %v2767, %v2764
    %v2912 = vpack.c.bf16 %v2768, %v2765
    %v2913 = vpack.c.bf16 %v2769, %v2766
    %v2914 = vpack.c.bf16 %v2773, %v2770
    %v2915 = vpack.c.bf16 %v2774, %v2771
    %v2916 = vpack.c.bf16 %v2775, %v2772
    %v2917 = vpack.c.bf16 %v2779, %v2776
    %v2918 = vpack.c.bf16 %v2780, %v2777
    %v2919 = vpack.c.bf16 %v2781, %v2778
    %v2920 = vpack.c.bf16 %v2785, %v2782
    %v2921 = vpack.c.bf16 %v2786, %v2783
    %v2922 = vpack.c.bf16 %v2787, %v2784
    %v2923 = vpack.c.bf16 %v2791, %v2788
    %v2924 = vpack.c.bf16 %v2792, %v2789
    %v2925 = vpack.c.bf16 %v2793, %v2790
    %v2926 = vpack.c.bf16 %v2797, %v2794
    %v2927 = vpack.c.bf16 %v2798, %v2795
    %v2928 = vpack.c.bf16 %v2799, %v2796
    %v2929 = vpack.c.bf16 %v2803, %v2800
    %v2930 = vpack.c.bf16 %v2804, %v2801
    %v2931 = vpack.c.bf16 %v2805, %v2802
    %v2932 = vpack.c.bf16 %v2809, %v2806
    %v2933 = vpack.c.bf16 %v2810, %v2807
    %v2934 = vpack.c.bf16 %v2811, %v2808
    %v2935 = vpack.c.bf16 %v2815, %v2812
    %v2936 = vpack.c.bf16 %v2816, %v2813
    %v2937 = vpack.c.bf16 %v2817, %v2814
    %v2938 = vpack.c.bf16 %v2821, %v2818
    %v2939 = vpack.c.bf16 %v2822, %v2819
    %v2940 = vpack.c.bf16 %v2823, %v2820
    %v2941 = vpack.c.bf16 %v2827, %v2824
    %v2942 = vpack.c.bf16 %v2828, %v2825
    %v2943 = vpack.c.bf16 %v2829, %v2826
    %v2944 = vpack.c.bf16 %v2833, %v2830
    %v2945 = vpack.c.bf16 %v2834, %v2831
    %v2946 = vpack.c.bf16 %v2835, %v2832
    %v2947 = vpack.c.bf16 %v2839, %v2836
    %v2948 = vpack.c.bf16 %v2840, %v2837
    %v2949 = vpack.c.bf16 %v2841, %v2838
    %v2950 = vpack.c.bf16 %v2845, %v2842
    %v2951 = vpack.c.bf16 %v2846, %v2843
    %v2952 = vpack.c.bf16 %v2847, %v2844
    %v2953 = vpack.c.bf16 %v2851, %v2848
    %v2954 = vpack.c.bf16 %v2852, %v2849
    %v2955 = vpack.c.bf16 %v2853, %v2850
    %v2956 = vpack.c.bf16 %v2857, %v2854
    %v2957 = vpack.c.bf16 %v2858, %v2855
    %v2958 = vpack.c.bf16 %v2859, %v2856
    %v2959 = vpack.c.bf16 %v2863, %v2860
    %v2960 = vpack.c.bf16 %v2864, %v2861
    %v2961 = vpack.c.bf16 %v2865, %v2862
    %v2962 = vld [vmem:[#allocation7] sm:$0xf]
    %v2963 = vld [vmem:[#allocation7 + $0x4] sm:$0xf]
    %v2964 = vld [vmem:[#allocation7 + $0x8] sm:$0xf]
    %v2965 = vld [vmem:[#allocation7 + $0xc] sm:$0xf]
    %v2966 = vld [vmem:[#allocation7 + $0x10] sm:$0xf]
    %v2967 = vld [vmem:[#allocation7 + $0x14] sm:$0xf]
    %v2968 = vld [vmem:[#allocation7 + $0x18] sm:$0xf]
    %v2969 = vld [vmem:[#allocation7 + $0x1c] sm:$0xf]
    %v2970 = vld [vmem:[#allocation7 + $0x20] sm:$0xf]
    %v2971 = vld [vmem:[#allocation7 + $0x24] sm:$0xf]
    %v2972 = vld [vmem:[#allocation7 + $0x28] sm:$0xf]
    %v2973 = vld [vmem:[#allocation7 + $0x2c] sm:$0xf]
    %v2974 = vld [vmem:[#allocation7 + $0x30] sm:$0xf]
    %v2975 = vld [vmem:[#allocation7 + $0x34] sm:$0xf]
    %v2976 = vld [vmem:[#allocation7 + $0x38] sm:$0xf]
    %v2977 = vld [vmem:[#allocation7 + $0x3c] sm:$0xf]
    %v2978 = vld [vmem:[#allocation7 + $0x40] sm:$0xf]
    %v2979 = vld [vmem:[#allocation7 + $0x44] sm:$0xf]
    %v2980 = vld [vmem:[#allocation7 + $0x48] sm:$0xf]
    %v2981 = vld [vmem:[#allocation7 + $0x4c] sm:$0xf]
    %v2982 = vld [vmem:[#allocation7 + $0x50] sm:$0xf]
    %v2983 = vld [vmem:[#allocation7 + $0x54] sm:$0xf]
    %v2984 = vld [vmem:[#allocation7 + $0x58] sm:$0xf]
    %v2985 = vld [vmem:[#allocation7 + $0x5c] sm:$0xf]
    %v2986 = vld [vmem:[#allocation7 + $0x60] sm:$0xf]
    %v2987 = vld [vmem:[#allocation7 + $0x64] sm:$0xf]
    %v2988 = vld [vmem:[#allocation7 + $0x68] sm:$0xf]
    %v2989 = vld [vmem:[#allocation7 + $0x6c] sm:$0xf]
    %v2990 = vld [vmem:[#allocation7 + $0x70] sm:$0xf]
    %v2991 = vld [vmem:[#allocation7 + $0x74] sm:$0xf]
    %v2992 = vld [vmem:[#allocation7 + $0x78] sm:$0xf]
    %v2993 = vld [vmem:[#allocation7 + $0x7c] sm:$0xf]
    %v2994 = vld [vmem:[#allocation7 + $0x80] sm:$0xf]
    %v2995 = vld [vmem:[#allocation7 + $0x84] sm:$0xf]
    %v2996 = vld [vmem:[#allocation7 + $0x88] sm:$0xf]
    %v2997 = vld [vmem:[#allocation7 + $0x8c] sm:$0xf]
    %v2998 = vld [vmem:[#allocation7 + $0x90] sm:$0xf]
    %v2999 = vld [vmem:[#allocation7 + $0x94] sm:$0xf]
    %v3000 = vld [vmem:[#allocation7 + $0x98] sm:$0xf]
    %v3001 = vld [vmem:[#allocation7 + $0x9c] sm:$0xf]
    %v3002 = vld [vmem:[#allocation7 + $0xa0] sm:$0xf]
    %v3003 = vld [vmem:[#allocation7 + $0xa4] sm:$0xf]
    %v3004 = vld [vmem:[#allocation7 + $0xa8] sm:$0xf]
    %v3005 = vld [vmem:[#allocation7 + $0xac] sm:$0xf]
    %v3006 = vld [vmem:[#allocation7 + $0xb0] sm:$0xf]
    %v3007 = vld [vmem:[#allocation7 + $0xb4] sm:$0xf]
    %v3008 = vld [vmem:[#allocation7 + $0xb8] sm:$0xf]
    %v3009 = vld [vmem:[#allocation7 + $0xbc] sm:$0xf]
    %v3010 = vld [vmem:[%s4] sm:$0x1]
    %v3012 = vlaneseq
    %v3013 = vshrl.u32 %v3012, 7
    %v3014 = vsub.s32 0, %v3013
    %v3015 = vrot.slane %v3010, %v3014
    %v3065 = vunpack.c.l.b16 %v2962
    %v3066 = vunpack.c.l.b16 %v2963
    %v3067 = vunpack.c.l.b16 %v2964
    %v3068 = vunpack.c.l.b16 %v2965
    %v3069 = vunpack.c.l.b16 %v2966
    %v3070 = vunpack.c.l.b16 %v2967
    %v3071 = vunpack.c.l.b16 %v2968
    %v3072 = vunpack.c.l.b16 %v2969
    %v3073 = vunpack.c.l.b16 %v2970
    %v3074 = vunpack.c.l.b16 %v2971
    %v3075 = vunpack.c.l.b16 %v2972
    %v3076 = vunpack.c.l.b16 %v2973
    %v3077 = vunpack.c.l.b16 %v2974
    %v3078 = vunpack.c.l.b16 %v2975
    %v3079 = vunpack.c.l.b16 %v2976
    %v3080 = vunpack.c.l.b16 %v2977
    %v3081 = vunpack.c.l.b16 %v2978
    %v3082 = vunpack.c.l.b16 %v2979
    %v3083 = vunpack.c.l.b16 %v2980
    %v3084 = vunpack.c.l.b16 %v2981
    %v3085 = vunpack.c.l.b16 %v2982
    %v3086 = vunpack.c.l.b16 %v2983
    %v3087 = vunpack.c.l.b16 %v2984
    %v3088 = vunpack.c.l.b16 %v2985
    %v3089 = vunpack.c.l.b16 %v2986
    %v3090 = vunpack.c.l.b16 %v2987
    %v3091 = vunpack.c.l.b16 %v2988
    %v3092 = vunpack.c.l.b16 %v2989
    %v3093 = vunpack.c.l.b16 %v2990
    %v3094 = vunpack.c.l.b16 %v2991
    %v3095 = vunpack.c.l.b16 %v2992
    %v3096 = vunpack.c.l.b16 %v2993
    %v3097 = vunpack.c.l.b16 %v2994
    %v3098 = vunpack.c.l.b16 %v2995
    %v3099 = vunpack.c.l.b16 %v2996
    %v3100 = vunpack.c.l.b16 %v2997
    %v3101 = vunpack.c.l.b16 %v2998
    %v3102 = vunpack.c.l.b16 %v2999
    %v3103 = vunpack.c.l.b16 %v3000
    %v3104 = vunpack.c.l.b16 %v3001
    %v3105 = vunpack.c.l.b16 %v3002
    %v3106 = vunpack.c.l.b16 %v3003
    %v3107 = vunpack.c.l.b16 %v3004
    %v3108 = vunpack.c.l.b16 %v3005
    %v3109 = vunpack.c.l.b16 %v3006
    %v3110 = vunpack.c.l.b16 %v3007
    %v3111 = vunpack.c.l.b16 %v3008
    %v3112 = vunpack.c.l.b16 %v3009
    %v3113 = vpack.c.b16 %v3066, %v3065
    %v3114 = vpack.c.b16 %v3068, %v3067
    %v3115 = vpack.c.b16 %v3070, %v3069
    %v3116 = vpack.c.b16 %v3072, %v3071
    %v3117 = vpack.c.b16 %v3074, %v3073
    %v3118 = vpack.c.b16 %v3076, %v3075
    %v3119 = vpack.c.b16 %v3078, %v3077
    %v3120 = vpack.c.b16 %v3080, %v3079
    %v3121 = vpack.c.b16 %v3082, %v3081
    %v3122 = vpack.c.b16 %v3084, %v3083
    %v3123 = vpack.c.b16 %v3086, %v3085
    %v3124 = vpack.c.b16 %v3088, %v3087
    %v3125 = vpack.c.b16 %v3090, %v3089
    %v3126 = vpack.c.b16 %v3092, %v3091
    %v3127 = vpack.c.b16 %v3094, %v3093
    %v3128 = vpack.c.b16 %v3096, %v3095
    %v3129 = vpack.c.b16 %v3098, %v3097
    %v3130 = vpack.c.b16 %v3100, %v3099
    %v3131 = vpack.c.b16 %v3102, %v3101
    %v3132 = vpack.c.b16 %v3104, %v3103
    %v3133 = vpack.c.b16 %v3106, %v3105
    %v3134 = vpack.c.b16 %v3108, %v3107
    %v3135 = vpack.c.b16 %v3110, %v3109
    %v3136 = vpack.c.b16 %v3112, %v3111
    %3161 = vmatprep.subr.bf16.mxu0 0
    %3162 = vmatpush1.bf16.msra.mxu0 %v3113
    %3163 = vmatprep.subr.bf16.mxu0 0
    %3164 = vmatpush1.bf16.msra.mxu0 %v3114
    %3165 = vmatprep.subr.bf16.mxu0 0
    %3166 = vmatpush1.bf16.msra.mxu0 %v3115
    %3167 = vmatprep.subr.bf16.mxu0 0
    %3168 = vmatpush1.bf16.msra.mxu0 %v3116
    %3169 = vmatprep.subr.bf16.mxu0 0
    %3170 = vmatpush1.bf16.msra.mxu0 %v3117
    %3171 = vmatprep.subr.bf16.mxu0 0
    %3172 = vmatpush1.bf16.msra.mxu0 %v3118
    %3173 = vmatprep.subr.bf16.mxu0 0
    %3174 = vmatpush1.bf16.msra.mxu0 %v3119
    %3175 = vmatprep.subr.bf16.mxu0 0
    %3176 = vmatpush1.bf16.msra.mxu0 %v3120
    %3177 = vmatprep.subr.bf16.mxu0 0
    %3178 = vmatpush1.bf16.msra.mxu0 %v3121
    %3179 = vmatprep.subr.bf16.mxu0 0
    %3180 = vmatpush1.bf16.msra.mxu0 %v3122
    %3181 = vmatprep.subr.bf16.mxu0 0
    %3182 = vmatpush1.bf16.msra.mxu0 %v3123
    %3183 = vmatprep.subr.bf16.mxu0 0
    %3184 = vmatpush1.bf16.msra.mxu0 %v3124
    %3185 = vmatprep.subr.bf16.mxu0 0
    %3186 = vmatpush1.bf16.msra.mxu0 %v3125
    %3187 = vmatprep.subr.bf16.mxu0 0
    %3188 = vmatpush1.bf16.msra.mxu0 %v3126
    %3189 = vmatprep.subr.bf16.mxu0 0
    %3190 = vmatpush1.bf16.msra.mxu0 %v3127
    %3191 = vmatprep.subr.bf16.mxu0 0
    %3192 = vmatpush1.bf16.msra.mxu0 %v3128
    %3193 = vmatprep.mubr.bf16.mxu0 %v2867
    %3194 = vmatmul.mubr.bf16.gmra.mrb[0].mxu0 %v2866
    %v3195 = vpop.f32.mrb[0].mxu0
    %v3196 = vadd.f32 %v3015, %v3195
    %v3197 = vpop.f32.mrb[0].mxu0
    %v3198 = vpop.f32.mrb[0].mxu0
    %v3199 = vadd.f32 %v3015, %v3198
    %v3200 = vpop.f32.mrb[0].mxu0
    %3201 = vmatprep.mubr.bf16.mxu0 %v2870
    %3202 = vmatmul.mubr.bf16.gmra.mrb[0].mxu0 %v2869
    %v3203 = vpop.f32.mrb[0].mxu0
    %v3204 = vadd.f32 %v3015, %v3203
    %v3205 = vpop.f32.mrb[0].mxu0
    %v3206 = vpop.f32.mrb[0].mxu0
    %v3207 = vadd.f32 %v3015, %v3206
    %v3208 = vpop.f32.mrb[0].mxu0
    %3209 = vmatprep.mubr.bf16.mxu0 %v2873
    %3210 = vmatmul.mubr.bf16.gmra.mrb[0].mxu0 %v2872
    %v3211 = vpop.f32.mrb[0].mxu0
    %v3212 = vadd.f32 %v3015, %v3211
    %v3213 = vpop.f32.mrb[0].mxu0
    %v3214 = vpop.f32.mrb[0].mxu0
    %v3215 = vadd.f32 %v3015, %v3214
    %v3216 = vpop.f32.mrb[0].mxu0
    %3217 = vmatprep.mubr.bf16.mxu0 %v2876
    %3218 = vmatmul.mubr.bf16.gmra.mrb[0].mxu0 %v2875
    %v3219 = vpop.f32.mrb[0].mxu0
    %v3220 = vadd.f32 %v3015, %v3219
    %v3221 = vpop.f32.mrb[0].mxu0
    %v3222 = vpop.f32.mrb[0].mxu0
    %v3223 = vadd.f32 %v3015, %v3222
    %v3224 = vpop.f32.mrb[0].mxu0
    %3225 = vmatprep.mubr.bf16.mxu0 %v2879
    %3226 = vmatmul.mubr.bf16.gmra.mrb[0].mxu0 %v2878
    %v3227 = vpop.f32.mrb[0].mxu0
    %v3228 = vadd.f32 %v3015, %v3227
    %v3229 = vpop.f32.mrb[0].mxu0
    %v3230 = vpop.f32.mrb[0].mxu0
    %v3231 = vadd.f32 %v3015, %v3230
    %v3232 = vpop.f32.mrb[0].mxu0
    %3233 = vmatprep.mubr.bf16.mxu0 %v2882
    %3234 = vmatmul.mubr.bf16.gmra.mrb[0].mxu0 %v2881
    %v3235 = vpop.f32.mrb[0].mxu0
    %v3236 = vadd.f32 %v3015, %v3235
    %v3237 = vpop.f32.mrb[0].mxu0
    %v3238 = vpop.f32.mrb[0].mxu0
    %v3239 = vadd.f32 %v3015, %v3238
    %v3240 = vpop.f32.mrb[0].mxu0
    %3241 = vmatprep.mubr.bf16.mxu0 %v2885
    %3242 = vmatmul.mubr.bf16.gmra.mrb[0].mxu0 %v2884
    %v3243 = vpop.f32.mrb[0].mxu0
    %v3244 = vadd.f32 %v3015, %v3243
    %v3245 = vpop.f32.mrb[0].mxu0
    %v3246 = vpop.f32.mrb[0].mxu0
    %v3247 = vadd.f32 %v3015, %v3246
    %v3248 = vpop.f32.mrb[0].mxu0
    %3249 = vmatprep.mubr.bf16.mxu0 %v2888
    %3250 = vmatmul.mubr.bf16.gmra.mrb[0].mxu0 %v2887
    %v3251 = vpop.f32.mrb[0].mxu0
    %v3252 = vadd.f32 %v3015, %v3251
    %v3253 = vpop.f32.mrb[0].mxu0
    %v3254 = vpop.f32.mrb[0].mxu0
    %v3255 = vadd.f32 %v3015, %v3254
    %v3256 = vpop.f32.mrb[0].mxu0
    %3257 = vmatprep.mubr.bf16.mxu0 %v2891
    %3258 = vmatmul.mubr.bf16.gmra.mrb[0].mxu0 %v2890
    %v3259 = vpop.f32.mrb[0].mxu0
    %v3260 = vadd.f32 %v3015, %v3259
    %v3261 = vpop.f32.mrb[0].mxu0
    %v3262 = vpop.f32.mrb[0].mxu0
    %v3263 = vadd.f32 %v3015, %v3262
    %v3264 = vpop.f32.mrb[0].mxu0
    %3265 = vmatprep.mubr.bf16.mxu0 %v2894
    %3266 = vmatmul.mubr.bf16.gmra.mrb[0].mxu0 %v2893
    %v3267 = vpop.f32.mrb[0].mxu0
    %v3268 = vadd.f32 %v3015, %v3267
    %v3269 = vpop.f32.mrb[0].mxu0
    %v3270 = vpop.f32.mrb[0].mxu0
    %v3271 = vadd.f32 %v3015, %v3270
    %v3272 = vpop.f32.mrb[0].mxu0
    %3273 = vmatprep.mubr.bf16.mxu0 %v2897
    %3274 = vmatmul.mubr.bf16.gmra.mrb[0].mxu0 %v2896
    %v3275 = vpop.f32.mrb[0].mxu0
    %v3276 = vadd.f32 %v3015, %v3275
    %v3277 = vpop.f32.mrb[0].mxu0
    %v3278 = vpop.f32.mrb[0].mxu0
    %v3279 = vadd.f32 %v3015, %v3278
    %v3280 = vpop.f32.mrb[0].mxu0
    %3281 = vmatprep.mubr.bf16.mxu0 %v2900
    %3282 = vmatmul.mubr.bf16.gmra.mrb[0].mxu0 %v2899
    %v3283 = vpop.f32.mrb[0].mxu0
    %v3284 = vadd.f32 %v3015, %v3283
    %v3285 = vpop.f32.mrb[0].mxu0
    %v3286 = vpop.f32.mrb[0].mxu0
    %v3287 = vadd.f32 %v3015, %v3286
    %v3288 = vpop.f32.mrb[0].mxu0
    %3289 = vmatprep.mubr.bf16.mxu0 %v2903
    %3290 = vmatmul.mubr.bf16.gmra.mrb[0].mxu0 %v2902
    %v3291 = vpop.f32.mrb[0].mxu0
    %v3292 = vadd.f32 %v3015, %v3291
    %v3293 = vpop.f32.mrb[0].mxu0
    %v3294 = vpop.f32.mrb[0].mxu0
    %v3295 = vadd.f32 %v3015, %v3294
    %v3296 = vpop.f32.mrb[0].mxu0
    %3297 = vmatprep.mubr.bf16.mxu0 %v2906
    %3298 = vmatmul.mubr.bf16.gmra.mrb[0].mxu0 %v2905
    %v3299 = vpop.f32.mrb[0].mxu0
    %v3300 = vadd.f32 %v3015, %v3299
    %v3301 = vpop.f32.mrb[0].mxu0
    %v3302 = vpop.f32.mrb[0].mxu0
    %v3303 = vadd.f32 %v3015, %v3302
    %v3304 = vpop.f32.mrb[0].mxu0
    %3305 = vmatprep.mubr.bf16.mxu0 %v2909
    %3306 = vmatmul.mubr.bf16.gmra.mrb[0].mxu0 %v2908
    %v3307 = vpop.f32.mrb[0].mxu0
    %v3308 = vadd.f32 %v3015, %v3307
    %v3309 = vpop.f32.mrb[0].mxu0
    %v3310 = vpop.f32.mrb[0].mxu0
    %v3311 = vadd.f32 %v3015, %v3310
    %v3312 = vpop.f32.mrb[0].mxu0
    %3313 = vmatprep.mubr.bf16.mxu0 %v2912
    %3314 = vmatmul.mubr.bf16.gmra.mrb[0].mxu0 %v2911
    %v3315 = vpop.f32.mrb[0].mxu0
    %v3316 = vadd.f32 %v3015, %v3315
    %v3317 = vpop.f32.mrb[0].mxu0
    %v3318 = vpop.f32.mrb[0].mxu0
    %v3319 = vadd.f32 %v3015, %v3318
    %v3320 = vpop.f32.mrb[0].mxu0
    %3321 = vmatprep.mubr.bf16.mxu0 %v2915
    %3322 = vmatmul.mubr.bf16.gmra.mrb[0].mxu0 %v2914
    %v3323 = vpop.f32.mrb[0].mxu0
    %v3324 = vadd.f32 %v3015, %v3323
    %v3325 = vpop.f32.mrb[0].mxu0
    %v3326 = vpop.f32.mrb[0].mxu0
    %v3327 = vadd.f32 %v3015, %v3326
    %v3328 = vpop.f32.mrb[0].mxu0
    %3329 = vmatprep.mubr.bf16.mxu0 %v2918
    %3330 = vmatmul.mubr.bf16.gmra.mrb[0].mxu0 %v2917
    %v3331 = vpop.f32.mrb[0].mxu0
    %v3332 = vadd.f32 %v3015, %v3331
    %v3333 = vpop.f32.mrb[0].mxu0
    %v3334 = vpop.f32.mrb[0].mxu0
    %v3335 = vadd.f32 %v3015, %v3334
    %v3336 = vpop.f32.mrb[0].mxu0
    %3337 = vmatprep.mubr.bf16.mxu0 %v2921
    %3338 = vmatmul.mubr.bf16.gmra.mrb[0].mxu0 %v2920
    %v3339 = vpop.f32.mrb[0].mxu0
    %v3340 = vadd.f32 %v3015, %v3339
    %v3341 = vpop.f32.mrb[0].mxu0
    %v3342 = vpop.f32.mrb[0].mxu0
    %v3343 = vadd.f32 %v3015, %v3342
    %v3344 = vpop.f32.mrb[0].mxu0
    %3345 = vmatprep.mubr.bf16.mxu0 %v2924
    %3346 = vmatmul.mubr.bf16.gmra.mrb[0].mxu0 %v2923
    %v3347 = vpop.f32.mrb[0].mxu0
    %v3348 = vadd.f32 %v3015, %v3347
    %v3349 = vpop.f32.mrb[0].mxu0
    %v3350 = vpop.f32.mrb[0].mxu0
    %v3351 = vadd.f32 %v3015, %v3350
    %v3352 = vpop.f32.mrb[0].mxu0
    %3353 = vmatprep.mubr.bf16.mxu0 %v2927
    %3354 = vmatmul.mubr.bf16.gmra.mrb[0].mxu0 %v2926
    %v3355 = vpop.f32.mrb[0].mxu0
    %v3356 = vadd.f32 %v3015, %v3355
    %v3357 = vpop.f32.mrb[0].mxu0
    %v3358 = vpop.f32.mrb[0].mxu0
    %v3359 = vadd.f32 %v3015, %v3358
    %v3360 = vpop.f32.mrb[0].mxu0
    %3361 = vmatprep.mubr.bf16.mxu0 %v2930
    %3362 = vmatmul.mubr.bf16.gmra.mrb[0].mxu0 %v2929
    %v3363 = vpop.f32.mrb[0].mxu0
    %v3364 = vadd.f32 %v3015, %v3363
    %v3365 = vpop.f32.mrb[0].mxu0
    %v3366 = vpop.f32.mrb[0].mxu0
    %v3367 = vadd.f32 %v3015, %v3366
    %v3368 = vpop.f32.mrb[0].mxu0
    %3369 = vmatprep.mubr.bf16.mxu0 %v2933
    %3370 = vmatmul.mubr.bf16.gmra.mrb[0].mxu0 %v2932
    %v3371 = vpop.f32.mrb[0].mxu0
    %v3372 = vadd.f32 %v3015, %v3371
    %v3373 = vpop.f32.mrb[0].mxu0
    %v3374 = vpop.f32.mrb[0].mxu0
    %v3375 = vadd.f32 %v3015, %v3374
    %v3376 = vpop.f32.mrb[0].mxu0
    %3377 = vmatprep.mubr.bf16.mxu0 %v2936
    %3378 = vmatmul.mubr.bf16.gmra.mrb[0].mxu0 %v2935
    %v3379 = vpop.f32.mrb[0].mxu0
    %v3380 = vadd.f32 %v3015, %v3379
    %v3381 = vpop.f32.mrb[0].mxu0
    %v3382 = vpop.f32.mrb[0].mxu0
    %v3383 = vadd.f32 %v3015, %v3382
    %v3384 = vpop.f32.mrb[0].mxu0
    %3385 = vmatprep.mubr.bf16.mxu0 %v2939
    %3386 = vmatmul.mubr.bf16.gmra.mrb[0].mxu0 %v2938
    %v3387 = vpop.f32.mrb[0].mxu0
    %v3388 = vadd.f32 %v3015, %v3387
    %v3389 = vpop.f32.mrb[0].mxu0
    %v3390 = vpop.f32.mrb[0].mxu0
    %v3391 = vadd.f32 %v3015, %v3390
    %v3392 = vpop.f32.mrb[0].mxu0
    %3393 = vmatprep.mubr.bf16.mxu0 %v2942
    %3394 = vmatmul.mubr.bf16.gmra.mrb[0].mxu0 %v2941
    %v3395 = vpop.f32.mrb[0].mxu0
    %v3396 = vadd.f32 %v3015, %v3395
    %v3397 = vpop.f32.mrb[0].mxu0
    %v3398 = vpop.f32.mrb[0].mxu0
    %v3399 = vadd.f32 %v3015, %v3398
    %v3400 = vpop.f32.mrb[0].mxu0
    %3401 = vmatprep.mubr.bf16.mxu0 %v2945
    %3402 = vmatmul.mubr.bf16.gmra.mrb[0].mxu0 %v2944
    %v3403 = vpop.f32.mrb[0].mxu0
    %v3404 = vadd.f32 %v3015, %v3403
    %v3405 = vpop.f32.mrb[0].mxu0
    %v3406 = vpop.f32.mrb[0].mxu0
    %v3407 = vadd.f32 %v3015, %v3406
    %v3408 = vpop.f32.mrb[0].mxu0
    %3409 = vmatprep.mubr.bf16.mxu0 %v2948
    %3410 = vmatmul.mubr.bf16.gmra.mrb[0].mxu0 %v2947
    %v3411 = vpop.f32.mrb[0].mxu0
    %v3412 = vadd.f32 %v3015, %v3411
    %v3413 = vpop.f32.mrb[0].mxu0
    %v3414 = vpop.f32.mrb[0].mxu0
    %v3415 = vadd.f32 %v3015, %v3414
    %v3416 = vpop.f32.mrb[0].mxu0
    %3417 = vmatprep.mubr.bf16.mxu0 %v2951
    %3418 = vmatmul.mubr.bf16.gmra.mrb[0].mxu0 %v2950
    %v3419 = vpop.f32.mrb[0].mxu0
    %v3420 = vadd.f32 %v3015, %v3419
    %v3421 = vpop.f32.mrb[0].mxu0
    %v3422 = vpop.f32.mrb[0].mxu0
    %v3423 = vadd.f32 %v3015, %v3422
    %v3424 = vpop.f32.mrb[0].mxu0
    %3425 = vmatprep.mubr.bf16.mxu0 %v2954
    %3426 = vmatmul.mubr.bf16.gmra.mrb[0].mxu0 %v2953
    %v3427 = vpop.f32.mrb[0].mxu0
    %v3428 = vadd.f32 %v3015, %v3427
    %v3429 = vpop.f32.mrb[0].mxu0
    %v3430 = vpop.f32.mrb[0].mxu0
    %v3431 = vadd.f32 %v3015, %v3430
    %v3432 = vpop.f32.mrb[0].mxu0
    %3433 = vmatprep.mubr.bf16.mxu0 %v2957
    %3434 = vmatmul.mubr.bf16.gmra.mrb[0].mxu0 %v2956
    %v3435 = vpop.f32.mrb[0].mxu0
    %v3436 = vadd.f32 %v3015, %v3435
    %v3437 = vpop.f32.mrb[0].mxu0
    %v3438 = vpop.f32.mrb[0].mxu0
    %v3439 = vadd.f32 %v3015, %v3438
    %v3440 = vpop.f32.mrb[0].mxu0
    %3441 = vmatprep.mubr.bf16.mxu0 %v2960
    %3442 = vmatmul.mubr.bf16.gmra.mrb[0].mxu0 %v2959
    %v3443 = vpop.f32.mrb[0].mxu0
    %v3444 = vadd.f32 %v3015, %v3443
    %v3445 = vpop.f32.mrb[0].mxu0
    %v3446 = vpop.f32.mrb[0].mxu0
    %v3447 = vadd.f32 %v3015, %v3446
    %v3448 = vpop.f32.mrb[0].mxu0
    %3449 = vdwg.mxu0
    %3450 = vmatprep.subr.bf16.mxu0 0
    %3451 = vmatpush1.bf16.msra.mxu0 %v3129
    %3452 = vmatprep.subr.bf16.mxu0 0
    %3453 = vmatpush1.bf16.msra.mxu0 %v3130
    %3454 = vmatprep.subr.bf16.mxu0 0
    %3455 = vmatpush1.bf16.msra.mxu0 %v3131
    %3456 = vmatprep.subr.bf16.mxu0 0
    %3457 = vmatpush1.bf16.msra.mxu0 %v3132
    %3458 = vmatprep.subr.bf16.mxu0 0
    %3459 = vmatpush1.bf16.msra.mxu0 %v3133
    %3460 = vmatprep.subr.bf16.mxu0 0
    %3461 = vmatpush1.bf16.msra.mxu0 %v3134
    %3462 = vmatprep.subr.bf16.mxu0 0
    %3463 = vmatpush1.bf16.msra.mxu0 %v3135
    %3464 = vmatprep.subr.bf16.mxu0 0
    %3465 = vmatpush1.bf16.msra.mxu0 %v3136
    %3466 = vmatprep.subr.bf16.mxu0 0
    %3467 = vmatpush1.bf16.msra.mxu0 0
    %3468 = vmatprep.subr.bf16.mxu0 0
    %3469 = vmatpush1.bf16.msra.mxu0 0
    %3470 = vmatprep.subr.bf16.mxu0 0
    %3471 = vmatpush1.bf16.msra.mxu0 0
    %3472 = vmatprep.subr.bf16.mxu0 0
    %3473 = vmatpush1.bf16.msra.mxu0 0
    %3474 = vmatprep.subr.bf16.mxu0 0
    %3475 = vmatpush1.bf16.msra.mxu0 0
    %3476 = vmatprep.subr.bf16.mxu0 0
    %3477 = vmatpush1.bf16.msra.mxu0 0
    %3478 = vmatprep.subr.bf16.mxu0 0
    %3479 = vmatpush1.bf16.msra.mxu0 0
    %3480 = vmatprep.subr.bf16.mxu0 0
    %3481 = vmatpush1.bf16.msra.mxu0 0
    %3482 = vmatprep.mubr.bf16.mxu0 0
    %3483 = vmatmul.mubr.bf16.gmra.mrb[0].mxu0 %v2868
    %v3484 = vpop.f32.mrb[0].mxu0
    %v3485 = vadd.f32 %v3196, %v3484
    %v3486 = vpop.f32.mrb[0].mxu0
    %v3487 = vpop.f32.mrb[0].mxu0
    %v3488 = vadd.f32 %v3199, %v3487
    %v3489 = vpop.f32.mrb[0].mxu0
    %3490 = vmatprep.mubr.bf16.mxu0 0
    %3491 = vmatmul.mubr.bf16.gmra.mrb[0].mxu0 %v2871
    %v3492 = vpop.f32.mrb[0].mxu0
    %v3493 = vadd.f32 %v3204, %v3492
    %v3494 = vpop.f32.mrb[0].mxu0
    %v3495 = vpop.f32.mrb[0].mxu0
    %v3496 = vadd.f32 %v3207, %v3495
    %v3497 = vpop.f32.mrb[0].mxu0
    %3498 = vmatprep.mubr.bf16.mxu0 0
    %3499 = vmatmul.mubr.bf16.gmra.mrb[0].mxu0 %v2874
    %v3500 = vpop.f32.mrb[0].mxu0
    %v3501 = vadd.f32 %v3212, %v3500
    %v3502 = vpop.f32.mrb[0].mxu0
    %v3503 = vpop.f32.mrb[0].mxu0
    %v3504 = vadd.f32 %v3215, %v3503
    %v3505 = vpop.f32.mrb[0].mxu0
    %3506 = vmatprep.mubr.bf16.mxu0 0
    %3507 = vmatmul.mubr.bf16.gmra.mrb[0].mxu0 %v2877
    %v3508 = vpop.f32.mrb[0].mxu0
    %v3509 = vadd.f32 %v3220, %v3508
    %v3510 = vpop.f32.mrb[0].mxu0
    %v3511 = vpop.f32.mrb[0].mxu0
    %v3512 = vadd.f32 %v3223, %v3511
    %v3513 = vpop.f32.mrb[0].mxu0
    %3514 = vmatprep.mubr.bf16.mxu0 0
    %3515 = vmatmul.mubr.bf16.gmra.mrb[0].mxu0 %v2880
    %v3516 = vpop.f32.mrb[0].mxu0
    %v3517 = vadd.f32 %v3228, %v3516
    %v3518 = vpop.f32.mrb[0].mxu0
    %v3519 = vpop.f32.mrb[0].mxu0
    %v3520 = vadd.f32 %v3231, %v3519
    %v3521 = vpop.f32.mrb[0].mxu0
    %3522 = vmatprep.mubr.bf16.mxu0 0
    %3523 = vmatmul.mubr.bf16.gmra.mrb[0].mxu0 %v2883
    %v3524 = vpop.f32.mrb[0].mxu0
    %v3525 = vadd.f32 %v3236, %v3524
    %v3526 = vpop.f32.mrb[0].mxu0
    %v3527 = vpop.f32.mrb[0].mxu0
    %v3528 = vadd.f32 %v3239, %v3527
    %v3529 = vpop.f32.mrb[0].mxu0
    %3530 = vmatprep.mubr.bf16.mxu0 0
    %3531 = vmatmul.mubr.bf16.gmra.mrb[0].mxu0 %v2886
    %v3532 = vpop.f32.mrb[0].mxu0
    %v3533 = vadd.f32 %v3244, %v3532
    %v3534 = vpop.f32.mrb[0].mxu0
    %v3535 = vpop.f32.mrb[0].mxu0
    %v3536 = vadd.f32 %v3247, %v3535
    %v3537 = vpop.f32.mrb[0].mxu0
    %3538 = vmatprep.mubr.bf16.mxu0 0
    %3539 = vmatmul.mubr.bf16.gmra.mrb[0].mxu0 %v2889
    %v3540 = vpop.f32.mrb[0].mxu0
    %v3541 = vadd.f32 %v3252, %v3540
    %v3542 = vpop.f32.mrb[0].mxu0
    %v3543 = vpop.f32.mrb[0].mxu0
    %v3544 = vadd.f32 %v3255, %v3543
    %v3545 = vpop.f32.mrb[0].mxu0
    %3546 = vmatprep.mubr.bf16.mxu0 0
    %3547 = vmatmul.mubr.bf16.gmra.mrb[0].mxu0 %v2892
    %v3548 = vpop.f32.mrb[0].mxu0
    %v3549 = vadd.f32 %v3260, %v3548
    %v3550 = vpop.f32.mrb[0].mxu0
    %v3551 = vpop.f32.mrb[0].mxu0
    %v3552 = vadd.f32 %v3263, %v3551
    %v3553 = vpop.f32.mrb[0].mxu0
    %3554 = vmatprep.mubr.bf16.mxu0 0
    %3555 = vmatmul.mubr.bf16.gmra.mrb[0].mxu0 %v2895
    %v3556 = vpop.f32.mrb[0].mxu0
    %v3557 = vadd.f32 %v3268, %v3556
    %v3558 = vpop.f32.mrb[0].mxu0
    %v3559 = vpop.f32.mrb[0].mxu0
    %v3560 = vadd.f32 %v3271, %v3559
    %v3561 = vpop.f32.mrb[0].mxu0
    %3562 = vmatprep.mubr.bf16.mxu0 0
    %3563 = vmatmul.mubr.bf16.gmra.mrb[0].mxu0 %v2898
    %v3564 = vpop.f32.mrb[0].mxu0
    %v3565 = vadd.f32 %v3276, %v3564
    %v3566 = vpop.f32.mrb[0].mxu0
    %v3567 = vpop.f32.mrb[0].mxu0
    %v3568 = vadd.f32 %v3279, %v3567
    %v3569 = vpop.f32.mrb[0].mxu0
    %3570 = vmatprep.mubr.bf16.mxu0 0
    %3571 = vmatmul.mubr.bf16.gmra.mrb[0].mxu0 %v2901
    %v3572 = vpop.f32.mrb[0].mxu0
    %v3573 = vadd.f32 %v3284, %v3572
    %v3574 = vpop.f32.mrb[0].mxu0
    %v3575 = vpop.f32.mrb[0].mxu0
    %v3576 = vadd.f32 %v3287, %v3575
    %v3577 = vpop.f32.mrb[0].mxu0
    %3578 = vmatprep.mubr.bf16.mxu0 0
    %3579 = vmatmul.mubr.bf16.gmra.mrb[0].mxu0 %v2904
    %v3580 = vpop.f32.mrb[0].mxu0
    %v3581 = vadd.f32 %v3292, %v3580
    %v3582 = vpop.f32.mrb[0].mxu0
    %v3583 = vpop.f32.mrb[0].mxu0
    %v3584 = vadd.f32 %v3295, %v3583
    %v3585 = vpop.f32.mrb[0].mxu0
    %3586 = vmatprep.mubr.bf16.mxu0 0
    %3587 = vmatmul.mubr.bf16.gmra.mrb[0].mxu0 %v2907
    %v3588 = vpop.f32.mrb[0].mxu0
    %v3589 = vadd.f32 %v3300, %v3588
    %v3590 = vpop.f32.mrb[0].mxu0
    %v3591 = vpop.f32.mrb[0].mxu0
    %v3592 = vadd.f32 %v3303, %v3591
    %v3593 = vpop.f32.mrb[0].mxu0
    %3594 = vmatprep.mubr.bf16.mxu0 0
    %3595 = vmatmul.mubr.bf16.gmra.mrb[0].mxu0 %v2910
    %v3596 = vpop.f32.mrb[0].mxu0
    %v3597 = vadd.f32 %v3308, %v3596
    %v3598 = vpop.f32.mrb[0].mxu0
    %v3599 = vpop.f32.mrb[0].mxu0
    %v3600 = vadd.f32 %v3311, %v3599
    %v3601 = vpop.f32.mrb[0].mxu0
    %3602 = vmatprep.mubr.bf16.mxu0 0
    %3603 = vmatmul.mubr.bf16.gmra.mrb[0].mxu0 %v2913
    %v3604 = vpop.f32.mrb[0].mxu0
    %v3605 = vadd.f32 %v3316, %v3604
    %v3606 = vpop.f32.mrb[0].mxu0
    %v3607 = vpop.f32.mrb[0].mxu0
    %v3608 = vadd.f32 %v3319, %v3607
    %v3609 = vpop.f32.mrb[0].mxu0
    %3610 = vmatprep.mubr.bf16.mxu0 0
    %3611 = vmatmul.mubr.bf16.gmra.mrb[0].mxu0 %v2916
    %v3612 = vpop.f32.mrb[0].mxu0
    %v3613 = vadd.f32 %v3324, %v3612
    %v3614 = vpop.f32.mrb[0].mxu0
    %v3615 = vpop.f32.mrb[0].mxu0
    %v3616 = vadd.f32 %v3327, %v3615
    %v3617 = vpop.f32.mrb[0].mxu0
    %3618 = vmatprep.mubr.bf16.mxu0 0
    %3619 = vmatmul.mubr.bf16.gmra.mrb[0].mxu0 %v2919
    %v3620 = vpop.f32.mrb[0].mxu0
    %v3621 = vadd.f32 %v3332, %v3620
    %v3622 = vpop.f32.mrb[0].mxu0
    %v3623 = vpop.f32.mrb[0].mxu0
    %v3624 = vadd.f32 %v3335, %v3623
    %v3625 = vpop.f32.mrb[0].mxu0
    %3626 = vmatprep.mubr.bf16.mxu0 0
    %3627 = vmatmul.mubr.bf16.gmra.mrb[0].mxu0 %v2922
    %v3628 = vpop.f32.mrb[0].mxu0
    %v3629 = vadd.f32 %v3340, %v3628
    %v3630 = vpop.f32.mrb[0].mxu0
    %v3631 = vpop.f32.mrb[0].mxu0
    %v3632 = vadd.f32 %v3343, %v3631
    %v3633 = vpop.f32.mrb[0].mxu0
    %3634 = vmatprep.mubr.bf16.mxu0 0
    %3635 = vmatmul.mubr.bf16.gmra.mrb[0].mxu0 %v2925
    %v3636 = vpop.f32.mrb[0].mxu0
    %v3637 = vadd.f32 %v3348, %v3636
    %v3638 = vpop.f32.mrb[0].mxu0
    %v3639 = vpop.f32.mrb[0].mxu0
    %v3640 = vadd.f32 %v3351, %v3639
    %v3641 = vpop.f32.mrb[0].mxu0
    %3642 = vmatprep.mubr.bf16.mxu0 0
    %3643 = vmatmul.mubr.bf16.gmra.mrb[0].mxu0 %v2928
    %v3644 = vpop.f32.mrb[0].mxu0
    %v3645 = vadd.f32 %v3356, %v3644
    %v3646 = vpop.f32.mrb[0].mxu0
    %v3647 = vpop.f32.mrb[0].mxu0
    %v3648 = vadd.f32 %v3359, %v3647
    %v3649 = vpop.f32.mrb[0].mxu0
    %3650 = vmatprep.mubr.bf16.mxu0 0
    %3651 = vmatmul.mubr.bf16.gmra.mrb[0].mxu0 %v2931
    %v3652 = vpop.f32.mrb[0].mxu0
    %v3653 = vadd.f32 %v3364, %v3652
    %v3654 = vpop.f32.mrb[0].mxu0
    %v3655 = vpop.f32.mrb[0].mxu0
    %v3656 = vadd.f32 %v3367, %v3655
    %v3657 = vpop.f32.mrb[0].mxu0
    %3658 = vmatprep.mubr.bf16.mxu0 0
    %3659 = vmatmul.mubr.bf16.gmra.mrb[0].mxu0 %v2934
    %v3660 = vpop.f32.mrb[0].mxu0
    %v3661 = vadd.f32 %v3372, %v3660
    %v3662 = vpop.f32.mrb[0].mxu0
    %v3663 = vpop.f32.mrb[0].mxu0
    %v3664 = vadd.f32 %v3375, %v3663
    %v3665 = vpop.f32.mrb[0].mxu0
    %3666 = vmatprep.mubr.bf16.mxu0 0
    %3667 = vmatmul.mubr.bf16.gmra.mrb[0].mxu0 %v2937
    %v3668 = vpop.f32.mrb[0].mxu0
    %v3669 = vadd.f32 %v3380, %v3668
    %v3670 = vpop.f32.mrb[0].mxu0
    %v3671 = vpop.f32.mrb[0].mxu0
    %v3672 = vadd.f32 %v3383, %v3671
    %v3673 = vpop.f32.mrb[0].mxu0
    %3674 = vmatprep.mubr.bf16.mxu0 0
    %3675 = vmatmul.mubr.bf16.gmra.mrb[0].mxu0 %v2940
    %v3676 = vpop.f32.mrb[0].mxu0
    %v3677 = vadd.f32 %v3388, %v3676
    %v3678 = vpop.f32.mrb[0].mxu0
    %v3679 = vpop.f32.mrb[0].mxu0
    %v3680 = vadd.f32 %v3391, %v3679
    %v3681 = vpop.f32.mrb[0].mxu0
    %3682 = vmatprep.mubr.bf16.mxu0 0
    %3683 = vmatmul.mubr.bf16.gmra.mrb[0].mxu0 %v2943
    %v3684 = vpop.f32.mrb[0].mxu0
    %v3685 = vadd.f32 %v3396, %v3684
    %v3686 = vpop.f32.mrb[0].mxu0
    %v3687 = vpop.f32.mrb[0].mxu0
    %v3688 = vadd.f32 %v3399, %v3687
    %v3689 = vpop.f32.mrb[0].mxu0
    %3690 = vmatprep.mubr.bf16.mxu0 0
    %3691 = vmatmul.mubr.bf16.gmra.mrb[0].mxu0 %v2946
    %v3692 = vpop.f32.mrb[0].mxu0
    %v3693 = vadd.f32 %v3404, %v3692
    %v3694 = vpop.f32.mrb[0].mxu0
    %v3695 = vpop.f32.mrb[0].mxu0
    %v3696 = vadd.f32 %v3407, %v3695
    %v3697 = vpop.f32.mrb[0].mxu0
    %3698 = vmatprep.mubr.bf16.mxu0 0
    %3699 = vmatmul.mubr.bf16.gmra.mrb[0].mxu0 %v2949
    %v3700 = vpop.f32.mrb[0].mxu0
    %v3701 = vadd.f32 %v3412, %v3700
    %v3702 = vpop.f32.mrb[0].mxu0
    %v3703 = vpop.f32.mrb[0].mxu0
    %v3704 = vadd.f32 %v3415, %v3703
    %v3705 = vpop.f32.mrb[0].mxu0
    %3706 = vmatprep.mubr.bf16.mxu0 0
    %3707 = vmatmul.mubr.bf16.gmra.mrb[0].mxu0 %v2952
    %v3708 = vpop.f32.mrb[0].mxu0
    %v3709 = vadd.f32 %v3420, %v3708
    %v3710 = vpop.f32.mrb[0].mxu0
    %v3711 = vpop.f32.mrb[0].mxu0
    %v3712 = vadd.f32 %v3423, %v3711
    %v3713 = vpop.f32.mrb[0].mxu0
    %3714 = vmatprep.mubr.bf16.mxu0 0
    %3715 = vmatmul.mubr.bf16.gmra.mrb[0].mxu0 %v2955
    %v3716 = vpop.f32.mrb[0].mxu0
    %v3717 = vadd.f32 %v3428, %v3716
    %v3718 = vpop.f32.mrb[0].mxu0
    %v3719 = vpop.f32.mrb[0].mxu0
    %v3720 = vadd.f32 %v3431, %v3719
    %v3721 = vpop.f32.mrb[0].mxu0
    %3722 = vmatprep.mubr.bf16.mxu0 0
    %3723 = vmatmul.mubr.bf16.gmra.mrb[0].mxu0 %v2958
    %v3724 = vpop.f32.mrb[0].mxu0
    %v3725 = vadd.f32 %v3436, %v3724
    %v3726 = vpop.f32.mrb[0].mxu0
    %v3727 = vpop.f32.mrb[0].mxu0
    %v3728 = vadd.f32 %v3439, %v3727
    %v3729 = vpop.f32.mrb[0].mxu0
    %3730 = vmatprep.mubr.bf16.mxu0 0
    %3731 = vmatmul.mubr.bf16.gmra.mrb[0].mxu0 %v2961
    %v3732 = vpop.f32.mrb[0].mxu0
    %v3733 = vadd.f32 %v3444, %v3732
    %v3734 = vpop.f32.mrb[0].mxu0
    %v3735 = vpop.f32.mrb[0].mxu0
    %v3736 = vadd.f32 %v3447, %v3735
    %v3737 = vpop.f32.mrb[0].mxu0
    %3738 = vdwg.mxu0
    %3739 = vst [vmem:[#allocation8] sm:$0xff] %v3485
    %3740 = vst [vmem:[#allocation8 + $0x8] sm:$0xff] %v3488
    %3741 = vst [vmem:[#allocation8 + $0x10] sm:$0xff] %v3493
    %3742 = vst [vmem:[#allocation8 + $0x18] sm:$0xff] %v3496
    %3743 = vst [vmem:[#allocation8 + $0x20] sm:$0xff] %v3501
    %3744 = vst [vmem:[#allocation8 + $0x28] sm:$0xff] %v3504
    %3745 = vst [vmem:[#allocation8 + $0x30] sm:$0xff] %v3509
    %3746 = vst [vmem:[#allocation8 + $0x38] sm:$0xff] %v3512
    %3747 = vst [vmem:[#allocation8 + $0x40] sm:$0xff] %v3517
    %3748 = vst [vmem:[#allocation8 + $0x48] sm:$0xff] %v3520
    %3749 = vst [vmem:[#allocation8 + $0x50] sm:$0xff] %v3525
    %3750 = vst [vmem:[#allocation8 + $0x58] sm:$0xff] %v3528
    %3751 = vst [vmem:[#allocation8 + $0x60] sm:$0xff] %v3533
    %3752 = vst [vmem:[#allocation8 + $0x68] sm:$0xff] %v3536
    %3753 = vst [vmem:[#allocation8 + $0x70] sm:$0xff] %v3541
    %3754 = vst [vmem:[#allocation8 + $0x78] sm:$0xff] %v3544
    %3755 = vst [vmem:[#allocation8 + $0x80] sm:$0xff] %v3549
    %3756 = vst [vmem:[#allocation8 + $0x88] sm:$0xff] %v3552
    %3757 = vst [vmem:[#allocation8 + $0x90] sm:$0xff] %v3557
    %3758 = vst [vmem:[#allocation8 + $0x98] sm:$0xff] %v3560
    %3759 = vst [vmem:[#allocation8 + $0xa0] sm:$0xff] %v3565
    %3760 = vst [vmem:[#allocation8 + $0xa8] sm:$0xff] %v3568
    %3761 = vst [vmem:[#allocation8 + $0xb0] sm:$0xff] %v3573
    %3762 = vst [vmem:[#allocation8 + $0xb8] sm:$0xff] %v3576
    %3763 = vst [vmem:[#allocation8 + $0xc0] sm:$0xff] %v3581
    %3764 = vst [vmem:[#allocation8 + $0xc8] sm:$0xff] %v3584
    %3765 = vst [vmem:[#allocation8 + $0xd0] sm:$0xff] %v3589
    %3766 = vst [vmem:[#allocation8 + $0xd8] sm:$0xff] %v3592
    %3767 = vst [vmem:[#allocation8 + $0xe0] sm:$0xff] %v3597
    %3768 = vst [vmem:[#allocation8 + $0xe8] sm:$0xff] %v3600
    %3769 = vst [vmem:[#allocation8 + $0xf0] sm:$0xff] %v3605
    %3770 = vst [vmem:[#allocation8 + $0xf8] sm:$0xff] %v3608
    %3771 = vst [vmem:[#allocation8 + $0x100] sm:$0xff] %v3613
    %3772 = vst [vmem:[#allocation8 + $0x108] sm:$0xff] %v3616
    %3773 = vst [vmem:[#allocation8 + $0x110] sm:$0xff] %v3621
    %3774 = vst [vmem:[#allocation8 + $0x118] sm:$0xff] %v3624
    %3775 = vst [vmem:[#allocation8 + $0x120] sm:$0xff] %v3629
    %3776 = vst [vmem:[#allocation8 + $0x128] sm:$0xff] %v3632
    %3777 = vst [vmem:[#allocation8 + $0x130] sm:$0xff] %v3637
    %3778 = vst [vmem:[#allocation8 + $0x138] sm:$0xff] %v3640
    %3779 = vst [vmem:[#allocation8 + $0x140] sm:$0xff] %v3645
    %3780 = vst [vmem:[#allocation8 + $0x148] sm:$0xff] %v3648
    %3781 = vst [vmem:[#allocation8 + $0x150] sm:$0xff] %v3653
    %3782 = vst [vmem:[#allocation8 + $0x158] sm:$0xff] %v3656
    %3783 = vst [vmem:[#allocation8 + $0x160] sm:$0xff] %v3661
    %3784 = vst [vmem:[#allocation8 + $0x168] sm:$0xff] %v3664
    %3785 = vst [vmem:[#allocation8 + $0x170] sm:$0xff] %v3669
    %3786 = vst [vmem:[#allocation8 + $0x178] sm:$0xff] %v3672
    %3787 = vst [vmem:[#allocation8 + $0x180] sm:$0xff] %v3677
    %3788 = vst [vmem:[#allocation8 + $0x188] sm:$0xff] %v3680
    %3789 = vst [vmem:[#allocation8 + $0x190] sm:$0xff] %v3685
    %3790 = vst [vmem:[#allocation8 + $0x198] sm:$0xff] %v3688
    %3791 = vst [vmem:[#allocation8 + $0x1a0] sm:$0xff] %v3693
    %3792 = vst [vmem:[#allocation8 + $0x1a8] sm:$0xff] %v3696
    %3793 = vst [vmem:[#allocation8 + $0x1b0] sm:$0xff] %v3701
    %3794 = vst [vmem:[#allocation8 + $0x1b8] sm:$0xff] %v3704
    %3795 = vst [vmem:[#allocation8 + $0x1c0] sm:$0xff] %v3709
    %3796 = vst [vmem:[#allocation8 + $0x1c8] sm:$0xff] %v3712
    %3797 = vst [vmem:[#allocation8 + $0x1d0] sm:$0xff] %v3717
    %3798 = vst [vmem:[#allocation8 + $0x1d8] sm:$0xff] %v3720
    %3799 = vst [vmem:[#allocation8 + $0x1e0] sm:$0xff] %v3725
    %3800 = vst [vmem:[#allocation8 + $0x1e8] sm:$0xff] %v3728
    %3801 = vst [vmem:[#allocation8 + $0x1f0] sm:$0xff] %v3733
    %3802 = vst [vmem:[#allocation8 + $0x1f8] sm:$0xff] %v3736
    // Predicated region
    $region34: #{tpu_custom_call.1} parent=1 // pred_check
      _
    $region35: #{tpu_custom_call.1} parent=1 // pred_check_branch
      %3804 = sbr.rel (0) target = $region37
    $region36: #{tpu_custom_call.1} parent=1 // pred_region
      %s3806 = ssub.s32 8192, 8192
      %3807 = vsyncadd [#allocation4], %s3806
      %s3808 = sshll.u32 [#allocation8], 4
      %s3809 = int_to_ptr.vmem [resolvable:$true] %s3808
      %3814 = dma.vmem_to_hbm [thread:$0]  %s3809, 8192, %s5, [#allocation4], 128, 128, 8
    $region37: #{tpu_custom_call.1} parent=1 // pred_fallthru
      _
    // Predicated region
    $region38: #{tpu_custom_call.1} parent=1 // pred_check
      _
    $region39: #{tpu_custom_call.1} parent=1 // pred_check_branch
      %3816 = sbr.rel (0) target = $region41
    $region40: #{tpu_custom_call.1} parent=1 // pred_region
      %3817 = dma.done [#allocation4], 8192
    $region41: #{tpu_custom_call.1} parent=1 // pred_fallthru
      _
    %3818 = vsyncpa [#allocation3], 1
    %3819 = vsyncpa [#allocation6], 1
    %3820 = vsyncpa [#allocation4], 1

</llo_original>
